<compile_context>
chip_gen: v5e
topology: v5e:2x2
jax: 0.10.0
libtpu: 0.0.40
codegen_flags: <defaults>
</compile_context>

<pallas_src>
import numpy as np
import jax
import jax.numpy as jnp
from jax.experimental import pallas as pl
from jax.experimental.pallas import tpu as pltpu

EPS_FUSE = 1e-4   # BiFPN fusion epsilon (module's self.epsilon)
BN_EPS = 1e-5     # nn.BatchNorm2d default eps


# --------------------------------------------------------------------------- #
# Bicubic resize matrices (F.interpolate(mode='bicubic', align_corners=False))
# built once on the host; the resize then becomes a single matmul.
# --------------------------------------------------------------------------- #
def _cubic_weight(x, a=-0.75):
    x = np.abs(x)
    f1 = ((a + 2.0) * x - (a + 3.0)) * x * x + 1.0
    f2 = (((x - 5.0) * x + 8.0) * x - 4.0) * a
    return np.where(x <= 1.0, f1, np.where(x < 2.0, f2, 0.0))


def _bicubic_matrix(out_size, in_size):
    scale = in_size / out_size
    dst = np.arange(out_size)
    src = (dst + 0.5) * scale - 0.5
    fl = np.floor(src)
    t = src - fl
    M = np.zeros((out_size, in_size), np.float32)
    for tap in range(4):
        idx = np.clip(fl.astype(np.int64) - 1 + tap, 0, in_size - 1)
        w = _cubic_weight(t - (tap - 1)).astype(np.float32)
        np.add.at(M, (dst, idx), w)
    return M


def _bicubic_kron(out_hw, in_hw):
    """(Hout*Wout, Hin*Win) matrix R such that y_flat = R @ x_flat is the
    separable bicubic resize (kron of the per-axis matrices)."""
    Mh = _bicubic_matrix(out_hw[0], in_hw[0])
    Mw = _bicubic_matrix(out_hw[1], in_hw[1])
    return np.kron(Mh, Mw)


# --------------------------------------------------------------------------- #
# Pallas kernel: the whole BiFPN layer for one batch element.
# --------------------------------------------------------------------------- #
def _make_bifpn_kernel(C, hw3, hw4, hw5, hw6):
    (H3, W3), (H4, W4), (H5, W5), (_H6, _W6) = hw3, hw4, hw5, hw6

    def conv_bn_relu(fused, wmat_ref, bias_ref, pad_ref):
        """3x3 conv (pad=1) -> BN(eval, scale folded into wmat) -> ReLU.

        Implemented as one im2col matmul (H*W, 9C) x (9C, C) in bf16 with f32
        accumulation.  Zero padding lives in the VMEM scratch `pad_ref`.
        """
        H, W, _ = fused.shape
        pad_ref[...] = jnp.zeros_like(pad_ref)            # in-kernel padding
        pad_ref[1:H + 1, 1:W + 1, :] = fused
        cols = [pad_ref[dy:dy + H, dx:dx + W, :].reshape(H * W, C)
                for dy in range(3) for dx in range(3)]
        patches = jnp.concatenate(cols, axis=1).astype(jnp.bfloat16)  # (H*W,9C)
        acc = jnp.dot(patches, wmat_ref[...],
                      preferred_element_type=jnp.float32)             # (H*W,C)
        out = jnp.maximum(acc + bias_ref[...], 0.0)       # folded BN bias + ReLU
        return out.reshape(H, W, C)

    def upsample(x, r_ref, Hout, Wout):
        """Bicubic resize as a single (Hout*Wout, Hin*Win) matmul (bf16)."""
        Hin, Win, _ = x.shape
        y = jnp.dot(r_ref[...], x.reshape(Hin * Win, C).astype(jnp.bfloat16),
                    preferred_element_type=jnp.float32)
        return y.reshape(Hout, Wout, C)

    def maxpool2(x):
        """2x2 max pool, stride 2 (F.max_pool2d(kernel_size=2))."""
        H, W, _ = x.shape
        a = x.reshape(H // 2, 2, W, C)
        xh = jnp.maximum(a[:, 0], a[:, 1])                 # pool along H
        b = xh.reshape(H // 2, W // 2, 2, C)
        return jnp.maximum(b[:, :, 0, :], b[:, :, 1, :])   # pool along W

    def kernel(wf_ref, p3_ref, p4_ref, p5_ref, p6_ref,
               r65_ref, r54_ref, r43_ref, wmat_ref, bias_ref,
               o3_ref, o4_ref, o5_ref, o6_ref, pad_ref):
        w10, w11 = wf_ref[0], wf_ref[1]
        w20, w21, w22 = wf_ref[2], wf_ref[3], wf_ref[4]
        P3, P4, P5, P6 = p3_ref[0], p4_ref[0], p5_ref[0], p6_ref[0]

        conv = lambda f: conv_bn_relu(f, wmat_ref, bias_ref, pad_ref)

        # Top-down path.
        P5_td = conv(w10 * P5 + w11 * upsample(P6, r65_ref, H5, W5))
        P4_td = conv(w10 * P4 + w11 * upsample(P5_td, r54_ref, H4, W4))
        P3_td = conv(w10 * P3 + w11 * upsample(P4_td, r43_ref, H3, W3))
        # Bottom-up path.
        P4_out = conv(w20 * P4 + w21 * P4_td + w22 * maxpool2(P3_td))
        P5_out = conv(w20 * P5 + w21 * P5_td + w22 * maxpool2(P4_out))
        P6_out = conv(w20 * P6 + w21 * maxpool2(P5_out) + w22 * P6)

        o3_ref[0] = P3_td
        o4_ref[0] = P4_out
        o5_ref[0] = P5_out
        o6_ref[0] = P6_out

    return kernel


# --------------------------------------------------------------------------- #
# Wrapper: one pallas_call for the whole layer.
# --------------------------------------------------------------------------- #
def bifpn_forward_pallas(P3, P4, P5, P6, params):
    N, H3, W3, C = P3.shape
    hw3, hw4, hw5, hw6 = [p.shape[1:3] for p in (P3, P4, P5, P6)]
    (H4, W4), (H5, W5), (H6, W6) = hw4, hw5, hw6

    # Normalized fusion weights (same scalars reused for every node, as in the
    # PyTorch module).  Packed into one SMEM vector: [w1n(2), w2n(3)].
    w = jax.nn.relu(params["w1"])
    w1n = w / (jnp.sum(w) + EPS_FUSE)
    w = jax.nn.relu(params["w2"])
    w2n = w / (jnp.sum(w) + EPS_FUSE)
    wfuse = jnp.concatenate([w1n, w2n]).astype(jnp.float32)          # (5,)

    # Fold BN(eval) scale into the conv weight, reshape to im2col layout
    # (row index = (dy*3+dx)*C + cin), cast to bf16.
    wmat = (params["conv_w"].reshape(9 * C, C) * params["bn_scale"]
            ).astype(jnp.bfloat16)                                   # (9C, C)
    bias = params["bn_bias"].astype(jnp.float32)                     # (1, C)

    # Precomputed bicubic resize matrices (host-side, static shapes), bf16.
    R65 = jnp.asarray(_bicubic_kron(hw5, hw6), jnp.bfloat16)
    R54 = jnp.asarray(_bicubic_kron(hw4, hw5), jnp.bfloat16)
    R43 = jnp.asarray(_bicubic_kron(hw3, hw4), jnp.bfloat16)

    kernel = _make_bifpn_kernel(C, hw3, hw4, hw5, hw6)

    def feat_spec(H, W):
        return pl.BlockSpec((1, H, W, C), lambda n: (n, 0, 0, 0))

    def full_spec(shape):
        return pl.BlockSpec(shape, lambda n: (0, 0))

    in_specs = [
        pl.BlockSpec(memory_space=pltpu.MemorySpace.SMEM),   # fusion weights
        feat_spec(H3, W3), feat_spec(H4, W4),
        feat_spec(H5, W5), feat_spec(H6, W6),
        full_spec(R65.shape), full_spec(R54.shape), full_spec(R43.shape),
        full_spec(wmat.shape), full_spec(bias.shape),
    ]
    out_specs = (feat_spec(H3, W3), feat_spec(H4, W4),
                 feat_spec(H5, W5), feat_spec(H6, W6))
    out_shape = tuple(jax.ShapeDtypeStruct((N, h, w_, C), jnp.float32)
                      for (h, w_) in (hw3, hw4, hw5, hw6))

    return pl.pallas_call(
        kernel,
        out_shape=out_shape,
        grid=(N,),
        in_specs=in_specs,
        out_specs=out_specs,
        scratch_shapes=[pltpu.VMEM((H3 + 2, W3 + 2, C), jnp.float32)],
        compiler_params=pltpu.CompilerParams(
            dimension_semantics=("parallel",),       # shards N over v7x's 2 TCs
            vmem_limit_bytes=32 * 1024 * 1024),
    )(wfuse, P3, P4, P5, P6, R65, R54, R43, wmat, bias)


# --------------------------------------------------------------------------- #
# Pure-JAX reference (module semantics; conv/resize operands cast to bf16 with
# f32 accumulation to mirror the kernel's intentional matmul precision).
# --------------------------------------------------------------------------- #
def bifpn_forward_ref(P3, P4, P5, P6, params):
    C = P3.shape[-1]
    w = jax.nn.relu(params["w1"])
    w1n = w / (jnp.sum(w) + EPS_FUSE)
    w = jax.nn.relu(params["w2"])
    w2n = w / (jnp.sum(w) + EPS_FUSE)
    w_hwio = (params["conv_w"] * params["bn_scale"].reshape(1, 1, 1, C)
              ).astype(jnp.bfloat16)

    def conv(x):
        y = jax.lax.conv_general_dilated(
            x.astype(jnp.bfloat16), w_hwio, (1, 1), "SAME",
            dimension_numbers=("NHWC", "HWIO", "NHWC"),
            preferred_element_type=jnp.float32)
        return jax.nn.relu(y + params["bn_bias"])

    def up(x, out_hw):
        N, Hin, Win, C_ = x.shape
        R = jnp.asarray(_bicubic_kron(out_hw, (Hin, Win)), jnp.bfloat16)
        y = jnp.einsum("oi,nic->noc", R,
                       x.reshape(N, Hin * Win, C_).astype(jnp.bfloat16),
                       preferred_element_type=jnp.float32)
        return y.reshape(N, out_hw[0], out_hw[1], C_)

    def pool(x):
        N, H, W, C_ = x.shape
        return x.reshape(N, H // 2, 2, W // 2, 2, C_).max(axis=(2, 4))

    P5_td = conv(w1n[0] * P5 + w1n[1] * up(P6, P5.shape[1:3]))
    P4_td = conv(w1n[0] * P4 + w1n[1] * up(P5_td, P4.shape[1:3]))
    P3_td = conv(w1n[0] * P3 + w1n[1] * up(P4_td, P3.shape[1:3]))
    P4_out = conv(w2n[0] * P4 + w2n[1] * P4_td + w2n[2] * pool(P3_td))
    P5_out = conv(w2n[0] * P5 + w2n[1] * P5_td + w2n[2] * pool(P4_out))
    P6_out = conv(w2n[0] * P6 + w2n[1] * pool(P5_out) + w2n[2] * P6)
    return [P3_td, P4_out, P5_out, P6_out]


# --------------------------------------------------------------------------- #
if __name__ == "__main__":
    key = jax.random.PRNGKey(0)
    k_conv, k3, k4, k5, k6 = jax.random.split(key, 5)

    N, C = 2, 8
    # Feature pyramid with factor-2 spatial steps (NHWC).
    P3 = jax.random.normal(k3, (N, 16, 16, C), jnp.float32)
    P4 = jax.random.normal(k4, (N, 8, 8, C), jnp.float32)
    P5 = jax.random.normal(k5, (N, 4, 4, C), jnp.float32)
    P6 = jax.random.normal(k6, (N, 2, 2, C), jnp.float32)

    # Deterministic parameters with the PyTorch module's shapes (conv HWIO).
    conv_w = jax.random.normal(k_conv, (3, 3, C, C), jnp.float32) * 0.1
    gamma = 1.0 + 0.05 * jnp.arange(C, dtype=jnp.float32)    # BN weight
    beta = 0.01 * jnp.arange(C, dtype=jnp.float32)           # BN bias
    run_mean = 0.02 * jnp.arange(C, dtype=jnp.float32)
    run_var = 1.0 + 0.03 * jnp.arange(C, dtype=jnp.float32)
    inv_std = gamma / jnp.sqrt(run_var + BN_EPS)
    params = {
        "conv_w": conv_w,
        "bn_scale": inv_std.reshape(1, C),                   # folded BN (eval)
        "bn_bias": (beta - run_mean * inv_std).reshape(1, C),
        "w1": jnp.ones((2,), jnp.float32),
        "w2": jnp.ones((3,), jnp.float32),
    }

    outs = jax.jit(bifpn_forward_pallas)(P3, P4, P5, P6, params)
    outs = [jax.block_until_ready(o) for o in outs]

    refs = jax.jit(bifpn_forward_ref)(P3, P4, P5, P6, params)
    refs = [jax.block_until_ready(r) for r in refs]

    # Tolerance includes margin for bf16-operand matmuls (f32 accumulation)
    # diverging in rounding order across the 6 cascaded conv nodes; typical
    # observed error is far below this.
    for o, r in zip(outs, refs):
        np.testing.assert_allclose(np.asarray(o), np.asarray(r),
                                   rtol=1e-2, atol=1e-2)

    print("KERNEL_OK")
</pallas_src>

<mosaic_0001>
module attributes {stable_mosaic.version = 11 : i64} {
  func.func @kernel(%arg0: i32, %arg1: memref<5xf32, #tpu.memory_space<smem>>, %arg2: memref<1x16x16x8xf32, #tpu.memory_space<vmem>>, %arg3: memref<1x8x8x8xf32, #tpu.memory_space<vmem>>, %arg4: memref<1x4x4x8xf32, #tpu.memory_space<vmem>>, %arg5: memref<1x2x2x8xf32, #tpu.memory_space<vmem>>, %arg6: memref<16x4xbf16, #tpu.memory_space<vmem>>, %arg7: memref<64x16xbf16, #tpu.memory_space<vmem>>, %arg8: memref<256x64xbf16, #tpu.memory_space<vmem>>, %arg9: memref<72x8xbf16, #tpu.memory_space<vmem>>, %arg10: memref<1x8xf32, #tpu.memory_space<vmem>>, %arg11: memref<1x16x16x8xf32, #tpu.memory_space<vmem>>, %arg12: memref<1x8x8x8xf32, #tpu.memory_space<vmem>>, %arg13: memref<1x4x4x8xf32, #tpu.memory_space<vmem>>, %arg14: memref<1x2x2x8xf32, #tpu.memory_space<vmem>>, %arg15: memref<18x18x8xf32, #tpu.memory_space<vmem>>) attributes {dimension_semantics = [#tpu.dimension_semantics<parallel>], iteration_bounds = array<i64: 2>, scalar_prefetch = 0 : i64, scratch_operands = 1 : i64, tpu.core_type = #tpu.core_type<tc>, window_params = [{transform_indices = @transform_0, window_bounds = array<i64: 5>}, {transform_indices = @transform_1, window_bounds = array<i64: 1, 16, 16, 8>}, {transform_indices = @transform_2, window_bounds = array<i64: 1, 8, 8, 8>}, {transform_indices = @transform_3, window_bounds = array<i64: 1, 4, 4, 8>}, {transform_indices = @transform_4, window_bounds = array<i64: 1, 2, 2, 8>}, {pipeline_mode = #tpu.pipeline_mode<synchronous>, transform_indices = @transform_5, window_bounds = array<i64: 16, 4>}, {pipeline_mode = #tpu.pipeline_mode<synchronous>, transform_indices = @transform_6, window_bounds = array<i64: 64, 16>}, {pipeline_mode = #tpu.pipeline_mode<synchronous>, transform_indices = @transform_7, window_bounds = array<i64: 256, 64>}, {pipeline_mode = #tpu.pipeline_mode<synchronous>, transform_indices = @transform_8, window_bounds = array<i64: 72, 8>}, {pipeline_mode = #tpu.pipeline_mode<synchronous>, transform_indices = @transform_9, window_bounds = array<i64: 1, 8>}, {transform_indices = @transform_10, window_bounds = array<i64: 1, 16, 16, 8>}, {transform_indices = @transform_11, window_bounds = array<i64: 1, 8, 8, 8>}, {transform_indices = @transform_12, window_bounds = array<i64: 1, 4, 4, 8>}, {transform_indices = @transform_13, window_bounds = array<i64: 1, 2, 2, 8>}]} {
    %c0 = arith.constant 0 : index
    %0 = memref.load %arg1[%c0] : memref<5xf32, #tpu.memory_space<smem>>
    %c1 = arith.constant 1 : index
    %1 = memref.load %arg1[%c1] : memref<5xf32, #tpu.memory_space<smem>>
    %c2 = arith.constant 2 : index
    %2 = memref.load %arg1[%c2] : memref<5xf32, #tpu.memory_space<smem>>
    %c3 = arith.constant 3 : index
    %3 = memref.load %arg1[%c3] : memref<5xf32, #tpu.memory_space<smem>>
    %c4 = arith.constant 4 : index
    %4 = memref.load %arg1[%c4] : memref<5xf32, #tpu.memory_space<smem>>
    %c0_0 = arith.constant 0 : index
    %c0_1 = arith.constant 0 : index
    %c0_2 = arith.constant 0 : index
    %c0_3 = arith.constant 0 : index
    %5 = vector.load %arg2[%c0_0, %c0_1, %c0_2, %c0_3] : memref<1x16x16x8xf32, #tpu.memory_space<vmem>>, vector<1x16x16x8xf32>
    %6 = vector.shape_cast %5 : vector<1x16x16x8xf32> to vector<16x16x8xf32>
    %c0_4 = arith.constant 0 : index
    %c0_5 = arith.constant 0 : index
    %c0_6 = arith.constant 0 : index
    %c0_7 = arith.constant 0 : index
    %7 = vector.load %arg3[%c0_4, %c0_5, %c0_6, %c0_7] : memref<1x8x8x8xf32, #tpu.memory_space<vmem>>, vector<1x8x8x8xf32>
    %8 = vector.shape_cast %7 : vector<1x8x8x8xf32> to vector<8x8x8xf32>
    %c0_8 = arith.constant 0 : index
    %c0_9 = arith.constant 0 : index
    %c0_10 = arith.constant 0 : index
    %c0_11 = arith.constant 0 : index
    %9 = vector.load %arg4[%c0_8, %c0_9, %c0_10, %c0_11] : memref<1x4x4x8xf32, #tpu.memory_space<vmem>>, vector<1x4x4x8xf32>
    %10 = vector.shape_cast %9 : vector<1x4x4x8xf32> to vector<4x4x8xf32>
    %c0_12 = arith.constant 0 : index
    %c0_13 = arith.constant 0 : index
    %c0_14 = arith.constant 0 : index
    %c0_15 = arith.constant 0 : index
    %11 = vector.load %arg5[%c0_12, %c0_13, %c0_14, %c0_15] : memref<1x2x2x8xf32, #tpu.memory_space<vmem>>, vector<1x2x2x8xf32>
    %12 = vector.shape_cast %11 : vector<1x2x2x8xf32> to vector<2x2x8xf32>
    %13 = vector.broadcast %0 : f32 to vector<4x4x8xf32>
    %14 = arith.mulf %13, %10 : vector<4x4x8xf32>
    %c0_16 = arith.constant 0 : index
    %c0_17 = arith.constant 0 : index
    %15 = vector.load %arg6[%c0_16, %c0_17] : memref<16x4xbf16, #tpu.memory_space<vmem>>, vector<16x4xbf16>
    %16 = vector.shape_cast %12 : vector<2x2x8xf32> to vector<4x8xf32>
    %17 = arith.truncf %16 : vector<4x8xf32> to vector<4x8xbf16>
    %cst = arith.constant dense<0.000000e+00> : vector<16x8xf32>
    %18 = tpu.matmul %15, %17, %cst {dimension_numbers = #tpu.dot_dimension_numbers<[1], [0], [0], [1], [0, 0, 1, 1], [], []>} : vector<16x4xbf16>, vector<4x8xbf16>, vector<16x8xf32> -> vector<16x8xf32>
    %19 = vector.shape_cast %18 : vector<16x8xf32> to vector<4x4x8xf32>
    %20 = vector.broadcast %1 : f32 to vector<4x4x8xf32>
    %21 = arith.mulf %20, %19 : vector<4x4x8xf32>
    %22 = arith.addf %14, %21 : vector<4x4x8xf32>
    %cst_18 = arith.constant 0.000000e+00 : f32
    %23 = vector.broadcast %cst_18 : f32 to vector<18x18x8xf32>
    %c0_19 = arith.constant 0 : index
    %c0_20 = arith.constant 0 : index
    %c0_21 = arith.constant 0 : index
    %24 = vector.load %arg15[%c0_19, %c0_20, %c0_21] : memref<18x18x8xf32, #tpu.memory_space<vmem>>, vector<18x18x8xf32>
    tpu.vector_store %arg15[%c0_19, %c0_20, %c0_21], %23 {strides = array<i32>} : memref<18x18x8xf32, #tpu.memory_space<vmem>>, vector<18x18x8xf32>,
    %c1_22 = arith.constant 1 : index
    %c1_23 = arith.constant 1 : index
    %c0_24 = arith.constant 0 : index
    %25 = vector.load %arg15[%c1_22, %c1_23, %c0_24] : memref<18x18x8xf32, #tpu.memory_space<vmem>>, vector<4x4x8xf32>
    tpu.vector_store %arg15[%c1_22, %c1_23, %c0_24], %22 {strides = array<i32>} : memref<18x18x8xf32, #tpu.memory_space<vmem>>, vector<4x4x8xf32>,
    %c0_25 = arith.constant 0 : index
    %c0_26 = arith.constant 0 : index
    %c0_27 = arith.constant 0 : index
    %26 = vector.load %arg15[%c0_25, %c0_26, %c0_27] : memref<18x18x8xf32, #tpu.memory_space<vmem>>, vector<4x4x8xf32>
    %27 = vector.shape_cast %26 : vector<4x4x8xf32> to vector<16x8xf32>
    %c0_28 = arith.constant 0 : index
    %c1_29 = arith.constant 1 : index
    %c0_30 = arith.constant 0 : index
    %28 = vector.load %arg15[%c0_28, %c1_29, %c0_30] : memref<18x18x8xf32, #tpu.memory_space<vmem>>, vector<4x4x8xf32>
    %29 = vector.shape_cast %28 : vector<4x4x8xf32> to vector<16x8xf32>
    %c0_31 = arith.constant 0 : index
    %c2_32 = arith.constant 2 : index
    %c0_33 = arith.constant 0 : index
    %30 = vector.load %arg15[%c0_31, %c2_32, %c0_33] : memref<18x18x8xf32, #tpu.memory_space<vmem>>, vector<4x4x8xf32>
    %31 = vector.shape_cast %30 : vector<4x4x8xf32> to vector<16x8xf32>
    %c1_34 = arith.constant 1 : index
    %c0_35 = arith.constant 0 : index
    %c0_36 = arith.constant 0 : index
    %32 = vector.load %arg15[%c1_34, %c0_35, %c0_36] : memref<18x18x8xf32, #tpu.memory_space<vmem>>, vector<4x4x8xf32>
    %33 = vector.shape_cast %32 : vector<4x4x8xf32> to vector<16x8xf32>
    %c1_37 = arith.constant 1 : index
    %c1_38 = arith.constant 1 : index
    %c0_39 = arith.constant 0 : index
    %34 = vector.load %arg15[%c1_37, %c1_38, %c0_39] : memref<18x18x8xf32, #tpu.memory_space<vmem>>, vector<4x4x8xf32>
    %35 = vector.shape_cast %34 : vector<4x4x8xf32> to vector<16x8xf32>
    %c1_40 = arith.constant 1 : index
    %c2_41 = arith.constant 2 : index
    %c0_42 = arith.constant 0 : index
    %36 = vector.load %arg15[%c1_40, %c2_41, %c0_42] : memref<18x18x8xf32, #tpu.memory_space<vmem>>, vector<4x4x8xf32>
    %37 = vector.shape_cast %36 : vector<4x4x8xf32> to vector<16x8xf32>
    %c2_43 = arith.constant 2 : index
    %c0_44 = arith.constant 0 : index
    %c0_45 = arith.constant 0 : index
    %38 = vector.load %arg15[%c2_43, %c0_44, %c0_45] : memref<18x18x8xf32, #tpu.memory_space<vmem>>, vector<4x4x8xf32>
    %39 = vector.shape_cast %38 : vector<4x4x8xf32> to vector<16x8xf32>
    %c2_46 = arith.constant 2 : index
    %c1_47 = arith.constant 1 : index
    %c0_48 = arith.constant 0 : index
    %40 = vector.load %arg15[%c2_46, %c1_47, %c0_48] : memref<18x18x8xf32, #tpu.memory_space<vmem>>, vector<4x4x8xf32>
    %41 = vector.shape_cast %40 : vector<4x4x8xf32> to vector<16x8xf32>
    %c2_49 = arith.constant 2 : index
    %c2_50 = arith.constant 2 : index
    %c0_51 = arith.constant 0 : index
    %42 = vector.load %arg15[%c2_49, %c2_50, %c0_51] : memref<18x18x8xf32, #tpu.memory_space<vmem>>, vector<4x4x8xf32>
    %43 = vector.shape_cast %42 : vector<4x4x8xf32> to vector<16x8xf32>
    %44 = tpu.concatenate %27, %29, %31, %33, %35, %37, %39, %41, %43 in 1 : vector<16x8xf32>, vector<16x8xf32>, vector<16x8xf32>, vector<16x8xf32>, vector<16x8xf32>, vector<16x8xf32>, vector<16x8xf32>, vector<16x8xf32>, vector<16x8xf32> -> vector<16x72xf32>
    %45 = arith.truncf %44 : vector<16x72xf32> to vector<16x72xbf16>
    %c0_52 = arith.constant 0 : index
    %c0_53 = arith.constant 0 : index
    %46 = vector.load %arg9[%c0_52, %c0_53] : memref<72x8xbf16, #tpu.memory_space<vmem>>, vector<72x8xbf16>
    %cst_54 = arith.constant dense<0.000000e+00> : vector<16x8xf32>
    %47 = tpu.matmul %45, %46, %cst_54 {dimension_numbers = #tpu.dot_dimension_numbers<[1], [0], [0], [1], [0, 0, 1, 1], [], []>} : vector<16x72xbf16>, vector<72x8xbf16>, vector<16x8xf32> -> vector<16x8xf32>
    %c0_55 = arith.constant 0 : index
    %c0_56 = arith.constant 0 : index
    %48 = vector.load %arg10[%c0_55, %c0_56] : memref<1x8xf32, #tpu.memory_space<vmem>>, vector<1x8xf32>
    %49 = vector.broadcast %48 : vector<1x8xf32> to vector<16x8xf32>
    %50 = arith.addf %47, %49 : vector<16x8xf32>
    %cst_57 = arith.constant 0.000000e+00 : f32
    %51 = vector.broadcast %cst_57 : f32 to vector<16x8xf32>
    %52 = arith.maximumf %50, %51 : vector<16x8xf32>
    %53 = vector.shape_cast %52 : vector<16x8xf32> to vector<4x4x8xf32>
    %54 = vector.broadcast %0 : f32 to vector<8x8x8xf32>
    %55 = arith.mulf %54, %8 : vector<8x8x8xf32>
    %c0_58 = arith.constant 0 : index
    %c0_59 = arith.constant 0 : index
    %56 = vector.load %arg7[%c0_58, %c0_59] : memref<64x16xbf16, #tpu.memory_space<vmem>>, vector<64x16xbf16>
    %57 = vector.shape_cast %53 : vector<4x4x8xf32> to vector<16x8xf32>
    %58 = arith.truncf %57 : vector<16x8xf32> to vector<16x8xbf16>
    %cst_60 = arith.constant dense<0.000000e+00> : vector<64x8xf32>
    %59 = tpu.matmul %56, %58, %cst_60 {dimension_numbers = #tpu.dot_dimension_numbers<[1], [0], [0], [1], [0, 0, 1, 1], [], []>} : vector<64x16xbf16>, vector<16x8xbf16>, vector<64x8xf32> -> vector<64x8xf32>
    %60 = vector.shape_cast %59 : vector<64x8xf32> to vector<8x8x8xf32>
    %61 = vector.broadcast %1 : f32 to vector<8x8x8xf32>
    %62 = arith.mulf %61, %60 : vector<8x8x8xf32>
    %63 = arith.addf %55, %62 : vector<8x8x8xf32>
    %cst_61 = arith.constant 0.000000e+00 : f32
    %64 = vector.broadcast %cst_61 : f32 to vector<18x18x8xf32>
    %c0_62 = arith.constant 0 : index
    %c0_63 = arith.constant 0 : index
    %c0_64 = arith.constant 0 : index
    %65 = vector.load %arg15[%c0_62, %c0_63, %c0_64] : memref<18x18x8xf32, #tpu.memory_space<vmem>>, vector<18x18x8xf32>
    tpu.vector_store %arg15[%c0_62, %c0_63, %c0_64], %64 {strides = array<i32>} : memref<18x18x8xf32, #tpu.memory_space<vmem>>, vector<18x18x8xf32>,
    %c1_65 = arith.constant 1 : index
    %c1_66 = arith.constant 1 : index
    %c0_67 = arith.constant 0 : index
    %66 = vector.load %arg15[%c1_65, %c1_66, %c0_67] : memref<18x18x8xf32, #tpu.memory_space<vmem>>, vector<8x8x8xf32>
    tpu.vector_store %arg15[%c1_65, %c1_66, %c0_67], %63 {strides = array<i32>} : memref<18x18x8xf32, #tpu.memory_space<vmem>>, vector<8x8x8xf32>,
    %c0_68 = arith.constant 0 : index
    %c0_69 = arith.constant 0 : index
    %c0_70 = arith.constant 0 : index
    %67 = vector.load %arg15[%c0_68, %c0_69, %c0_70] : memref<18x18x8xf32, #tpu.memory_space<vmem>>, vector<8x8x8xf32>
    %68 = vector.shape_cast %67 : vector<8x8x8xf32> to vector<64x8xf32>
    %c0_71 = arith.constant 0 : index
    %c1_72 = arith.constant 1 : index
    %c0_73 = arith.constant 0 : index
    %69 = vector.load %arg15[%c0_71, %c1_72, %c0_73] : memref<18x18x8xf32, #tpu.memory_space<vmem>>, vector<8x8x8xf32>
    %70 = vector.shape_cast %69 : vector<8x8x8xf32> to vector<64x8xf32>
    %c0_74 = arith.constant 0 : index
    %c2_75 = arith.constant 2 : index
    %c0_76 = arith.constant 0 : index
    %71 = vector.load %arg15[%c0_74, %c2_75, %c0_76] : memref<18x18x8xf32, #tpu.memory_space<vmem>>, vector<8x8x8xf32>
    %72 = vector.shape_cast %71 : vector<8x8x8xf32> to vector<64x8xf32>
    %c1_77 = arith.constant 1 : index
    %c0_78 = arith.constant 0 : index
    %c0_79 = arith.constant 0 : index
    %73 = vector.load %arg15[%c1_77, %c0_78, %c0_79] : memref<18x18x8xf32, #tpu.memory_space<vmem>>, vector<8x8x8xf32>
    %74 = vector.shape_cast %73 : vector<8x8x8xf32> to vector<64x8xf32>
    %c1_80 = arith.constant 1 : index
    %c1_81 = arith.constant 1 : index
    %c0_82 = arith.constant 0 : index
    %75 = vector.load %arg15[%c1_80, %c1_81, %c0_82] : memref<18x18x8xf32, #tpu.memory_space<vmem>>, vector<8x8x8xf32>
    %76 = vector.shape_cast %75 : vector<8x8x8xf32> to vector<64x8xf32>
    %c1_83 = arith.constant 1 : index
    %c2_84 = arith.constant 2 : index
    %c0_85 = arith.constant 0 : index
    %77 = vector.load %arg15[%c1_83, %c2_84, %c0_85] : memref<18x18x8xf32, #tpu.memory_space<vmem>>, vector<8x8x8xf32>
    %78 = vector.shape_cast %77 : vector<8x8x8xf32> to vector<64x8xf32>
    %c2_86 = arith.constant 2 : index
    %c0_87 = arith.constant 0 : index
    %c0_88 = arith.constant 0 : index
    %79 = vector.load %arg15[%c2_86, %c0_87, %c0_88] : memref<18x18x8xf32, #tpu.memory_space<vmem>>, vector<8x8x8xf32>
    %80 = vector.shape_cast %79 : vector<8x8x8xf32> to vector<64x8xf32>
    %c2_89 = arith.constant 2 : index
    %c1_90 = arith.constant 1 : index
    %c0_91 = arith.constant 0 : index
    %81 = vector.load %arg15[%c2_89, %c1_90, %c0_91] : memref<18x18x8xf32, #tpu.memory_space<vmem>>, vector<8x8x8xf32>
    %82 = vector.shape_cast %81 : vector<8x8x8xf32> to vector<64x8xf32>
    %c2_92 = arith.constant 2 : index
    %c2_93 = arith.constant 2 : index
    %c0_94 = arith.constant 0 : index
    %83 = vector.load %arg15[%c2_92, %c2_93, %c0_94] : memref<18x18x8xf32, #tpu.memory_space<vmem>>, vector<8x8x8xf32>
    %84 = vector.shape_cast %83 : vector<8x8x8xf32> to vector<64x8xf32>
    %85 = tpu.concatenate %68, %70, %72, %74, %76, %78, %80, %82, %84 in 1 : vector<64x8xf32>, vector<64x8xf32>, vector<64x8xf32>, vector<64x8xf32>, vector<64x8xf32>, vector<64x8xf32>, vector<64x8xf32>, vector<64x8xf32>, vector<64x8xf32> -> vector<64x72xf32>
    %86 = arith.truncf %85 : vector<64x72xf32> to vector<64x72xbf16>
    %c0_95 = arith.constant 0 : index
    %c0_96 = arith.constant 0 : index
    %87 = vector.load %arg9[%c0_95, %c0_96] : memref<72x8xbf16, #tpu.memory_space<vmem>>, vector<72x8xbf16>
    %cst_97 = arith.constant dense<0.000000e+00> : vector<64x8xf32>
    %88 = tpu.matmul %86, %87, %cst_97 {dimension_numbers = #tpu.dot_dimension_numbers<[1], [0], [0], [1], [0, 0, 1, 1], [], []>} : vector<64x72xbf16>, vector<72x8xbf16>, vector<64x8xf32> -> vector<64x8xf32>
    %c0_98 = arith.constant 0 : index
    %c0_99 = arith.constant 0 : index
    %89 = vector.load %arg10[%c0_98, %c0_99] : memref<1x8xf32, #tpu.memory_space<vmem>>, vector<1x8xf32>
    %90 = vector.broadcast %89 : vector<1x8xf32> to vector<64x8xf32>
    %91 = arith.addf %88, %90 : vector<64x8xf32>
    %cst_100 = arith.constant 0.000000e+00 : f32
    %92 = vector.broadcast %cst_100 : f32 to vector<64x8xf32>
    %93 = arith.maximumf %91, %92 : vector<64x8xf32>
    %94 = vector.shape_cast %93 : vector<64x8xf32> to vector<8x8x8xf32>
    %95 = vector.broadcast %0 : f32 to vector<16x16x8xf32>
    %96 = arith.mulf %95, %6 : vector<16x16x8xf32>
    %c0_101 = arith.constant 0 : index
    %c0_102 = arith.constant 0 : index
    %97 = vector.load %arg8[%c0_101, %c0_102] : memref<256x64xbf16, #tpu.memory_space<vmem>>, vector<256x64xbf16>
    %98 = vector.shape_cast %94 : vector<8x8x8xf32> to vector<64x8xf32>
    %99 = arith.truncf %98 : vector<64x8xf32> to vector<64x8xbf16>
    %cst_103 = arith.constant dense<0.000000e+00> : vector<256x8xf32>
    %100 = tpu.matmul %97, %99, %cst_103 {dimension_numbers = #tpu.dot_dimension_numbers<[1], [0], [0], [1], [0, 0, 1, 1], [], []>} : vector<256x64xbf16>, vector<64x8xbf16>, vector<256x8xf32> -> vector<256x8xf32>
    %101 = vector.shape_cast %100 : vector<256x8xf32> to vector<16x16x8xf32>
    %102 = vector.broadcast %1 : f32 to vector<16x16x8xf32>
    %103 = arith.mulf %102, %101 : vector<16x16x8xf32>
    %104 = arith.addf %96, %103 : vector<16x16x8xf32>
    %cst_104 = arith.constant 0.000000e+00 : f32
    %105 = vector.broadcast %cst_104 : f32 to vector<18x18x8xf32>
    %c0_105 = arith.constant 0 : index
    %c0_106 = arith.constant 0 : index
    %c0_107 = arith.constant 0 : index
    %106 = vector.load %arg15[%c0_105, %c0_106, %c0_107] : memref<18x18x8xf32, #tpu.memory_space<vmem>>, vector<18x18x8xf32>
    tpu.vector_store %arg15[%c0_105, %c0_106, %c0_107], %105 {strides = array<i32>} : memref<18x18x8xf32, #tpu.memory_space<vmem>>, vector<18x18x8xf32>,
    %c1_108 = arith.constant 1 : index
    %c1_109 = arith.constant 1 : index
    %c0_110 = arith.constant 0 : index
    %107 = vector.load %arg15[%c1_108, %c1_109, %c0_110] : memref<18x18x8xf32, #tpu.memory_space<vmem>>, vector<16x16x8xf32>
    tpu.vector_store %arg15[%c1_108, %c1_109, %c0_110], %104 {strides = array<i32>} : memref<18x18x8xf32, #tpu.memory_space<vmem>>, vector<16x16x8xf32>,
    %c0_111 = arith.constant 0 : index
    %c0_112 = arith.constant 0 : index
    %c0_113 = arith.constant 0 : index
    %108 = vector.load %arg15[%c0_111, %c0_112, %c0_113] : memref<18x18x8xf32, #tpu.memory_space<vmem>>, vector<16x16x8xf32>
    %109 = vector.shape_cast %108 : vector<16x16x8xf32> to vector<256x8xf32>
    %c0_114 = arith.constant 0 : index
    %c1_115 = arith.constant 1 : index
    %c0_116 = arith.constant 0 : index
    %110 = vector.load %arg15[%c0_114, %c1_115, %c0_116] : memref<18x18x8xf32, #tpu.memory_space<vmem>>, vector<16x16x8xf32>
    %111 = vector.shape_cast %110 : vector<16x16x8xf32> to vector<256x8xf32>
    %c0_117 = arith.constant 0 : index
    %c2_118 = arith.constant 2 : index
    %c0_119 = arith.constant 0 : index
    %112 = vector.load %arg15[%c0_117, %c2_118, %c0_119] : memref<18x18x8xf32, #tpu.memory_space<vmem>>, vector<16x16x8xf32>
    %113 = vector.shape_cast %112 : vector<16x16x8xf32> to vector<256x8xf32>
    %c1_120 = arith.constant 1 : index
    %c0_121 = arith.constant 0 : index
    %c0_122 = arith.constant 0 : index
    %114 = vector.load %arg15[%c1_120, %c0_121, %c0_122] : memref<18x18x8xf32, #tpu.memory_space<vmem>>, vector<16x16x8xf32>
    %115 = vector.shape_cast %114 : vector<16x16x8xf32> to vector<256x8xf32>
    %c1_123 = arith.constant 1 : index
    %c1_124 = arith.constant 1 : index
    %c0_125 = arith.constant 0 : index
    %116 = vector.load %arg15[%c1_123, %c1_124, %c0_125] : memref<18x18x8xf32, #tpu.memory_space<vmem>>, vector<16x16x8xf32>
    %117 = vector.shape_cast %116 : vector<16x16x8xf32> to vector<256x8xf32>
    %c1_126 = arith.constant 1 : index
    %c2_127 = arith.constant 2 : index
    %c0_128 = arith.constant 0 : index
    %118 = vector.load %arg15[%c1_126, %c2_127, %c0_128] : memref<18x18x8xf32, #tpu.memory_space<vmem>>, vector<16x16x8xf32>
    %119 = vector.shape_cast %118 : vector<16x16x8xf32> to vector<256x8xf32>
    %c2_129 = arith.constant 2 : index
    %c0_130 = arith.constant 0 : index
    %c0_131 = arith.constant 0 : index
    %120 = vector.load %arg15[%c2_129, %c0_130, %c0_131] : memref<18x18x8xf32, #tpu.memory_space<vmem>>, vector<16x16x8xf32>
    %121 = vector.shape_cast %120 : vector<16x16x8xf32> to vector<256x8xf32>
    %c2_132 = arith.constant 2 : index
    %c1_133 = arith.constant 1 : index
    %c0_134 = arith.constant 0 : index
    %122 = vector.load %arg15[%c2_132, %c1_133, %c0_134] : memref<18x18x8xf32, #tpu.memory_space<vmem>>, vector<16x16x8xf32>
    %123 = vector.shape_cast %122 : vector<16x16x8xf32> to vector<256x8xf32>
    %c2_135 = arith.constant 2 : index
    %c2_136 = arith.constant 2 : index
    %c0_137 = arith.constant 0 : index
    %124 = vector.load %arg15[%c2_135, %c2_136, %c0_137] : memref<18x18x8xf32, #tpu.memory_space<vmem>>, vector<16x16x8xf32>
    %125 = vector.shape_cast %124 : vector<16x16x8xf32> to vector<256x8xf32>
    %126 = tpu.concatenate %109, %111, %113, %115, %117, %119, %121, %123, %125 in 1 : vector<256x8xf32>, vector<256x8xf32>, vector<256x8xf32>, vector<256x8xf32>, vector<256x8xf32>, vector<256x8xf32>, vector<256x8xf32>, vector<256x8xf32>, vector<256x8xf32> -> vector<256x72xf32>
    %127 = arith.truncf %126 : vector<256x72xf32> to vector<256x72xbf16>
    %c0_138 = arith.constant 0 : index
    %c0_139 = arith.constant 0 : index
    %128 = vector.load %arg9[%c0_138, %c0_139] : memref<72x8xbf16, #tpu.memory_space<vmem>>, vector<72x8xbf16>
    %cst_140 = arith.constant dense<0.000000e+00> : vector<256x8xf32>
    %129 = tpu.matmul %127, %128, %cst_140 {dimension_numbers = #tpu.dot_dimension_numbers<[1], [0], [0], [1], [0, 0, 1, 1], [], []>} : vector<256x72xbf16>, vector<72x8xbf16>, vector<256x8xf32> -> vector<256x8xf32>
    %c0_141 = arith.constant 0 : index
    %c0_142 = arith.constant 0 : index
    %130 = vector.load %arg10[%c0_141, %c0_142] : memref<1x8xf32, #tpu.memory_space<vmem>>, vector<1x8xf32>
    %131 = vector.broadcast %130 : vector<1x8xf32> to vector<256x8xf32>
    %132 = arith.addf %129, %131 : vector<256x8xf32>
    %cst_143 = arith.constant 0.000000e+00 : f32
    %133 = vector.broadcast %cst_143 : f32 to vector<256x8xf32>
    %134 = arith.maximumf %132, %133 : vector<256x8xf32>
    %135 = vector.shape_cast %134 : vector<256x8xf32> to vector<16x16x8xf32>
    %136 = vector.broadcast %2 : f32 to vector<8x8x8xf32>
    %137 = arith.mulf %136, %8 : vector<8x8x8xf32>
    %138 = vector.broadcast %3 : f32 to vector<8x8x8xf32>
    %139 = arith.mulf %138, %94 : vector<8x8x8xf32>
    %140 = arith.addf %137, %139 : vector<8x8x8xf32>
    %141 = vector.shape_cast %135 : vector<16x16x8xf32> to vector<8x2x16x8xf32>
    %142 = vector.extract_strided_slice %141 {offsets = [0, 0, 0, 0], sizes = [8, 1, 16, 8], strides = [1, 1, 1, 1]} : vector<8x2x16x8xf32> to vector<8x1x16x8xf32>
    %143 = vector.shape_cast %142 : vector<8x1x16x8xf32> to vector<8x16x8xf32>
    %144 = vector.extract_strided_slice %141 {offsets = [0, 1, 0, 0], sizes = [8, 1, 16, 8], strides = [1, 1, 1, 1]} : vector<8x2x16x8xf32> to vector<8x1x16x8xf32>
    %145 = vector.shape_cast %144 : vector<8x1x16x8xf32> to vector<8x16x8xf32>
    %146 = arith.maximumf %143, %145 : vector<8x16x8xf32>
    %147 = vector.shape_cast %146 : vector<8x16x8xf32> to vector<8x8x2x8xf32>
    %148 = vector.extract_strided_slice %147 {offsets = [0, 0, 0, 0], sizes = [8, 8, 1, 8], strides = [1, 1, 1, 1]} : vector<8x8x2x8xf32> to vector<8x8x1x8xf32>
    %149 = vector.shape_cast %148 : vector<8x8x1x8xf32> to vector<8x8x8xf32>
    %150 = vector.extract_strided_slice %147 {offsets = [0, 0, 1, 0], sizes = [8, 8, 1, 8], strides = [1, 1, 1, 1]} : vector<8x8x2x8xf32> to vector<8x8x1x8xf32>
    %151 = vector.shape_cast %150 : vector<8x8x1x8xf32> to vector<8x8x8xf32>
    %152 = arith.maximumf %149, %151 : vector<8x8x8xf32>
    %153 = vector.broadcast %4 : f32 to vector<8x8x8xf32>
    %154 = arith.mulf %153, %152 : vector<8x8x8xf32>
    %155 = arith.addf %140, %154 : vector<8x8x8xf32>
    %cst_144 = arith.constant 0.000000e+00 : f32
    %156 = vector.broadcast %cst_144 : f32 to vector<18x18x8xf32>
    %c0_145 = arith.constant 0 : index
    %c0_146 = arith.constant 0 : index
    %c0_147 = arith.constant 0 : index
    %157 = vector.load %arg15[%c0_145, %c0_146, %c0_147] : memref<18x18x8xf32, #tpu.memory_space<vmem>>, vector<18x18x8xf32>
    tpu.vector_store %arg15[%c0_145, %c0_146, %c0_147], %156 {strides = array<i32>} : memref<18x18x8xf32, #tpu.memory_space<vmem>>, vector<18x18x8xf32>,
    %c1_148 = arith.constant 1 : index
    %c1_149 = arith.constant 1 : index
    %c0_150 = arith.constant 0 : index
    %158 = vector.load %arg15[%c1_148, %c1_149, %c0_150] : memref<18x18x8xf32, #tpu.memory_space<vmem>>, vector<8x8x8xf32>
    tpu.vector_store %arg15[%c1_148, %c1_149, %c0_150], %155 {strides = array<i32>} : memref<18x18x8xf32, #tpu.memory_space<vmem>>, vector<8x8x8xf32>,
    %c0_151 = arith.constant 0 : index
    %c0_152 = arith.constant 0 : index
    %c0_153 = arith.constant 0 : index
    %159 = vector.load %arg15[%c0_151, %c0_152, %c0_153] : memref<18x18x8xf32, #tpu.memory_space<vmem>>, vector<8x8x8xf32>
    %160 = vector.shape_cast %159 : vector<8x8x8xf32> to vector<64x8xf32>
    %c0_154 = arith.constant 0 : index
    %c1_155 = arith.constant 1 : index
    %c0_156 = arith.constant 0 : index
    %161 = vector.load %arg15[%c0_154, %c1_155, %c0_156] : memref<18x18x8xf32, #tpu.memory_space<vmem>>, vector<8x8x8xf32>
    %162 = vector.shape_cast %161 : vector<8x8x8xf32> to vector<64x8xf32>
    %c0_157 = arith.constant 0 : index
    %c2_158 = arith.constant 2 : index
    %c0_159 = arith.constant 0 : index
    %163 = vector.load %arg15[%c0_157, %c2_158, %c0_159] : memref<18x18x8xf32, #tpu.memory_space<vmem>>, vector<8x8x8xf32>
    %164 = vector.shape_cast %163 : vector<8x8x8xf32> to vector<64x8xf32>
    %c1_160 = arith.constant 1 : index
    %c0_161 = arith.constant 0 : index
    %c0_162 = arith.constant 0 : index
    %165 = vector.load %arg15[%c1_160, %c0_161, %c0_162] : memref<18x18x8xf32, #tpu.memory_space<vmem>>, vector<8x8x8xf32>
    %166 = vector.shape_cast %165 : vector<8x8x8xf32> to vector<64x8xf32>
    %c1_163 = arith.constant 1 : index
    %c1_164 = arith.constant 1 : index
    %c0_165 = arith.constant 0 : index
    %167 = vector.load %arg15[%c1_163, %c1_164, %c0_165] : memref<18x18x8xf32, #tpu.memory_space<vmem>>, vector<8x8x8xf32>
    %168 = vector.shape_cast %167 : vector<8x8x8xf32> to vector<64x8xf32>
    %c1_166 = arith.constant 1 : index
    %c2_167 = arith.constant 2 : index
    %c0_168 = arith.constant 0 : index
    %169 = vector.load %arg15[%c1_166, %c2_167, %c0_168] : memref<18x18x8xf32, #tpu.memory_space<vmem>>, vector<8x8x8xf32>
    %170 = vector.shape_cast %169 : vector<8x8x8xf32> to vector<64x8xf32>
    %c2_169 = arith.constant 2 : index
    %c0_170 = arith.constant 0 : index
    %c0_171 = arith.constant 0 : index
    %171 = vector.load %arg15[%c2_169, %c0_170, %c0_171] : memref<18x18x8xf32, #tpu.memory_space<vmem>>, vector<8x8x8xf32>
    %172 = vector.shape_cast %171 : vector<8x8x8xf32> to vector<64x8xf32>
    %c2_172 = arith.constant 2 : index
    %c1_173 = arith.constant 1 : index
    %c0_174 = arith.constant 0 : index
    %173 = vector.load %arg15[%c2_172, %c1_173, %c0_174] : memref<18x18x8xf32, #tpu.memory_space<vmem>>, vector<8x8x8xf32>
    %174 = vector.shape_cast %173 : vector<8x8x8xf32> to vector<64x8xf32>
    %c2_175 = arith.constant 2 : index
    %c2_176 = arith.constant 2 : index
    %c0_177 = arith.constant 0 : index
    %175 = vector.load %arg15[%c2_175, %c2_176, %c0_177] : memref<18x18x8xf32, #tpu.memory_space<vmem>>, vector<8x8x8xf32>
    %176 = vector.shape_cast %175 : vector<8x8x8xf32> to vector<64x8xf32>
    %177 = tpu.concatenate %160, %162, %164, %166, %168, %170, %172, %174, %176 in 1 : vector<64x8xf32>, vector<64x8xf32>, vector<64x8xf32>, vector<64x8xf32>, vector<64x8xf32>, vector<64x8xf32>, vector<64x8xf32>, vector<64x8xf32>, vector<64x8xf32> -> vector<64x72xf32>
    %178 = arith.truncf %177 : vector<64x72xf32> to vector<64x72xbf16>
    %c0_178 = arith.constant 0 : index
    %c0_179 = arith.constant 0 : index
    %179 = vector.load %arg9[%c0_178, %c0_179] : memref<72x8xbf16, #tpu.memory_space<vmem>>, vector<72x8xbf16>
    %cst_180 = arith.constant dense<0.000000e+00> : vector<64x8xf32>
    %180 = tpu.matmul %178, %179, %cst_180 {dimension_numbers = #tpu.dot_dimension_numbers<[1], [0], [0], [1], [0, 0, 1, 1], [], []>} : vector<64x72xbf16>, vector<72x8xbf16>, vector<64x8xf32> -> vector<64x8xf32>
    %c0_181 = arith.constant 0 : index
    %c0_182 = arith.constant 0 : index
    %181 = vector.load %arg10[%c0_181, %c0_182] : memref<1x8xf32, #tpu.memory_space<vmem>>, vector<1x8xf32>
    %182 = vector.broadcast %181 : vector<1x8xf32> to vector<64x8xf32>
    %183 = arith.addf %180, %182 : vector<64x8xf32>
    %cst_183 = arith.constant 0.000000e+00 : f32
    %184 = vector.broadcast %cst_183 : f32 to vector<64x8xf32>
    %185 = arith.maximumf %183, %184 : vector<64x8xf32>
    %186 = vector.shape_cast %185 : vector<64x8xf32> to vector<8x8x8xf32>
    %187 = vector.broadcast %2 : f32 to vector<4x4x8xf32>
    %188 = arith.mulf %187, %10 : vector<4x4x8xf32>
    %189 = vector.broadcast %3 : f32 to vector<4x4x8xf32>
    %190 = arith.mulf %189, %53 : vector<4x4x8xf32>
    %191 = arith.addf %188, %190 : vector<4x4x8xf32>
    %192 = vector.shape_cast %186 : vector<8x8x8xf32> to vector<4x2x8x8xf32>
    %193 = vector.extract_strided_slice %192 {offsets = [0, 0, 0, 0], sizes = [4, 1, 8, 8], strides = [1, 1, 1, 1]} : vector<4x2x8x8xf32> to vector<4x1x8x8xf32>
    %194 = vector.shape_cast %193 : vector<4x1x8x8xf32> to vector<4x8x8xf32>
    %195 = vector.extract_strided_slice %192 {offsets = [0, 1, 0, 0], sizes = [4, 1, 8, 8], strides = [1, 1, 1, 1]} : vector<4x2x8x8xf32> to vector<4x1x8x8xf32>
    %196 = vector.shape_cast %195 : vector<4x1x8x8xf32> to vector<4x8x8xf32>
    %197 = arith.maximumf %194, %196 : vector<4x8x8xf32>
    %198 = vector.shape_cast %197 : vector<4x8x8xf32> to vector<4x4x2x8xf32>
    %199 = vector.extract_strided_slice %198 {offsets = [0, 0, 0, 0], sizes = [4, 4, 1, 8], strides = [1, 1, 1, 1]} : vector<4x4x2x8xf32> to vector<4x4x1x8xf32>
    %200 = vector.shape_cast %199 : vector<4x4x1x8xf32> to vector<4x4x8xf32>
    %201 = vector.extract_strided_slice %198 {offsets = [0, 0, 1, 0], sizes = [4, 4, 1, 8], strides = [1, 1, 1, 1]} : vector<4x4x2x8xf32> to vector<4x4x1x8xf32>
    %202 = vector.shape_cast %201 : vector<4x4x1x8xf32> to vector<4x4x8xf32>
    %203 = arith.maximumf %200, %202 : vector<4x4x8xf32>
    %204 = vector.broadcast %4 : f32 to vector<4x4x8xf32>
    %205 = arith.mulf %204, %203 : vector<4x4x8xf32>
    %206 = arith.addf %191, %205 : vector<4x4x8xf32>
    %cst_184 = arith.constant 0.000000e+00 : f32
    %207 = vector.broadcast %cst_184 : f32 to vector<18x18x8xf32>
    %c0_185 = arith.constant 0 : index
    %c0_186 = arith.constant 0 : index
    %c0_187 = arith.constant 0 : index
    %208 = vector.load %arg15[%c0_185, %c0_186, %c0_187] : memref<18x18x8xf32, #tpu.memory_space<vmem>>, vector<18x18x8xf32>
    tpu.vector_store %arg15[%c0_185, %c0_186, %c0_187], %207 {strides = array<i32>} : memref<18x18x8xf32, #tpu.memory_space<vmem>>, vector<18x18x8xf32>,
    %c1_188 = arith.constant 1 : index
    %c1_189 = arith.constant 1 : index
    %c0_190 = arith.constant 0 : index
    %209 = vector.load %arg15[%c1_188, %c1_189, %c0_190] : memref<18x18x8xf32, #tpu.memory_space<vmem>>, vector<4x4x8xf32>
    tpu.vector_store %arg15[%c1_188, %c1_189, %c0_190], %206 {strides = array<i32>} : memref<18x18x8xf32, #tpu.memory_space<vmem>>, vector<4x4x8xf32>,
    %c0_191 = arith.constant 0 : index
    %c0_192 = arith.constant 0 : index
    %c0_193 = arith.constant 0 : index
    %210 = vector.load %arg15[%c0_191, %c0_192, %c0_193] : memref<18x18x8xf32, #tpu.memory_space<vmem>>, vector<4x4x8xf32>
    %211 = vector.shape_cast %210 : vector<4x4x8xf32> to vector<16x8xf32>
    %c0_194 = arith.constant 0 : index
    %c1_195 = arith.constant 1 : index
    %c0_196 = arith.constant 0 : index
    %212 = vector.load %arg15[%c0_194, %c1_195, %c0_196] : memref<18x18x8xf32, #tpu.memory_space<vmem>>, vector<4x4x8xf32>
    %213 = vector.shape_cast %212 : vector<4x4x8xf32> to vector<16x8xf32>
    %c0_197 = arith.constant 0 : index
    %c2_198 = arith.constant 2 : index
    %c0_199 = arith.constant 0 : index
    %214 = vector.load %arg15[%c0_197, %c2_198, %c0_199] : memref<18x18x8xf32, #tpu.memory_space<vmem>>, vector<4x4x8xf32>
    %215 = vector.shape_cast %214 : vector<4x4x8xf32> to vector<16x8xf32>
    %c1_200 = arith.constant 1 : index
    %c0_201 = arith.constant 0 : index
    %c0_202 = arith.constant 0 : index
    %216 = vector.load %arg15[%c1_200, %c0_201, %c0_202] : memref<18x18x8xf32, #tpu.memory_space<vmem>>, vector<4x4x8xf32>
    %217 = vector.shape_cast %216 : vector<4x4x8xf32> to vector<16x8xf32>
    %c1_203 = arith.constant 1 : index
    %c1_204 = arith.constant 1 : index
    %c0_205 = arith.constant 0 : index
    %218 = vector.load %arg15[%c1_203, %c1_204, %c0_205] : memref<18x18x8xf32, #tpu.memory_space<vmem>>, vector<4x4x8xf32>
    %219 = vector.shape_cast %218 : vector<4x4x8xf32> to vector<16x8xf32>
    %c1_206 = arith.constant 1 : index
    %c2_207 = arith.constant 2 : index
    %c0_208 = arith.constant 0 : index
    %220 = vector.load %arg15[%c1_206, %c2_207, %c0_208] : memref<18x18x8xf32, #tpu.memory_space<vmem>>, vector<4x4x8xf32>
    %221 = vector.shape_cast %220 : vector<4x4x8xf32> to vector<16x8xf32>
    %c2_209 = arith.constant 2 : index
    %c0_210 = arith.constant 0 : index
    %c0_211 = arith.constant 0 : index
    %222 = vector.load %arg15[%c2_209, %c0_210, %c0_211] : memref<18x18x8xf32, #tpu.memory_space<vmem>>, vector<4x4x8xf32>
    %223 = vector.shape_cast %222 : vector<4x4x8xf32> to vector<16x8xf32>
    %c2_212 = arith.constant 2 : index
    %c1_213 = arith.constant 1 : index
    %c0_214 = arith.constant 0 : index
    %224 = vector.load %arg15[%c2_212, %c1_213, %c0_214] : memref<18x18x8xf32, #tpu.memory_space<vmem>>, vector<4x4x8xf32>
    %225 = vector.shape_cast %224 : vector<4x4x8xf32> to vector<16x8xf32>
    %c2_215 = arith.constant 2 : index
    %c2_216 = arith.constant 2 : index
    %c0_217 = arith.constant 0 : index
    %226 = vector.load %arg15[%c2_215, %c2_216, %c0_217] : memref<18x18x8xf32, #tpu.memory_space<vmem>>, vector<4x4x8xf32>
    %227 = vector.shape_cast %226 : vector<4x4x8xf32> to vector<16x8xf32>
    %228 = tpu.concatenate %211, %213, %215, %217, %219, %221, %223, %225, %227 in 1 : vector<16x8xf32>, vector<16x8xf32>, vector<16x8xf32>, vector<16x8xf32>, vector<16x8xf32>, vector<16x8xf32>, vector<16x8xf32>, vector<16x8xf32>, vector<16x8xf32> -> vector<16x72xf32>
    %229 = arith.truncf %228 : vector<16x72xf32> to vector<16x72xbf16>
    %c0_218 = arith.constant 0 : index
    %c0_219 = arith.constant 0 : index
    %230 = vector.load %arg9[%c0_218, %c0_219] : memref<72x8xbf16, #tpu.memory_space<vmem>>, vector<72x8xbf16>
    %cst_220 = arith.constant dense<0.000000e+00> : vector<16x8xf32>
    %231 = tpu.matmul %229, %230, %cst_220 {dimension_numbers = #tpu.dot_dimension_numbers<[1], [0], [0], [1], [0, 0, 1, 1], [], []>} : vector<16x72xbf16>, vector<72x8xbf16>, vector<16x8xf32> -> vector<16x8xf32>
    %c0_221 = arith.constant 0 : index
    %c0_222 = arith.constant 0 : index
    %232 = vector.load %arg10[%c0_221, %c0_222] : memref<1x8xf32, #tpu.memory_space<vmem>>, vector<1x8xf32>
    %233 = vector.broadcast %232 : vector<1x8xf32> to vector<16x8xf32>
    %234 = arith.addf %231, %233 : vector<16x8xf32>
    %cst_223 = arith.constant 0.000000e+00 : f32
    %235 = vector.broadcast %cst_223 : f32 to vector<16x8xf32>
    %236 = arith.maximumf %234, %235 : vector<16x8xf32>
    %237 = vector.shape_cast %236 : vector<16x8xf32> to vector<4x4x8xf32>
    %238 = vector.broadcast %2 : f32 to vector<2x2x8xf32>
    %239 = arith.mulf %238, %12 : vector<2x2x8xf32>
    %240 = vector.shape_cast %237 : vector<4x4x8xf32> to vector<2x2x4x8xf32>
    %241 = vector.extract_strided_slice %240 {offsets = [0, 0, 0, 0], sizes = [2, 1, 4, 8], strides = [1, 1, 1, 1]} : vector<2x2x4x8xf32> to vector<2x1x4x8xf32>
    %242 = vector.shape_cast %241 : vector<2x1x4x8xf32> to vector<2x4x8xf32>
    %243 = vector.extract_strided_slice %240 {offsets = [0, 1, 0, 0], sizes = [2, 1, 4, 8], strides = [1, 1, 1, 1]} : vector<2x2x4x8xf32> to vector<2x1x4x8xf32>
    %244 = vector.shape_cast %243 : vector<2x1x4x8xf32> to vector<2x4x8xf32>
    %245 = arith.maximumf %242, %244 : vector<2x4x8xf32>
    %246 = vector.shape_cast %245 : vector<2x4x8xf32> to vector<2x2x2x8xf32>
    %247 = vector.extract_strided_slice %246 {offsets = [0, 0, 0, 0], sizes = [2, 2, 1, 8], strides = [1, 1, 1, 1]} : vector<2x2x2x8xf32> to vector<2x2x1x8xf32>
    %248 = vector.shape_cast %247 : vector<2x2x1x8xf32> to vector<2x2x8xf32>
    %249 = vector.extract_strided_slice %246 {offsets = [0, 0, 1, 0], sizes = [2, 2, 1, 8], strides = [1, 1, 1, 1]} : vector<2x2x2x8xf32> to vector<2x2x1x8xf32>
    %250 = vector.shape_cast %249 : vector<2x2x1x8xf32> to vector<2x2x8xf32>
    %251 = arith.maximumf %248, %250 : vector<2x2x8xf32>
    %252 = vector.broadcast %3 : f32 to vector<2x2x8xf32>
    %253 = arith.mulf %252, %251 : vector<2x2x8xf32>
    %254 = arith.addf %239, %253 : vector<2x2x8xf32>
    %255 = vector.broadcast %4 : f32 to vector<2x2x8xf32>
    %256 = arith.mulf %255, %12 : vector<2x2x8xf32>
    %257 = arith.addf %254, %256 : vector<2x2x8xf32>
    %cst_224 = arith.constant 0.000000e+00 : f32
    %258 = vector.broadcast %cst_224 : f32 to vector<18x18x8xf32>
    %c0_225 = arith.constant 0 : index
    %c0_226 = arith.constant 0 : index
    %c0_227 = arith.constant 0 : index
    %259 = vector.load %arg15[%c0_225, %c0_226, %c0_227] : memref<18x18x8xf32, #tpu.memory_space<vmem>>, vector<18x18x8xf32>
    tpu.vector_store %arg15[%c0_225, %c0_226, %c0_227], %258 {strides = array<i32>} : memref<18x18x8xf32, #tpu.memory_space<vmem>>, vector<18x18x8xf32>,
    %c1_228 = arith.constant 1 : index
    %c1_229 = arith.constant 1 : index
    %c0_230 = arith.constant 0 : index
    %260 = vector.load %arg15[%c1_228, %c1_229, %c0_230] : memref<18x18x8xf32, #tpu.memory_space<vmem>>, vector<2x2x8xf32>
    tpu.vector_store %arg15[%c1_228, %c1_229, %c0_230], %257 {strides = array<i32>} : memref<18x18x8xf32, #tpu.memory_space<vmem>>, vector<2x2x8xf32>,
    %c0_231 = arith.constant 0 : index
    %c0_232 = arith.constant 0 : index
    %c0_233 = arith.constant 0 : index
    %261 = vector.load %arg15[%c0_231, %c0_232, %c0_233] : memref<18x18x8xf32, #tpu.memory_space<vmem>>, vector<2x2x8xf32>
    %262 = vector.shape_cast %261 : vector<2x2x8xf32> to vector<4x8xf32>
    %c0_234 = arith.constant 0 : index
    %c1_235 = arith.constant 1 : index
    %c0_236 = arith.constant 0 : index
    %263 = vector.load %arg15[%c0_234, %c1_235, %c0_236] : memref<18x18x8xf32, #tpu.memory_space<vmem>>, vector<2x2x8xf32>
    %264 = vector.shape_cast %263 : vector<2x2x8xf32> to vector<4x8xf32>
    %c0_237 = arith.constant 0 : index
    %c2_238 = arith.constant 2 : index
    %c0_239 = arith.constant 0 : index
    %265 = vector.load %arg15[%c0_237, %c2_238, %c0_239] : memref<18x18x8xf32, #tpu.memory_space<vmem>>, vector<2x2x8xf32>
    %266 = vector.shape_cast %265 : vector<2x2x8xf32> to vector<4x8xf32>
    %c1_240 = arith.constant 1 : index
    %c0_241 = arith.constant 0 : index
    %c0_242 = arith.constant 0 : index
    %267 = vector.load %arg15[%c1_240, %c0_241, %c0_242] : memref<18x18x8xf32, #tpu.memory_space<vmem>>, vector<2x2x8xf32>
    %268 = vector.shape_cast %267 : vector<2x2x8xf32> to vector<4x8xf32>
    %c1_243 = arith.constant 1 : index
    %c1_244 = arith.constant 1 : index
    %c0_245 = arith.constant 0 : index
    %269 = vector.load %arg15[%c1_243, %c1_244, %c0_245] : memref<18x18x8xf32, #tpu.memory_space<vmem>>, vector<2x2x8xf32>
    %270 = vector.shape_cast %269 : vector<2x2x8xf32> to vector<4x8xf32>
    %c1_246 = arith.constant 1 : index
    %c2_247 = arith.constant 2 : index
    %c0_248 = arith.constant 0 : index
    %271 = vector.load %arg15[%c1_246, %c2_247, %c0_248] : memref<18x18x8xf32, #tpu.memory_space<vmem>>, vector<2x2x8xf32>
    %272 = vector.shape_cast %271 : vector<2x2x8xf32> to vector<4x8xf32>
    %c2_249 = arith.constant 2 : index
    %c0_250 = arith.constant 0 : index
    %c0_251 = arith.constant 0 : index
    %273 = vector.load %arg15[%c2_249, %c0_250, %c0_251] : memref<18x18x8xf32, #tpu.memory_space<vmem>>, vector<2x2x8xf32>
    %274 = vector.shape_cast %273 : vector<2x2x8xf32> to vector<4x8xf32>
    %c2_252 = arith.constant 2 : index
    %c1_253 = arith.constant 1 : index
    %c0_254 = arith.constant 0 : index
    %275 = vector.load %arg15[%c2_252, %c1_253, %c0_254] : memref<18x18x8xf32, #tpu.memory_space<vmem>>, vector<2x2x8xf32>
    %276 = vector.shape_cast %275 : vector<2x2x8xf32> to vector<4x8xf32>
    %c2_255 = arith.constant 2 : index
    %c2_256 = arith.constant 2 : index
    %c0_257 = arith.constant 0 : index
    %277 = vector.load %arg15[%c2_255, %c2_256, %c0_257] : memref<18x18x8xf32, #tpu.memory_space<vmem>>, vector<2x2x8xf32>
    %278 = vector.shape_cast %277 : vector<2x2x8xf32> to vector<4x8xf32>
    %279 = tpu.concatenate %262, %264, %266, %268, %270, %272, %274, %276, %278 in 1 : vector<4x8xf32>, vector<4x8xf32>, vector<4x8xf32>, vector<4x8xf32>, vector<4x8xf32>, vector<4x8xf32>, vector<4x8xf32>, vector<4x8xf32>, vector<4x8xf32> -> vector<4x72xf32>
    %280 = arith.truncf %279 : vector<4x72xf32> to vector<4x72xbf16>
    %c0_258 = arith.constant 0 : index
    %c0_259 = arith.constant 0 : index
    %281 = vector.load %arg9[%c0_258, %c0_259] : memref<72x8xbf16, #tpu.memory_space<vmem>>, vector<72x8xbf16>
    %cst_260 = arith.constant dense<0.000000e+00> : vector<4x8xf32>
    %282 = tpu.matmul %280, %281, %cst_260 {dimension_numbers = #tpu.dot_dimension_numbers<[1], [0], [0], [1], [0, 0, 1, 1], [], []>} : vector<4x72xbf16>, vector<72x8xbf16>, vector<4x8xf32> -> vector<4x8xf32>
    %c0_261 = arith.constant 0 : index
    %c0_262 = arith.constant 0 : index
    %283 = vector.load %arg10[%c0_261, %c0_262] : memref<1x8xf32, #tpu.memory_space<vmem>>, vector<1x8xf32>
    %284 = vector.broadcast %283 : vector<1x8xf32> to vector<4x8xf32>
    %285 = arith.addf %282, %284 : vector<4x8xf32>
    %cst_263 = arith.constant 0.000000e+00 : f32
    %286 = vector.broadcast %cst_263 : f32 to vector<4x8xf32>
    %287 = arith.maximumf %285, %286 : vector<4x8xf32>
    %288 = vector.shape_cast %287 : vector<4x8xf32> to vector<2x2x8xf32>
    %c0_264 = arith.constant 0 : index
    %c0_265 = arith.constant 0 : index
    %c0_266 = arith.constant 0 : index
    %c0_267 = arith.constant 0 : index
    %289 = vector.load %arg11[%c0_264, %c0_265, %c0_266, %c0_267] : memref<1x16x16x8xf32, #tpu.memory_space<vmem>>, vector<1x16x16x8xf32>
    %290 = vector.shape_cast %289 : vector<1x16x16x8xf32> to vector<16x16x8xf32>
    %291 = vector.shape_cast %135 : vector<16x16x8xf32> to vector<1x16x16x8xf32>
    tpu.vector_store %arg11[%c0_264, %c0_265, %c0_266, %c0_267], %291 {strides = array<i32>} : memref<1x16x16x8xf32, #tpu.memory_space<vmem>>, vector<1x16x16x8xf32>,
    %c0_268 = arith.constant 0 : index
    %c0_269 = arith.constant 0 : index
    %c0_270 = arith.constant 0 : index
    %c0_271 = arith.constant 0 : index
    %292 = vector.load %arg12[%c0_268, %c0_269, %c0_270, %c0_271] : memref<1x8x8x8xf32, #tpu.memory_space<vmem>>, vector<1x8x8x8xf32>
    %293 = vector.shape_cast %292 : vector<1x8x8x8xf32> to vector<8x8x8xf32>
    %294 = vector.shape_cast %186 : vector<8x8x8xf32> to vector<1x8x8x8xf32>
    tpu.vector_store %arg12[%c0_268, %c0_269, %c0_270, %c0_271], %294 {strides = array<i32>} : memref<1x8x8x8xf32, #tpu.memory_space<vmem>>, vector<1x8x8x8xf32>,
    %c0_272 = arith.constant 0 : index
    %c0_273 = arith.constant 0 : index
    %c0_274 = arith.constant 0 : index
    %c0_275 = arith.constant 0 : index
    %295 = vector.load %arg13[%c0_272, %c0_273, %c0_274, %c0_275] : memref<1x4x4x8xf32, #tpu.memory_space<vmem>>, vector<1x4x4x8xf32>
    %296 = vector.shape_cast %295 : vector<1x4x4x8xf32> to vector<4x4x8xf32>
    %297 = vector.shape_cast %237 : vector<4x4x8xf32> to vector<1x4x4x8xf32>
    tpu.vector_store %arg13[%c0_272, %c0_273, %c0_274, %c0_275], %297 {strides = array<i32>} : memref<1x4x4x8xf32, #tpu.memory_space<vmem>>, vector<1x4x4x8xf32>,
    %c0_276 = arith.constant 0 : index
    %c0_277 = arith.constant 0 : index
    %c0_278 = arith.constant 0 : index
    %c0_279 = arith.constant 0 : index
    %298 = vector.load %arg14[%c0_276, %c0_277, %c0_278, %c0_279] : memref<1x2x2x8xf32, #tpu.memory_space<vmem>>, vector<1x2x2x8xf32>
    %299 = vector.shape_cast %298 : vector<1x2x2x8xf32> to vector<2x2x8xf32>
    %300 = vector.shape_cast %288 : vector<2x2x8xf32> to vector<1x2x2x8xf32>
    tpu.vector_store %arg14[%c0_276, %c0_277, %c0_278, %c0_279], %300 {strides = array<i32>} : memref<1x2x2x8xf32, #tpu.memory_space<vmem>>, vector<1x2x2x8xf32>,
    return
  }
  func.func @transform_0(%arg0: i32) -> i32 {
    %c0_i32 = arith.constant 0 : i32
    %c0_i32_0 = arith.constant 0 : i32
    return %c0_i32 : i32
  }
  func.func @transform_1(%arg0: i32) -> (i32, i32, i32, i32) {
    %c0_i32 = arith.constant 0 : i32
    %c0_i32_0 = arith.constant 0 : i32
    %c0_i32_1 = arith.constant 0 : i32
    %c0_i32_2 = arith.constant 0 : i32
    return %arg0, %c0_i32, %c0_i32_0, %c0_i32_1 : i32, i32, i32, i32
  }
  func.func @transform_2(%arg0: i32) -> (i32, i32, i32, i32) {
    %c0_i32 = arith.constant 0 : i32
    %c0_i32_0 = arith.constant 0 : i32
    %c0_i32_1 = arith.constant 0 : i32
    %c0_i32_2 = arith.constant 0 : i32
    return %arg0, %c0_i32, %c0_i32_0, %c0_i32_1 : i32, i32, i32, i32
  }
  func.func @transform_3(%arg0: i32) -> (i32, i32, i32, i32) {
    %c0_i32 = arith.constant 0 : i32
    %c0_i32_0 = arith.constant 0 : i32
    %c0_i32_1 = arith.constant 0 : i32
    %c0_i32_2 = arith.constant 0 : i32
    return %arg0, %c0_i32, %c0_i32_0, %c0_i32_1 : i32, i32, i32, i32
  }
  func.func @transform_4(%arg0: i32) -> (i32, i32, i32, i32) {
    %c0_i32 = arith.constant 0 : i32
    %c0_i32_0 = arith.constant 0 : i32
    %c0_i32_1 = arith.constant 0 : i32
    %c0_i32_2 = arith.constant 0 : i32
    return %arg0, %c0_i32, %c0_i32_0, %c0_i32_1 : i32, i32, i32, i32
  }
  func.func @transform_5(%arg0: i32) -> (i32, i32) {
    %c0_i32 = arith.constant 0 : i32
    %c0_i32_0 = arith.constant 0 : i32
    %c0_i32_1 = arith.constant 0 : i32
    return %c0_i32, %c0_i32_0 : i32, i32
  }
  func.func @transform_6(%arg0: i32) -> (i32, i32) {
    %c0_i32 = arith.constant 0 : i32
    %c0_i32_0 = arith.constant 0 : i32
    %c0_i32_1 = arith.constant 0 : i32
    return %c0_i32, %c0_i32_0 : i32, i32
  }
  func.func @transform_7(%arg0: i32) -> (i32, i32) {
    %c0_i32 = arith.constant 0 : i32
    %c0_i32_0 = arith.constant 0 : i32
    %c0_i32_1 = arith.constant 0 : i32
    return %c0_i32, %c0_i32_0 : i32, i32
  }
  func.func @transform_8(%arg0: i32) -> (i32, i32) {
    %c0_i32 = arith.constant 0 : i32
    %c0_i32_0 = arith.constant 0 : i32
    %c0_i32_1 = arith.constant 0 : i32
    return %c0_i32, %c0_i32_0 : i32, i32
  }
  func.func @transform_9(%arg0: i32) -> (i32, i32) {
    %c0_i32 = arith.constant 0 : i32
    %c0_i32_0 = arith.constant 0 : i32
    %c0_i32_1 = arith.constant 0 : i32
    return %c0_i32, %c0_i32_0 : i32, i32
  }
  func.func @transform_10(%arg0: i32) -> (i32, i32, i32, i32) {
    %c0_i32 = arith.constant 0 : i32
    %c0_i32_0 = arith.constant 0 : i32
    %c0_i32_1 = arith.constant 0 : i32
    %c0_i32_2 = arith.constant 0 : i32
    return %arg0, %c0_i32, %c0_i32_0, %c0_i32_1 : i32, i32, i32, i32
  }
  func.func @transform_11(%arg0: i32) -> (i32, i32, i32, i32) {
    %c0_i32 = arith.constant 0 : i32
    %c0_i32_0 = arith.constant 0 : i32
    %c0_i32_1 = arith.constant 0 : i32
    %c0_i32_2 = arith.constant 0 : i32
    return %arg0, %c0_i32, %c0_i32_0, %c0_i32_1 : i32, i32, i32, i32
  }
  func.func @transform_12(%arg0: i32) -> (i32, i32, i32, i32) {
    %c0_i32 = arith.constant 0 : i32
    %c0_i32_0 = arith.constant 0 : i32
    %c0_i32_1 = arith.constant 0 : i32
    %c0_i32_2 = arith.constant 0 : i32
    return %arg0, %c0_i32, %c0_i32_0, %c0_i32_1 : i32, i32, i32, i32
  }
  func.func @transform_13(%arg0: i32) -> (i32, i32, i32, i32) {
    %c0_i32 = arith.constant 0 : i32
    %c0_i32_0 = arith.constant 0 : i32
    %c0_i32_1 = arith.constant 0 : i32
    %c0_i32_2 = arith.constant 0 : i32
    return %arg0, %c0_i32, %c0_i32_0, %c0_i32_1 : i32, i32, i32, i32
  }
}

</mosaic_0001>

<llo_original>
// kernel: bifpn_forward_pallas.1
$region0: #{bifpn_forward_pallas.1}
  #allocation0 [shape = 'u32[]', space=smem, size = 0x4, offset = 0x4, fixed_abs, tag = 'smem constant byte address 0x4 - core index']
  #allocation1 [shape = 'u32[72,128]{1,0:T(1,128)}', space=vmem, size = 0x9000, scoped, tag = 'internal scratch']
  #allocation2 [shape = 'f32[18,18,8]{2,1,0:T(8,128)}', space=vmem, size = 0x36000, scoped, tag = 'scratch operand']
  %s0 = inlined_call_operand.vmem [shape: f32[5], index: 0, kind: input, shape index: {}]
  %s1 = inlined_call_operand.vmem [shape: f32[2,16,16,8], index: 1, kind: input, shape index: {}]
  %s2 = inlined_call_operand.vmem [shape: f32[2,8,8,8], index: 2, kind: input, shape index: {}]
  %s3 = inlined_call_operand.vmem [shape: f32[2,4,4,8], index: 3, kind: input, shape index: {}]
  %s4 = inlined_call_operand.vmem [shape: f32[2,2,2,8], index: 4, kind: input, shape index: {}]
  %s5 = inlined_call_operand.vmem [shape: bf16[16,4], index: 5, kind: input, shape index: {}]
  %s6 = inlined_call_operand.vmem [shape: bf16[64,16], index: 6, kind: input, shape index: {}]
  %s7 = inlined_call_operand.vmem [shape: bf16[256,64], index: 7, kind: input, shape index: {}]
  %s8 = inlined_call_operand.vmem [shape: bf16[72,8], index: 8, kind: input, shape index: {}]
  %s9 = inlined_call_operand.vmem [shape: f32[1,8], index: 9, kind: input, shape index: {}]
  %s10 = inlined_call_operand.vmem [shape: f32[2,16,16,8], index: 10, kind: output, shape index: {0}]
  %s11 = inlined_call_operand.hbm [shape: f32[2,8,8,8], index: 11, kind: output, shape index: {1}]
  %s12 = inlined_call_operand.hbm [shape: f32[2,4,4,8], index: 12, kind: output, shape index: {2}]
  %s13 = inlined_call_operand.hbm [shape: f32[2,2,2,8], index: 13, kind: output, shape index: {3}]
  %14 = xla_tuple %s10, %s11, %s12, %s13
  %s15 = sld [smem:[#allocation0]]
  $region101: #{bifpn_forward_pallas.1} parent=0
    _
  %s17 = ssub.s32 1, %s15
  %s18 = scalar_select 0, %s17, %s15
  $region1: #{bifpn_forward_pallas.1} parent=0
    #allocation3 [shape = 'u8[512]{0}', space=smem, size = 0x200, scoped, tag = 'input window, operand 0, single buffered']
    #allocation4 [shape = 's32[2]{0}', space=sflag, size = 0x8, scoped, tag = 'scoped memory for bifpn_forward_pallas.1']
    #allocation5 [shape = 's32[2]{0}', space=sflag, size = 0x8, scoped, tag = 'scoped memory for bifpn_forward_pallas.1']
    #allocation6 [shape = 'u8[65536]{0}', space=vmem, size = 0x10000, scoped, tag = 'output window, operand 1']
    #allocation7 [shape = 'u8[16384]{0}', space=vmem, size = 0x4000, scoped, tag = 'output window, operand 2']
    #allocation8 [shape = 's32[2]{0}', space=sflag, size = 0x8, scoped, tag = 'scoped memory for bifpn_forward_pallas.1']
    #allocation9 [shape = 'u8[4096]{0}', space=vmem, size = 0x1000, scoped, tag = 'output window, operand 3']
    %19 = vsyncpa [#allocation5], 0
    %20 = vsyncpa [#allocation4], 0
    %s21 = scalar_lea.sflag [#allocation4], 1
    %22 = vsyncpa %s21, 0
    %23 = vsyncpa [#allocation8], 0
    %s24 = scalar_lea.sflag [#allocation8], 1
    %25 = vsyncpa %s24, 0
    loop: start=0, step=1, limit=4
    $region2: #{bifpn_forward_pallas.1} parent=1 // loop_pre_header
      _
    $region3: #{bifpn_forward_pallas.1} parent=1 // loop_header
      %s27 = sphi 0, %s31
      %p28 = scmp.ge.s32.totalorder %s27, 4
      %s35 = sphi 0, %s35
      %s37 = sphi 0, %s35
      %s38 = sphi 0, %s37
      %s52 = sphi 0, %s38
      %s58 = sphi 0, %s60
      %s61 = sphi 0, %s58
      %s62 = sphi 0, %s61
      %s78 = sphi 0, %s62
      %s84 = sphi 0, %s86
      %s87 = sphi 0, %s84
      %s88 = sphi 0, %s87
      %s104 = sphi 0, %s88
      %s110 = sphi 0, %s112
      %s113 = sphi 0, %s110
      %s114 = sphi 0, %s113
      %s130 = sphi 0, %s114
      %s136 = sphi 0, %s138
      %s139 = sphi 0, %s136
      %s140 = sphi 0, %s139
      %s156 = sphi 0, %s140
      %s160 = sphi 0, %s160
      %s162 = sphi 0, %s160
      %s163 = sphi 0, %s162
      %s177 = sphi 0, %s163
      %s181 = sphi 0, %s181
      %s183 = sphi 0, %s181
      %s184 = sphi 0, %s183
      %s198 = sphi 0, %s184
      %s202 = sphi 0, %s202
      %s204 = sphi 0, %s202
      %s205 = sphi 0, %s204
      %s219 = sphi 0, %s205
      %s223 = sphi 0, %s223
      %s225 = sphi 0, %s223
      %s226 = sphi 0, %s225
      %s240 = sphi 0, %s226
      %s244 = sphi 0, %s244
      %s246 = sphi 0, %s244
      %s247 = sphi 0, %s246
      %s261 = sphi 0, %s247
      %s267 = sphi 0, %s269
      %s270 = sphi 0, %s267
      %s271 = sphi 0, %s270
      %s287 = sphi 0, %s271
      %s293 = sphi 0, %s295
      %s296 = sphi 0, %s293
      %s297 = sphi 0, %s296
      %s313 = sphi 0, %s297
      %s319 = sphi 0, %s321
      %s322 = sphi 0, %s319
      %s323 = sphi 0, %s322
      %s339 = sphi 0, %s323
      %s345 = sphi 0, %s347
      %s348 = sphi 0, %s345
      %s349 = sphi 0, %s348
      %s365 = sphi 0, %s349
    $region4: #{bifpn_forward_pallas.1} parent=1 // loop_header_branch
      %30 = sbr.rel (%p28) target = $region8
    $region5: #{bifpn_forward_pallas.1} parent=1 // loop_body
      %s32 = ssub.s32 %s27, 1
      %s33 = ssub.s32 %s27, 2
      %s34 = sadd.s32 %s27, 1
      %s36 = sadd.s32 %s35, 1
      %p39 = scmp.eq.s32.totalorder %s27, 1
      %p40 = scmp.ne.s32.totalorder %s35, %s37
      %p41 = scmp.eq.s32.totalorder %s27, 0
      %p42 = por %p40, %p41
      %p43 = scmp.ne.s32.totalorder %s35, %s37
      %p44 = scmp.eq.s32.totalorder %s32, 1
      %p45 = por %p43, %p44
      %p46 = scmp.ne.s32.totalorder %s37, %s38
      %p47 = scmp.eq.s32.totalorder %s32, 0
      %p48 = por %p46, %p47
      %p49 = scmp.ne.s32.totalorder %s37, %s38
      %p50 = scmp.eq.s32.totalorder %s33, 1
      %p51 = por %p49, %p50
      %p53 = scmp.ne.s32.totalorder %s38, %s52
      %p54 = scmp.eq.s32.totalorder %s33, 0
      %p55 = por %p53, %p54
      %s56 = ssub.s32 %s27, %s34
      %p57 = scmp.eq.s32.totalorder %s56, 0
      %s59 = sadd.s32 %s58, 1
      %s60 = scalar_select %p57, %s58, %s59
      %p63 = pneg %p57
      %p64 = scmp.eq.s32.totalorder %s27, 1
      %p65 = por %p63, %p64
      %p66 = scmp.ne.s32.totalorder %s58, %s61
      %p67 = scmp.eq.s32.totalorder %s27, 0
      %p68 = por %p66, %p67
      %p69 = scmp.ne.s32.totalorder %s58, %s61
      %p70 = scmp.eq.s32.totalorder %s32, 1
      %p71 = por %p69, %p70
      %p72 = scmp.ne.s32.totalorder %s61, %s62
      %p73 = scmp.eq.s32.totalorder %s32, 0
      %p74 = por %p72, %p73
      %p75 = scmp.ne.s32.totalorder %s61, %s62
      %p76 = scmp.eq.s32.totalorder %s33, 1
      %p77 = por %p75, %p76
      %p79 = scmp.ne.s32.totalorder %s62, %s78
      %p80 = scmp.eq.s32.totalorder %s33, 0
      %p81 = por %p79, %p80
      %s82 = ssub.s32 %s27, %s34
      %p83 = scmp.eq.s32.totalorder %s82, 0
      %s85 = sadd.s32 %s84, 1
      %s86 = scalar_select %p83, %s84, %s85
      %p89 = pneg %p83
      %p90 = scmp.eq.s32.totalorder %s27, 1
      %p91 = por %p89, %p90
      %p92 = scmp.ne.s32.totalorder %s84, %s87
      %p93 = scmp.eq.s32.totalorder %s27, 0
      %p94 = por %p92, %p93
      %p95 = scmp.ne.s32.totalorder %s84, %s87
      %p96 = scmp.eq.s32.totalorder %s32, 1
      %p97 = por %p95, %p96
      %p98 = scmp.ne.s32.totalorder %s87, %s88
      %p99 = scmp.eq.s32.totalorder %s32, 0
      %p100 = por %p98, %p99
      %p101 = scmp.ne.s32.totalorder %s87, %s88
      %p102 = scmp.eq.s32.totalorder %s33, 1
      %p103 = por %p101, %p102
      %p105 = scmp.ne.s32.totalorder %s88, %s104
      %p106 = scmp.eq.s32.totalorder %s33, 0
      %p107 = por %p105, %p106
      %s108 = ssub.s32 %s27, %s34
      %p109 = scmp.eq.s32.totalorder %s108, 0
      %s111 = sadd.s32 %s110, 1
      %s112 = scalar_select %p109, %s110, %s111
      %p115 = pneg %p109
      %p116 = scmp.eq.s32.totalorder %s27, 1
      %p117 = por %p115, %p116
      %p118 = scmp.ne.s32.totalorder %s110, %s113
      %p119 = scmp.eq.s32.totalorder %s27, 0
      %p120 = por %p118, %p119
      %p121 = scmp.ne.s32.totalorder %s110, %s113
      %p122 = scmp.eq.s32.totalorder %s32, 1
      %p123 = por %p121, %p122
      %p124 = scmp.ne.s32.totalorder %s113, %s114
      %p125 = scmp.eq.s32.totalorder %s32, 0
      %p126 = por %p124, %p125
      %p127 = scmp.ne.s32.totalorder %s113, %s114
      %p128 = scmp.eq.s32.totalorder %s33, 1
      %p129 = por %p127, %p128
      %p131 = scmp.ne.s32.totalorder %s114, %s130
      %p132 = scmp.eq.s32.totalorder %s33, 0
      %p133 = por %p131, %p132
      %s134 = ssub.s32 %s27, %s34
      %p135 = scmp.eq.s32.totalorder %s134, 0
      %s137 = sadd.s32 %s136, 1
      %s138 = scalar_select %p135, %s136, %s137
      %p141 = pneg %p135
      %p142 = scmp.eq.s32.totalorder %s27, 1
      %p143 = por %p141, %p142
      %p144 = scmp.ne.s32.totalorder %s136, %s139
      %p145 = scmp.eq.s32.totalorder %s27, 0
      %p146 = por %p144, %p145
      %p147 = scmp.ne.s32.totalorder %s136, %s139
      %p148 = scmp.eq.s32.totalorder %s32, 1
      %p149 = por %p147, %p148
      %p150 = scmp.ne.s32.totalorder %s139, %s140
      %p151 = scmp.eq.s32.totalorder %s32, 0
      %p152 = por %p150, %p151
      %p153 = scmp.ne.s32.totalorder %s139, %s140
      %p154 = scmp.eq.s32.totalorder %s33, 1
      %p155 = por %p153, %p154
      %p157 = scmp.ne.s32.totalorder %s140, %s156
      %p158 = scmp.eq.s32.totalorder %s33, 0
      %p159 = por %p157, %p158
      %s161 = sadd.s32 %s160, 1
      %p164 = scmp.eq.s32.totalorder %s27, 1
      %p165 = scmp.ne.s32.totalorder %s160, %s162
      %p166 = scmp.eq.s32.totalorder %s27, 0
      %p167 = por %p165, %p166
      %p168 = scmp.ne.s32.totalorder %s160, %s162
      %p169 = scmp.eq.s32.totalorder %s32, 1
      %p170 = por %p168, %p169
      %p171 = scmp.ne.s32.totalorder %s162, %s163
      %p172 = scmp.eq.s32.totalorder %s32, 0
      %p173 = por %p171, %p172
      %p174 = scmp.ne.s32.totalorder %s162, %s163
      %p175 = scmp.eq.s32.totalorder %s33, 1
      %p176 = por %p174, %p175
      %p178 = scmp.ne.s32.totalorder %s163, %s177
      %p179 = scmp.eq.s32.totalorder %s33, 0
      %p180 = por %p178, %p179
      %s182 = sadd.s32 %s181, 1
      %p185 = scmp.eq.s32.totalorder %s27, 1
      %p186 = scmp.ne.s32.totalorder %s181, %s183
      %p187 = scmp.eq.s32.totalorder %s27, 0
      %p188 = por %p186, %p187
      %p189 = scmp.ne.s32.totalorder %s181, %s183
      %p190 = scmp.eq.s32.totalorder %s32, 1
      %p191 = por %p189, %p190
      %p192 = scmp.ne.s32.totalorder %s183, %s184
      %p193 = scmp.eq.s32.totalorder %s32, 0
      %p194 = por %p192, %p193
      %p195 = scmp.ne.s32.totalorder %s183, %s184
      %p196 = scmp.eq.s32.totalorder %s33, 1
      %p197 = por %p195, %p196
      %p199 = scmp.ne.s32.totalorder %s184, %s198
      %p200 = scmp.eq.s32.totalorder %s33, 0
      %p201 = por %p199, %p200
      %s203 = sadd.s32 %s202, 1
      %p206 = scmp.eq.s32.totalorder %s27, 1
      %p207 = scmp.ne.s32.totalorder %s202, %s204
      %p208 = scmp.eq.s32.totalorder %s27, 0
      %p209 = por %p207, %p208
      %p210 = scmp.ne.s32.totalorder %s202, %s204
      %p211 = scmp.eq.s32.totalorder %s32, 1
      %p212 = por %p210, %p211
      %p213 = scmp.ne.s32.totalorder %s204, %s205
      %p214 = scmp.eq.s32.totalorder %s32, 0
      %p215 = por %p213, %p214
      %p216 = scmp.ne.s32.totalorder %s204, %s205
      %p217 = scmp.eq.s32.totalorder %s33, 1
      %p218 = por %p216, %p217
      %p220 = scmp.ne.s32.totalorder %s205, %s219
      %p221 = scmp.eq.s32.totalorder %s33, 0
      %p222 = por %p220, %p221
      %s224 = sadd.s32 %s223, 1
      %p227 = scmp.eq.s32.totalorder %s27, 1
      %p228 = scmp.ne.s32.totalorder %s223, %s225
      %p229 = scmp.eq.s32.totalorder %s27, 0
      %p230 = por %p228, %p229
      %p231 = scmp.ne.s32.totalorder %s223, %s225
      %p232 = scmp.eq.s32.totalorder %s32, 1
      %p233 = por %p231, %p232
      %p234 = scmp.ne.s32.totalorder %s225, %s226
      %p235 = scmp.eq.s32.totalorder %s32, 0
      %p236 = por %p234, %p235
      %p237 = scmp.ne.s32.totalorder %s225, %s226
      %p238 = scmp.eq.s32.totalorder %s33, 1
      %p239 = por %p237, %p238
      %p241 = scmp.ne.s32.totalorder %s226, %s240
      %p242 = scmp.eq.s32.totalorder %s33, 0
      %p243 = por %p241, %p242
      %s245 = sadd.s32 %s244, 1
      %p248 = scmp.eq.s32.totalorder %s27, 1
      %p249 = scmp.ne.s32.totalorder %s244, %s246
      %p250 = scmp.eq.s32.totalorder %s27, 0
      %p251 = por %p249, %p250
      %p252 = scmp.ne.s32.totalorder %s244, %s246
      %p253 = scmp.eq.s32.totalorder %s32, 1
      %p254 = por %p252, %p253
      %p255 = scmp.ne.s32.totalorder %s246, %s247
      %p256 = scmp.eq.s32.totalorder %s32, 0
      %p257 = por %p255, %p256
      %p258 = scmp.ne.s32.totalorder %s246, %s247
      %p259 = scmp.eq.s32.totalorder %s33, 1
      %p260 = por %p258, %p259
      %p262 = scmp.ne.s32.totalorder %s247, %s261
      %p263 = scmp.eq.s32.totalorder %s33, 0
      %p264 = por %p262, %p263
      %s265 = ssub.s32 %s27, %s34
      %p266 = scmp.eq.s32.totalorder %s265, 0
      %s268 = sadd.s32 %s267, 1
      %s269 = scalar_select %p266, %s267, %s268
      %p272 = pneg %p266
      %p273 = scmp.eq.s32.totalorder %s27, 1
      %p274 = por %p272, %p273
      %p275 = scmp.ne.s32.totalorder %s267, %s270
      %p276 = scmp.eq.s32.totalorder %s27, 0
      %p277 = por %p275, %p276
      %p278 = scmp.ne.s32.totalorder %s267, %s270
      %p279 = scmp.eq.s32.totalorder %s32, 1
      %p280 = por %p278, %p279
      %p281 = scmp.ne.s32.totalorder %s270, %s271
      %p282 = scmp.eq.s32.totalorder %s32, 0
      %p283 = por %p281, %p282
      %p284 = scmp.ne.s32.totalorder %s270, %s271
      %p285 = scmp.eq.s32.totalorder %s33, 1
      %p286 = por %p284, %p285
      %p288 = scmp.ne.s32.totalorder %s271, %s287
      %p289 = scmp.eq.s32.totalorder %s33, 0
      %p290 = por %p288, %p289
      %s291 = ssub.s32 %s27, %s34
      %p292 = scmp.eq.s32.totalorder %s291, 0
      %s294 = sadd.s32 %s293, 1
      %s295 = scalar_select %p292, %s293, %s294
      %p298 = pneg %p292
      %p299 = scmp.eq.s32.totalorder %s27, 1
      %p300 = por %p298, %p299
      %p301 = scmp.ne.s32.totalorder %s293, %s296
      %p302 = scmp.eq.s32.totalorder %s27, 0
      %p303 = por %p301, %p302
      %p304 = scmp.ne.s32.totalorder %s293, %s296
      %p305 = scmp.eq.s32.totalorder %s32, 1
      %p306 = por %p304, %p305
      %p307 = scmp.ne.s32.totalorder %s296, %s297
      %p308 = scmp.eq.s32.totalorder %s32, 0
      %p309 = por %p307, %p308
      %p310 = scmp.ne.s32.totalorder %s296, %s297
      %p311 = scmp.eq.s32.totalorder %s33, 1
      %p312 = por %p310, %p311
      %p314 = scmp.ne.s32.totalorder %s297, %s313
      %p315 = scmp.eq.s32.totalorder %s33, 0
      %p316 = por %p314, %p315
      %s317 = ssub.s32 %s27, %s34
      %p318 = scmp.eq.s32.totalorder %s317, 0
      %s320 = sadd.s32 %s319, 1
      %s321 = scalar_select %p318, %s319, %s320
      %p324 = pneg %p318
      %p325 = scmp.eq.s32.totalorder %s27, 1
      %p326 = por %p324, %p325
      %p327 = scmp.ne.s32.totalorder %s319, %s322
      %p328 = scmp.eq.s32.totalorder %s27, 0
      %p329 = por %p327, %p328
      %p330 = scmp.ne.s32.totalorder %s319, %s322
      %p331 = scmp.eq.s32.totalorder %s32, 1
      %p332 = por %p330, %p331
      %p333 = scmp.ne.s32.totalorder %s322, %s323
      %p334 = scmp.eq.s32.totalorder %s32, 0
      %p335 = por %p333, %p334
      %p336 = scmp.ne.s32.totalorder %s322, %s323
      %p337 = scmp.eq.s32.totalorder %s33, 1
      %p338 = por %p336, %p337
      %p340 = scmp.ne.s32.totalorder %s323, %s339
      %p341 = scmp.eq.s32.totalorder %s33, 0
      %p342 = por %p340, %p341
      %s343 = ssub.s32 %s27, %s34
      %p344 = scmp.eq.s32.totalorder %s343, 0
      %s346 = sadd.s32 %s345, 1
      %s347 = scalar_select %p344, %s345, %s346
      %p350 = pneg %p344
      %p351 = scmp.eq.s32.totalorder %s27, 1
      %p352 = por %p350, %p351
      %p353 = scmp.ne.s32.totalorder %s345, %s348
      %p354 = scmp.eq.s32.totalorder %s27, 0
      %p355 = por %p353, %p354
      %p356 = scmp.ne.s32.totalorder %s345, %s348
      %p357 = scmp.eq.s32.totalorder %s32, 1
      %p358 = por %p356, %p357
      %p359 = scmp.ne.s32.totalorder %s348, %s349
      %p360 = scmp.eq.s32.totalorder %s32, 0
      %p361 = por %p359, %p360
      %p362 = scmp.ne.s32.totalorder %s348, %s349
      %p363 = scmp.eq.s32.totalorder %s33, 1
      %p364 = por %p362, %p363
      %p366 = scmp.ne.s32.totalorder %s349, %s365
      %p367 = scmp.eq.s32.totalorder %s33, 0
      %p368 = por %p366, %p367
      %p369 = scmp.le.s32.totalorder 1, %s27
      %p370 = scmp.lt.s32.totalorder %s27, 3
      %p371 = pnand %p369, %p370
      %p372 = pneg %p371
      // Predicated region
      $region9: #{bifpn_forward_pallas.1} parent=5 // pred_check
        _
      $region10: #{bifpn_forward_pallas.1} parent=5 // pred_check_branch
        %374 = sbr.rel (%p371) target = $region12
      $region11: #{bifpn_forward_pallas.1} parent=5 // pred_region
        %s375 = ssub.s32 %s27, 1
        // Predicated region
        $region13: #{bifpn_forward_pallas.1} parent=11 // pred_check
          %p376 = pneg %p48
        $region14: #{bifpn_forward_pallas.1} parent=11 // pred_check_branch
          %378 = sbr.rel (%p376) target = $region16
        $region15: #{bifpn_forward_pallas.1} parent=11 // pred_region
          %380 = vsyncadd [#allocation5], 0
          %s382 = sshll.u32 %s0, 4
          %s383 = int_to_ptr.vmem [resolvable:$true] %s382
          %385 = dma.vmem_to_smem %s383, 16, [#allocation3], [#allocation5]
        $region16: #{bifpn_forward_pallas.1} parent=11 // pred_fallthru
          _
        // Predicated region
        $region17: #{bifpn_forward_pallas.1} parent=11 // pred_check
          %p386 = pneg %p173
        $region18: #{bifpn_forward_pallas.1} parent=11 // pred_check_branch
          %388 = sbr.rel (%p386) target = $region20
        $region19: #{bifpn_forward_pallas.1} parent=11 // pred_region
          _
        $region20: #{bifpn_forward_pallas.1} parent=11 // pred_fallthru
          _
        // Predicated region
        $region21: #{bifpn_forward_pallas.1} parent=11 // pred_check
          %p389 = pneg %p194
        $region22: #{bifpn_forward_pallas.1} parent=11 // pred_check_branch
          %391 = sbr.rel (%p389) target = $region24
        $region23: #{bifpn_forward_pallas.1} parent=11 // pred_region
          _
        $region24: #{bifpn_forward_pallas.1} parent=11 // pred_fallthru
          _
        // Predicated region
        $region25: #{bifpn_forward_pallas.1} parent=11 // pred_check
          %p392 = pneg %p215
        $region26: #{bifpn_forward_pallas.1} parent=11 // pred_check_branch
          %394 = sbr.rel (%p392) target = $region28
        $region27: #{bifpn_forward_pallas.1} parent=11 // pred_region
          _
        $region28: #{bifpn_forward_pallas.1} parent=11 // pred_fallthru
          _
        // Predicated region
        $region29: #{bifpn_forward_pallas.1} parent=11 // pred_check
          %p395 = pneg %p236
        $region30: #{bifpn_forward_pallas.1} parent=11 // pred_check_branch
          %397 = sbr.rel (%p395) target = $region32
        $region31: #{bifpn_forward_pallas.1} parent=11 // pred_region
          _
        $region32: #{bifpn_forward_pallas.1} parent=11 // pred_fallthru
          _
        // Predicated region
        $region33: #{bifpn_forward_pallas.1} parent=11 // pred_check
          %p398 = pneg %p257
        $region34: #{bifpn_forward_pallas.1} parent=11 // pred_check_branch
          %400 = sbr.rel (%p398) target = $region36
        $region35: #{bifpn_forward_pallas.1} parent=11 // pred_region
          _
        $region36: #{bifpn_forward_pallas.1} parent=11 // pred_fallthru
          _
      $region12: #{bifpn_forward_pallas.1} parent=5 // pred_fallthru
        _
      %p401 = scmp.lt.s32.totalorder %s27, 2
      // Predicated region
      $region37: #{bifpn_forward_pallas.1} parent=5 // pred_check
        %p402 = pneg %p401
      $region38: #{bifpn_forward_pallas.1} parent=5 // pred_check_branch
        %404 = sbr.rel (%p402) target = $region40
      $region39: #{bifpn_forward_pallas.1} parent=5 // pred_region
        // Predicated region
        $region41: #{bifpn_forward_pallas.1} parent=39 // pred_check
          %p405 = pneg %p68
        $region42: #{bifpn_forward_pallas.1} parent=39 // pred_check_branch
          %407 = sbr.rel (%p405) target = $region44
        $region43: #{bifpn_forward_pallas.1} parent=39 // pred_region
          %p408 = scmp.lt.s32.totalorder %s27, 1
          %s409 = scalar_select %p408, %s27, 1
          %s410 = smul.addr %s409, 32
          %s411 = smul.addr %s410, 8
          %s412 = scalar_lea.vmem %s1, %s411
        $region44: #{bifpn_forward_pallas.1} parent=39 // pred_fallthru
          _
        // Predicated region
        $region45: #{bifpn_forward_pallas.1} parent=39 // pred_check
          %p413 = pneg %p94
        $region46: #{bifpn_forward_pallas.1} parent=39 // pred_check_branch
          %415 = sbr.rel (%p413) target = $region48
        $region47: #{bifpn_forward_pallas.1} parent=39 // pred_region
          %p416 = scmp.lt.s32.totalorder %s27, 1
          %s417 = scalar_select %p416, %s27, 1
          %s418 = smul.addr %s417, 8
          %s419 = smul.addr %s418, 8
          %s420 = scalar_lea.vmem %s2, %s419
        $region48: #{bifpn_forward_pallas.1} parent=39 // pred_fallthru
          _
        // Predicated region
        $region49: #{bifpn_forward_pallas.1} parent=39 // pred_check
          %p421 = pneg %p120
        $region50: #{bifpn_forward_pallas.1} parent=39 // pred_check_branch
          %423 = sbr.rel (%p421) target = $region52
        $region51: #{bifpn_forward_pallas.1} parent=39 // pred_region
          %p424 = scmp.lt.s32.totalorder %s27, 1
          %s425 = scalar_select %p424, %s27, 1
          %s426 = smul.addr %s425, 4
          %s427 = smul.addr %s426, 4
          %s428 = scalar_lea.vmem %s3, %s427
        $region52: #{bifpn_forward_pallas.1} parent=39 // pred_fallthru
          _
        // Predicated region
        $region53: #{bifpn_forward_pallas.1} parent=39 // pred_check
          %p429 = pneg %p146
        $region54: #{bifpn_forward_pallas.1} parent=39 // pred_check_branch
          %431 = sbr.rel (%p429) target = $region56
        $region55: #{bifpn_forward_pallas.1} parent=39 // pred_region
          %p432 = scmp.lt.s32.totalorder %s27, 1
          %s433 = scalar_select %p432, %s27, 1
          %s434 = smul.addr %s433, 2
          %s435 = smul.addr %s434, 2
          %s436 = scalar_lea.vmem %s4, %s435
        $region56: #{bifpn_forward_pallas.1} parent=39 // pred_fallthru
          _
      $region40: #{bifpn_forward_pallas.1} parent=5 // pred_fallthru
        _
      %p437 = scmp.le.s32.totalorder 1, %s27
      %p438 = scmp.lt.s32.totalorder %s27, 3
      %p439 = pnand %p437, %p438
      %p440 = pneg %p439
      // Predicated region
      $region57: #{bifpn_forward_pallas.1} parent=5 // pred_check
        _
      $region58: #{bifpn_forward_pallas.1} parent=5 // pred_check_branch
        %442 = sbr.rel (%p439) target = $region60
      $region59: #{bifpn_forward_pallas.1} parent=5 // pred_region
        %s443 = ssub.s32 %s27, 1
        // Predicated region
        $region61: #{bifpn_forward_pallas.1} parent=59 // pred_check
          %p444 = pneg %p48
        $region62: #{bifpn_forward_pallas.1} parent=59 // pred_check_branch
          %446 = sbr.rel (%p444) target = $region64
        $region63: #{bifpn_forward_pallas.1} parent=59 // pred_region
          %448 = dma.done [#allocation5], 16
        $region64: #{bifpn_forward_pallas.1} parent=59 // pred_fallthru
          _
        %449 = sfence
        %p450 = pneg %p48
        %p451 = pneg %p45
        %p452 = scmp.lt.s32.totalorder %s32, 1
        %s453 = scalar_select %p452, %s32, 1
        %s454 = smul.addr %s453, 32
        %s455 = smul.addr %s454, 8
        %s456 = scalar_lea.vmem %s1, %s455
        %p457 = pneg %p74
        %p458 = pneg %p71
        %p459 = scmp.lt.s32.totalorder %s32, 1
        %s460 = scalar_select %p459, %s32, 1
        %s461 = smul.addr %s460, 8
        %s462 = smul.addr %s461, 8
        %s463 = scalar_lea.vmem %s2, %s462
        %p464 = pneg %p100
        %p465 = pneg %p97
        %p466 = scmp.lt.s32.totalorder %s32, 1
        %s467 = scalar_select %p466, %s32, 1
        %s468 = smul.addr %s467, 4
        %s469 = smul.addr %s468, 4
        %s470 = scalar_lea.vmem %s3, %s469
        %p471 = pneg %p126
        %p472 = pneg %p123
        %p473 = scmp.lt.s32.totalorder %s32, 1
        %s474 = scalar_select %p473, %s32, 1
        %s475 = smul.addr %s474, 2
        %s476 = smul.addr %s475, 2
        %s477 = scalar_lea.vmem %s4, %s476
        %p478 = pneg %p152
        %p479 = pneg %p149
        %p480 = pneg %p173
        %p481 = pneg %p170
        %p482 = pneg %p194
        %p483 = pneg %p191
        %p484 = pneg %p215
        %p485 = pneg %p212
        %p486 = pneg %p236
        %p487 = pneg %p233
        %p488 = pneg %p257
        %p489 = pneg %p254
        %p490 = pneg %p283
        %p491 = pneg %p280
        %p492 = scmp.lt.s32.totalorder %s32, 1
        %s493 = scalar_select %p492, %s32, 1
        %s494 = smul.addr %s493, 32
        %s495 = smul.addr %s494, 8
        %s496 = scalar_lea.vmem %s10, %s495
        %p497 = pneg %p309
        %p498 = pneg %p306
        %s499 = sand.u32 %s296, 1
        %s500 = scalar_lea.sflag [#allocation4], %s499
        %s501 = sand.u32 %s296, 1
        %s502 = smul.addr %s501, 64
        %s503 = scalar_lea.vmem [#allocation6], %s502
        %p504 = pneg %p335
        %p505 = pneg %p332
        %s506 = sand.u32 %s32, 1
        %s507 = scalar_lea.sflag [#allocation8], %s506
        %s508 = sand.u32 %s322, 1
        %s509 = smul.addr %s508, 16
        %s510 = scalar_lea.vmem [#allocation7], %s509
        %p511 = pneg %p361
        %p512 = pneg %p358
        %s513 = sand.u32 %s32, 1
        %s514 = scalar_lea.sflag [#allocation8], %s513
        %s515 = sand.u32 %s348, 1
        %s516 = smul.addr %s515, 4
        %s517 = scalar_lea.vmem [#allocation9], %s516
        %p518 = scmp.lt.s32.totalorder %s32, 1
        %s519 = scalar_select %p518, %s32, 1
        %s520 = smul.addr %s519, 32
        %s521 = smul.addr %s520, 8
        %s522 = scalar_lea.vmem %s1, %s521
        %p523 = scmp.lt.s32.totalorder %s32, 1
        %s524 = scalar_select %p523, %s32, 1
        %s525 = smul.addr %s524, 8
        %s526 = smul.addr %s525, 8
        %s527 = scalar_lea.vmem %s2, %s526
        %p528 = scmp.lt.s32.totalorder %s32, 1
        %s529 = scalar_select %p528, %s32, 1
        %s530 = smul.addr %s529, 4
        %s531 = smul.addr %s530, 4
        %s532 = scalar_lea.vmem %s3, %s531
        %p533 = scmp.lt.s32.totalorder %s32, 1
        %s534 = scalar_select %p533, %s32, 1
        %s535 = smul.addr %s534, 2
        %s536 = smul.addr %s535, 2
        %s537 = scalar_lea.vmem %s4, %s536
        %p538 = scmp.lt.s32.totalorder %s32, 1
        %s539 = scalar_select %p538, %s32, 1
        %s540 = smul.addr %s539, 32
        %s541 = smul.addr %s540, 8
        %s542 = scalar_lea.vmem %s10, %s541
        %s544 = sld [smem:[#allocation3]]
        %s545 = sld [smem:[#allocation3 + $0x1]]
        %s546 = sld [smem:[#allocation3 + $0x2]]
        %s547 = sld [smem:[#allocation3 + $0x3]]
        %s548 = sld [smem:[#allocation3 + $0x4]]
        %v549 = vld [vmem:[%s522] sm:$0xff]
        %v550 = vld [vmem:[%s522 + $0x8] sm:$0xff]
        %v551 = vld [vmem:[%s522 + $0x10] sm:$0xff]
        %v552 = vld [vmem:[%s522 + $0x18] sm:$0xff]
        %v553 = vld [vmem:[%s522 + $0x20] sm:$0xff]
        %v554 = vld [vmem:[%s522 + $0x28] sm:$0xff]
        %v555 = vld [vmem:[%s522 + $0x30] sm:$0xff]
        %v556 = vld [vmem:[%s522 + $0x38] sm:$0xff]
        %v557 = vld [vmem:[%s522 + $0x40] sm:$0xff]
        %v558 = vld [vmem:[%s522 + $0x48] sm:$0xff]
        %v559 = vld [vmem:[%s522 + $0x50] sm:$0xff]
        %v560 = vld [vmem:[%s522 + $0x58] sm:$0xff]
        %v561 = vld [vmem:[%s522 + $0x60] sm:$0xff]
        %v562 = vld [vmem:[%s522 + $0x68] sm:$0xff]
        %v563 = vld [vmem:[%s522 + $0x70] sm:$0xff]
        %v564 = vld [vmem:[%s522 + $0x78] sm:$0xff]
        %v565 = vld [vmem:[%s522 + $0x80] sm:$0xff]
        %v566 = vld [vmem:[%s522 + $0x88] sm:$0xff]
        %v567 = vld [vmem:[%s522 + $0x90] sm:$0xff]
        %v568 = vld [vmem:[%s522 + $0x98] sm:$0xff]
        %v569 = vld [vmem:[%s522 + $0xa0] sm:$0xff]
        %v570 = vld [vmem:[%s522 + $0xa8] sm:$0xff]
        %v571 = vld [vmem:[%s522 + $0xb0] sm:$0xff]
        %v572 = vld [vmem:[%s522 + $0xb8] sm:$0xff]
        %v573 = vld [vmem:[%s522 + $0xc0] sm:$0xff]
        %v574 = vld [vmem:[%s522 + $0xc8] sm:$0xff]
        %v575 = vld [vmem:[%s522 + $0xd0] sm:$0xff]
        %v576 = vld [vmem:[%s522 + $0xd8] sm:$0xff]
        %v577 = vld [vmem:[%s522 + $0xe0] sm:$0xff]
        %v578 = vld [vmem:[%s522 + $0xe8] sm:$0xff]
        %v579 = vld [vmem:[%s522 + $0xf0] sm:$0xff]
        %v580 = vld [vmem:[%s522 + $0xf8] sm:$0xff]
        %v581 = vld [vmem:[%s527] sm:$0xff]
        %v582 = vld [vmem:[%s527 + $0x8] sm:$0xff]
        %v583 = vld [vmem:[%s527 + $0x10] sm:$0xff]
        %v584 = vld [vmem:[%s527 + $0x18] sm:$0xff]
        %v585 = vld [vmem:[%s527 + $0x20] sm:$0xff]
        %v586 = vld [vmem:[%s527 + $0x28] sm:$0xff]
        %v587 = vld [vmem:[%s527 + $0x30] sm:$0xff]
        %v588 = vld [vmem:[%s527 + $0x38] sm:$0xff]
        %v589 = vld [vmem:[%s532] sm:$0xf]
        %v590 = vld [vmem:[%s532 + $0x4] sm:$0xf]
        %v591 = vld [vmem:[%s532 + $0x8] sm:$0xf]
        %v592 = vld [vmem:[%s532 + $0xc] sm:$0xf]
        %v593 = vld [vmem:[%s537] sm:$0x3]
        %v594 = vld [vmem:[%s537 + $0x2] sm:$0x3]
        %v595 = vstv %s544
        %v596 = vmul.f32 %v595, %v589
        %v597 = vmul.f32 %v595, %v590
        %v598 = vmul.f32 %v595, %v591
        %v599 = vmul.f32 %v595, %v592
        %v600 = vld [vmem:[%s5] sm:$0xf]
        %v601 = vld [vmem:[%s5 + $0x4] sm:$0xf]
        %604 = vst [vmem:[#allocation1] ss:$4 sm:$0xff] %v593
        %s605 = scalar_lea.vmem [#allocation1], 1
        %606 = vst [vmem:[%s605] ss:$4 sm:$0xff] %v594
        %v607 = vld.sshfl [vmem:[#allocation1] sm:$0xff pattern:$0x73625140]
        %v609 = vpack.c.bf16 %v607, %v607
        %v612 = vunpack.c.l.b16 %v600
        %v613 = vunpack.c.l.b16 %v601
        %v614 = vpack.c.b16 %v613, %v612
        %vm615 = vcmask 31744
        %v617 = vsel %vm615, %v614, 0
        %vm619 = vcmask 1041408
        %v621 = vsel %vm619, %v609, 0
        %623 = vmatpush.bf16.msra.mxu0 0
        %624 = vmatpush.bf16.msra.mxu0 0
        %625 = vmatpush.bf16.msra.mxu0 0
        %626 = vmatpush.bf16.msra.mxu0 0
        %627 = vmatpush.bf16.msra.mxu0 0
        %628 = vmatpush.bf16.msra.mxu0 0
        %629 = vmatpush.bf16.msra.mxu0 0
        %630 = vmatpush.bf16.msra.mxu0 %v621
        %631 = vmatmul.bf16.gmra.mxu0 %v617
        %v632 = vpop.f32.mrf.mxu0
        %v633 = vadd.f32 0.0, %v632
        %v634 = vpop.f32.mrf.mxu0
        %v635 = vadd.f32 0.0, %v634
        %636 = vdwg.mxu0
        %v639 = vrot.slane %v633, 4
        %v640 = vrot.slane %v635, 4
        %v643 = vstv %s545
        %v644 = vmul.f32 %v643, %v633
        %v645 = vmul.f32 %v643, %v639
        %v646 = vmul.f32 %v643, %v635
        %v647 = vmul.f32 %v643, %v640
        %v648 = vadd.f32 %v596, %v644
        %v649 = vadd.f32 %v597, %v645
        %v650 = vadd.f32 %v598, %v646
        %v651 = vadd.f32 %v599, %v647
        %vm652 = vcmask 64512
        %653 = vst.msk [vmem:[#allocation2] sm:$0xff] %vm652, 0.0
        %654 = vst.msk [vmem:[#allocation2 + $0x8] sm:$0xff] %vm652, 0.0
        %vm655 = vcmask 58368
        %656 = vst.msk [vmem:[#allocation2 + $0x10] sm:$0x3] %vm655, 0.0
        %657 = vst.msk [vmem:[#allocation2 + $0x18] sm:$0xff] %vm652, 0.0
        %658 = vst.msk [vmem:[#allocation2 + $0x20] sm:$0xff] %vm652, 0.0
        %659 = vst.msk [vmem:[#allocation2 + $0x28] sm:$0x3] %vm655, 0.0
        %660 = vst.msk [vmem:[#allocation2 + $0x30] sm:$0xff] %vm652, 0.0
        %661 = vst.msk [vmem:[#allocation2 + $0x38] sm:$0xff] %vm652, 0.0
        %662 = vst.msk [vmem:[#allocation2 + $0x40] sm:$0x3] %vm655, 0.0
        %663 = vst.msk [vmem:[#allocation2 + $0x48] sm:$0xff] %vm652, 0.0
        %664 = vst.msk [vmem:[#allocation2 + $0x50] sm:$0xff] %vm652, 0.0
        %665 = vst.msk [vmem:[#allocation2 + $0x58] sm:$0x3] %vm655, 0.0
        %666 = vst.msk [vmem:[#allocation2 + $0x60] sm:$0xff] %vm652, 0.0
        %667 = vst.msk [vmem:[#allocation2 + $0x68] sm:$0xff] %vm652, 0.0
        %668 = vst.msk [vmem:[#allocation2 + $0x70] sm:$0x3] %vm655, 0.0
        %669 = vst.msk [vmem:[#allocation2 + $0x78] sm:$0xff] %vm652, 0.0
        %670 = vst.msk [vmem:[#allocation2 + $0x80] sm:$0xff] %vm652, 0.0
        %671 = vst.msk [vmem:[#allocation2 + $0x88] sm:$0x3] %vm655, 0.0
        %672 = vst.msk [vmem:[#allocation2 + $0x90] sm:$0xff] %vm652, 0.0
        %673 = vst.msk [vmem:[#allocation2 + $0x98] sm:$0xff] %vm652, 0.0
        %674 = vst.msk [vmem:[#allocation2 + $0xa0] sm:$0x3] %vm655, 0.0
        %675 = vst.msk [vmem:[#allocation2 + $0xa8] sm:$0xff] %vm652, 0.0
        %676 = vst.msk [vmem:[#allocation2 + $0xb0] sm:$0xff] %vm652, 0.0
        %677 = vst.msk [vmem:[#allocation2 + $0xb8] sm:$0x3] %vm655, 0.0
        %678 = vst.msk [vmem:[#allocation2 + $0xc0] sm:$0xff] %vm652, 0.0
        %679 = vst.msk [vmem:[#allocation2 + $0xc8] sm:$0xff] %vm652, 0.0
        %680 = vst.msk [vmem:[#allocation2 + $0xd0] sm:$0x3] %vm655, 0.0
        %681 = vst.msk [vmem:[#allocation2 + $0xd8] sm:$0xff] %vm652, 0.0
        %682 = vst.msk [vmem:[#allocation2 + $0xe0] sm:$0xff] %vm652, 0.0
        %683 = vst.msk [vmem:[#allocation2 + $0xe8] sm:$0x3] %vm655, 0.0
        %684 = vst.msk [vmem:[#allocation2 + $0xf0] sm:$0xff] %vm652, 0.0
        %685 = vst.msk [vmem:[#allocation2 + $0xf8] sm:$0xff] %vm652, 0.0
        %686 = vst.msk [vmem:[#allocation2 + $0x100] sm:$0x3] %vm655, 0.0
        %687 = vst.msk [vmem:[#allocation2 + $0x108] sm:$0xff] %vm652, 0.0
        %688 = vst.msk [vmem:[#allocation2 + $0x110] sm:$0xff] %vm652, 0.0
        %689 = vst.msk [vmem:[#allocation2 + $0x118] sm:$0x3] %vm655, 0.0
        %690 = vst.msk [vmem:[#allocation2 + $0x120] sm:$0xff] %vm652, 0.0
        %691 = vst.msk [vmem:[#allocation2 + $0x128] sm:$0xff] %vm652, 0.0
        %692 = vst.msk [vmem:[#allocation2 + $0x130] sm:$0x3] %vm655, 0.0
        %693 = vst.msk [vmem:[#allocation2 + $0x138] sm:$0xff] %vm652, 0.0
        %694 = vst.msk [vmem:[#allocation2 + $0x140] sm:$0xff] %vm652, 0.0
        %695 = vst.msk [vmem:[#allocation2 + $0x148] sm:$0x3] %vm655, 0.0
        %696 = vst.msk [vmem:[#allocation2 + $0x150] sm:$0xff] %vm652, 0.0
        %697 = vst.msk [vmem:[#allocation2 + $0x158] sm:$0xff] %vm652, 0.0
        %698 = vst.msk [vmem:[#allocation2 + $0x160] sm:$0x3] %vm655, 0.0
        %699 = vst.msk [vmem:[#allocation2 + $0x168] sm:$0xff] %vm652, 0.0
        %700 = vst.msk [vmem:[#allocation2 + $0x170] sm:$0xff] %vm652, 0.0
        %701 = vst.msk [vmem:[#allocation2 + $0x178] sm:$0x3] %vm655, 0.0
        %702 = vst.msk [vmem:[#allocation2 + $0x180] sm:$0xff] %vm652, 0.0
        %703 = vst.msk [vmem:[#allocation2 + $0x188] sm:$0xff] %vm652, 0.0
        %704 = vst.msk [vmem:[#allocation2 + $0x190] sm:$0x3] %vm655, 0.0
        %705 = vst.msk [vmem:[#allocation2 + $0x198] sm:$0xff] %vm652, 0.0
        %706 = vst.msk [vmem:[#allocation2 + $0x1a0] sm:$0xff] %vm652, 0.0
        %707 = vst.msk [vmem:[#allocation2 + $0x1a8] sm:$0x3] %vm655, 0.0
        %s708 = scalar_lea.vmem [#allocation2], 24
        %vm709 = vcmask 60416
        %710 = vst.msk [vmem:[%s708 + $0x1] sm:$0xf] %vm709, %v648
        %711 = vst.msk [vmem:[%s708 + $0x19] sm:$0xf] %vm709, %v649
        %712 = vst.msk [vmem:[%s708 + $0x31] sm:$0xf] %vm709, %v650
        %713 = vst.msk [vmem:[%s708 + $0x49] sm:$0xf] %vm709, %v651
        %v714 = vld [vmem:[#allocation2] sm:$0xf]
        %v715 = vld [vmem:[#allocation2 + $0x18] sm:$0xf]
        %v716 = vld [vmem:[#allocation2 + $0x30] sm:$0xf]
        %v717 = vld [vmem:[#allocation2 + $0x48] sm:$0xf]
        %v718 = vld [vmem:[#allocation2 + $0x1] sm:$0xf]
        %v719 = vld [vmem:[#allocation2 + $0x19] sm:$0xf]
        %v720 = vld [vmem:[#allocation2 + $0x31] sm:$0xf]
        %v721 = vld [vmem:[#allocation2 + $0x49] sm:$0xf]
        %v722 = vld [vmem:[#allocation2 + $0x2] sm:$0xf]
        %v723 = vld [vmem:[#allocation2 + $0x1a] sm:$0xf]
        %v724 = vld [vmem:[#allocation2 + $0x32] sm:$0xf]
        %v725 = vld [vmem:[#allocation2 + $0x4a] sm:$0xf]
        %v726 = vld [vmem:[%s708] sm:$0xf]
        %v727 = vld [vmem:[%s708 + $0x18] sm:$0xf]
        %v728 = vld [vmem:[%s708 + $0x30] sm:$0xf]
        %v729 = vld [vmem:[%s708 + $0x48] sm:$0xf]
        %v730 = vld [vmem:[%s708 + $0x1] sm:$0xf]
        %v731 = vld [vmem:[%s708 + $0x19] sm:$0xf]
        %v732 = vld [vmem:[%s708 + $0x31] sm:$0xf]
        %v733 = vld [vmem:[%s708 + $0x49] sm:$0xf]
        %v734 = vld [vmem:[%s708 + $0x2] sm:$0xf]
        %v735 = vld [vmem:[%s708 + $0x1a] sm:$0xf]
        %v736 = vld [vmem:[%s708 + $0x32] sm:$0xf]
        %v737 = vld [vmem:[%s708 + $0x4a] sm:$0xf]
        %s738 = scalar_lea.vmem [#allocation2], 48
        %v739 = vld [vmem:[%s738] sm:$0xf]
        %v740 = vld [vmem:[%s738 + $0x18] sm:$0xf]
        %v741 = vld [vmem:[%s738 + $0x30] sm:$0xf]
        %v742 = vld [vmem:[%s738 + $0x48] sm:$0xf]
        %v743 = vld [vmem:[%s738 + $0x1] sm:$0xf]
        %v744 = vld [vmem:[%s738 + $0x19] sm:$0xf]
        %v745 = vld [vmem:[%s738 + $0x31] sm:$0xf]
        %v746 = vld [vmem:[%s738 + $0x49] sm:$0xf]
        %v747 = vld [vmem:[%s738 + $0x2] sm:$0xf]
        %v748 = vld [vmem:[%s738 + $0x1a] sm:$0xf]
        %v749 = vld [vmem:[%s738 + $0x32] sm:$0xf]
        %v750 = vld [vmem:[%s738 + $0x4a] sm:$0xf]
        %755 = vst [vmem:[#allocation1] ss:$2 sm:$0xff] %v714
        %s756 = scalar_lea.vmem [#allocation1], 1
        %757 = vst [vmem:[%s756] ss:$2 sm:$0xff] %v715
        %s758 = scalar_lea.vmem [#allocation1], 16
        %759 = vst [vmem:[%s758] ss:$2 sm:$0xff] %v716
        %s760 = scalar_lea.vmem [#allocation1], 17
        %761 = vst [vmem:[%s760] ss:$2 sm:$0xff] %v717
        %v762 = vld.sshfl [vmem:[#allocation1] sm:$0xff pattern:$0x75316420]
        %v763 = vld.sshfl [vmem:[#allocation1 + $0x10] sm:$0xff pattern:$0x75316420]
        %770 = vst [vmem:[#allocation1] ss:$2 sm:$0xff] %v718
        %s771 = scalar_lea.vmem [#allocation1], 1
        %772 = vst [vmem:[%s771] ss:$2 sm:$0xff] %v719
        %s773 = scalar_lea.vmem [#allocation1], 16
        %774 = vst [vmem:[%s773] ss:$2 sm:$0xff] %v720
        %s775 = scalar_lea.vmem [#allocation1], 17
        %776 = vst [vmem:[%s775] ss:$2 sm:$0xff] %v721
        %v777 = vld.sshfl [vmem:[#allocation1] sm:$0xff pattern:$0x75316420]
        %v778 = vld.sshfl [vmem:[#allocation1 + $0x10] sm:$0xff pattern:$0x75316420]
        %779 = vrot.lane.b32.xlu0 %v777, 8
        %v780 = vpop.permute.xlu0 %779
        %781 = vrot.lane.b32.xlu0 %v778, 8
        %v782 = vpop.permute.xlu0 %781
        %789 = vst [vmem:[#allocation1] ss:$2 sm:$0xff] %v722
        %s790 = scalar_lea.vmem [#allocation1], 1
        %791 = vst [vmem:[%s790] ss:$2 sm:$0xff] %v723
        %s792 = scalar_lea.vmem [#allocation1], 16
        %793 = vst [vmem:[%s792] ss:$2 sm:$0xff] %v724
        %s794 = scalar_lea.vmem [#allocation1], 17
        %795 = vst [vmem:[%s794] ss:$2 sm:$0xff] %v725
        %v796 = vld.sshfl [vmem:[#allocation1] sm:$0xff pattern:$0x75316420]
        %v797 = vld.sshfl [vmem:[#allocation1 + $0x10] sm:$0xff pattern:$0x75316420]
        %798 = vrot.lane.b32.xlu0 %v796, 16
        %v799 = vpop.permute.xlu0 %798
        %800 = vrot.lane.b32.xlu0 %v797, 16
        %v801 = vpop.permute.xlu0 %800
        %808 = vst [vmem:[#allocation1] ss:$2 sm:$0xff] %v726
        %s809 = scalar_lea.vmem [#allocation1], 1
        %810 = vst [vmem:[%s809] ss:$2 sm:$0xff] %v727
        %s811 = scalar_lea.vmem [#allocation1], 16
        %812 = vst [vmem:[%s811] ss:$2 sm:$0xff] %v728
        %s813 = scalar_lea.vmem [#allocation1], 17
        %814 = vst [vmem:[%s813] ss:$2 sm:$0xff] %v729
        %v815 = vld.sshfl [vmem:[#allocation1] sm:$0xff pattern:$0x75316420]
        %v816 = vld.sshfl [vmem:[#allocation1 + $0x10] sm:$0xff pattern:$0x75316420]
        %817 = vrot.lane.b32.xlu0 %v815, 24
        %v818 = vpop.permute.xlu0 %817
        %819 = vrot.lane.b32.xlu0 %v816, 24
        %v820 = vpop.permute.xlu0 %819
        %827 = vst [vmem:[#allocation1] ss:$2 sm:$0xff] %v730
        %s828 = scalar_lea.vmem [#allocation1], 1
        %829 = vst [vmem:[%s828] ss:$2 sm:$0xff] %v731
        %s830 = scalar_lea.vmem [#allocation1], 16
        %831 = vst [vmem:[%s830] ss:$2 sm:$0xff] %v732
        %s832 = scalar_lea.vmem [#allocation1], 17
        %833 = vst [vmem:[%s832] ss:$2 sm:$0xff] %v733
        %v834 = vld.sshfl [vmem:[#allocation1] sm:$0xff pattern:$0x75316420]
        %v835 = vld.sshfl [vmem:[#allocation1 + $0x10] sm:$0xff pattern:$0x75316420]
        %836 = vrot.lane.b32.xlu0 %v834, 32
        %v837 = vpop.permute.xlu0 %836
        %838 = vrot.lane.b32.xlu0 %v835, 32
        %v839 = vpop.permute.xlu0 %838
        %846 = vst [vmem:[#allocation1] ss:$2 sm:$0xff] %v734
        %s847 = scalar_lea.vmem [#allocation1], 1
        %848 = vst [vmem:[%s847] ss:$2 sm:$0xff] %v735
        %s849 = scalar_lea.vmem [#allocation1], 16
        %850 = vst [vmem:[%s849] ss:$2 sm:$0xff] %v736
        %s851 = scalar_lea.vmem [#allocation1], 17
        %852 = vst [vmem:[%s851] ss:$2 sm:$0xff] %v737
        %v853 = vld.sshfl [vmem:[#allocation1] sm:$0xff pattern:$0x75316420]
        %v854 = vld.sshfl [vmem:[#allocation1 + $0x10] sm:$0xff pattern:$0x75316420]
        %855 = vrot.lane.b32.xlu0 %v853, 40
        %v856 = vpop.permute.xlu0 %855
        %857 = vrot.lane.b32.xlu0 %v854, 40
        %v858 = vpop.permute.xlu0 %857
        %865 = vst [vmem:[#allocation1] ss:$2 sm:$0xff] %v739
        %s866 = scalar_lea.vmem [#allocation1], 1
        %867 = vst [vmem:[%s866] ss:$2 sm:$0xff] %v740
        %s868 = scalar_lea.vmem [#allocation1], 16
        %869 = vst [vmem:[%s868] ss:$2 sm:$0xff] %v741
        %s870 = scalar_lea.vmem [#allocation1], 17
        %871 = vst [vmem:[%s870] ss:$2 sm:$0xff] %v742
        %v872 = vld.sshfl [vmem:[#allocation1] sm:$0xff pattern:$0x75316420]
        %v873 = vld.sshfl [vmem:[#allocation1 + $0x10] sm:$0xff pattern:$0x75316420]
        %874 = vrot.lane.b32.xlu0 %v872, 48
        %v875 = vpop.permute.xlu0 %874
        %876 = vrot.lane.b32.xlu0 %v873, 48
        %v877 = vpop.permute.xlu0 %876
        %884 = vst [vmem:[#allocation1] ss:$2 sm:$0xff] %v743
        %s885 = scalar_lea.vmem [#allocation1], 1
        %886 = vst [vmem:[%s885] ss:$2 sm:$0xff] %v744
        %s887 = scalar_lea.vmem [#allocation1], 16
        %888 = vst [vmem:[%s887] ss:$2 sm:$0xff] %v745
        %s889 = scalar_lea.vmem [#allocation1], 17
        %890 = vst [vmem:[%s889] ss:$2 sm:$0xff] %v746
        %v891 = vld.sshfl [vmem:[#allocation1] sm:$0xff pattern:$0x75316420]
        %v892 = vld.sshfl [vmem:[#allocation1 + $0x10] sm:$0xff pattern:$0x75316420]
        %893 = vrot.lane.b32.xlu0 %v891, 56
        %v894 = vpop.permute.xlu0 %893
        %895 = vrot.lane.b32.xlu0 %v892, 56
        %v896 = vpop.permute.xlu0 %895
        %903 = vst [vmem:[#allocation1] ss:$2 sm:$0xff] %v747
        %s904 = scalar_lea.vmem [#allocation1], 1
        %905 = vst [vmem:[%s904] ss:$2 sm:$0xff] %v748
        %s906 = scalar_lea.vmem [#allocation1], 16
        %907 = vst [vmem:[%s906] ss:$2 sm:$0xff] %v749
        %s908 = scalar_lea.vmem [#allocation1], 17
        %909 = vst [vmem:[%s908] ss:$2 sm:$0xff] %v750
        %v910 = vld.sshfl [vmem:[#allocation1] sm:$0xff pattern:$0x75316420]
        %v911 = vld.sshfl [vmem:[#allocation1 + $0x10] sm:$0xff pattern:$0x75316420]
        %912 = vrot.lane.b32.xlu0 %v910, 64
        %v913 = vpop.permute.xlu0 %912
        %914 = vrot.lane.b32.xlu0 %v911, 64
        %v915 = vpop.permute.xlu0 %914
        %v918 = vsel %vm652, %v762, %v780
        %v919 = vsel %vm652, %v763, %v782
        %vm920 = vcmask 130048
        %v921 = vsel %vm920, %v918, %v799
        %v922 = vsel %vm920, %v919, %v801
        %vm923 = vcmask 195584
        %v924 = vsel %vm923, %v921, %v818
        %v925 = vsel %vm923, %v922, %v820
        %vm926 = vcmask 261120
        %v927 = vsel %vm926, %v924, %v837
        %v928 = vsel %vm926, %v925, %v839
        %vm929 = vcmask 326656
        %v930 = vsel %vm929, %v927, %v856
        %v931 = vsel %vm929, %v928, %v858
        %vm932 = vcmask 392192
        %v933 = vsel %vm932, %v930, %v875
        %v934 = vsel %vm932, %v931, %v877
        %vm935 = vcmask 457728
        %v936 = vsel %vm935, %v933, %v894
        %v937 = vsel %vm935, %v934, %v896
        %vm938 = vcmask 523264
        %v939 = vsel %vm938, %v936, %v913
        %v940 = vsel %vm938, %v937, %v915
        %v941 = vpack.c.bf16 %v940, %v939
        %v942 = vld [vmem:[%s8] sm:$0xf]
        %v943 = vld [vmem:[%s8 + $0x4] sm:$0xf]
        %v944 = vld [vmem:[%s8 + $0x8] sm:$0xf]
        %v945 = vld [vmem:[%s8 + $0xc] sm:$0xf]
        %v946 = vld [vmem:[%s8 + $0x10] sm:$0xf]
        %v947 = vld [vmem:[%s8 + $0x14] sm:$0xf]
        %v948 = vld [vmem:[%s8 + $0x18] sm:$0xf]
        %v949 = vld [vmem:[%s8 + $0x1c] sm:$0xf]
        %v950 = vld [vmem:[%s8 + $0x20] sm:$0xf]
        %v951 = vld [vmem:[%s9] sm:$0x1]
        %v953 = vperm.slane %v951, 0
        %v964 = vunpack.c.l.b16 %v942
        %v965 = vunpack.c.l.b16 %v943
        %v966 = vunpack.c.l.b16 %v944
        %v967 = vunpack.c.l.b16 %v945
        %v968 = vunpack.c.l.b16 %v946
        %v969 = vunpack.c.l.b16 %v947
        %v970 = vunpack.c.l.b16 %v948
        %v971 = vunpack.c.l.b16 %v949
        %v972 = vunpack.c.l.b16 %v950
        %v973 = vpack.c.b16 %v965, %v964
        %v974 = vpack.c.b16 %v967, %v966
        %v975 = vpack.c.b16 %v969, %v968
        %v976 = vpack.c.b16 %v971, %v970
        %v977 = vpack.c.b16 %v972, %v972
        %vm982 = vcmask 588800
        %v984 = vsel %vm982, %v941, 0
        %vm986 = vcmask 1043456
        %v988 = vsel %vm986, %v977, 0
        %990 = vmatpush.bf16.msra.mxu0 0
        %991 = vmatpush.bf16.msra.mxu0 0
        %992 = vmatpush.bf16.msra.mxu0 0
        %993 = vmatpush.bf16.msra.mxu0 %v988
        %994 = vmatpush.bf16.msra.mxu0 %v976
        %995 = vmatpush.bf16.msra.mxu0 %v975
        %996 = vmatpush.bf16.msra.mxu0 %v974
        %997 = vmatpush.bf16.msra.mxu0 %v973
        %998 = vmatmul.bf16.gmra.mxu0 %v984
        %v999 = vpop.f32.mrf.mxu0
        %v1000 = vadd.f32 %v953, %v999
        %v1001 = vpop.f32.mrf.mxu0
        %v1002 = vadd.f32 %v953, %v1001
        %1003 = vdwg.mxu0
        %v1004 = vmax.f32 %v1000, 0.0
        %v1005 = vmax.f32 %v1002, 0.0
        %v1008 = vrot.slane %v1004, 4
        %v1009 = vrot.slane %v1005, 4
        %v1012 = vmul.f32 %v595, %v581
        %v1013 = vmul.f32 %v595, %v582
        %v1014 = vmul.f32 %v595, %v583
        %v1015 = vmul.f32 %v595, %v584
        %v1016 = vmul.f32 %v595, %v585
        %v1017 = vmul.f32 %v595, %v586
        %v1018 = vmul.f32 %v595, %v587
        %v1019 = vmul.f32 %v595, %v588
        %v1020 = vld [vmem:[%s6] sm:$0xf]
        %v1021 = vld [vmem:[%s6 + $0x4] sm:$0xf]
        %v1022 = vld [vmem:[%s6 + $0x8] sm:$0xf]
        %v1023 = vld [vmem:[%s6 + $0xc] sm:$0xf]
        %v1024 = vld [vmem:[%s6 + $0x10] sm:$0xf]
        %v1025 = vld [vmem:[%s6 + $0x14] sm:$0xf]
        %v1026 = vld [vmem:[%s6 + $0x18] sm:$0xf]
        %v1027 = vld [vmem:[%s6 + $0x1c] sm:$0xf]
        %v1028 = vpack.c.bf16 %v1005, %v1004
        %v1037 = vunpack.c.l.b16 %v1020
        %v1038 = vunpack.c.l.b16 %v1021
        %v1039 = vunpack.c.l.b16 %v1022
        %v1040 = vunpack.c.l.b16 %v1023
        %v1041 = vunpack.c.l.b16 %v1024
        %v1042 = vunpack.c.l.b16 %v1025
        %v1043 = vunpack.c.l.b16 %v1026
        %v1044 = vunpack.c.l.b16 %v1027
        %v1045 = vpack.c.b16 %v1038, %v1037
        %v1046 = vpack.c.b16 %v1040, %v1039
        %v1047 = vpack.c.b16 %v1042, %v1041
        %v1048 = vpack.c.b16 %v1044, %v1043
        %v1050 = vsel %vm920, %v1045, 0
        %v1053 = vsel %vm920, %v1046, 0
        %v1056 = vsel %vm920, %v1047, 0
        %v1059 = vsel %vm920, %v1048, 0
        %1061 = vmatpush.bf16.msra.mxu0 0
        %1062 = vmatpush.bf16.msra.mxu0 0
        %1063 = vmatpush.bf16.msra.mxu0 0
        %1064 = vmatpush.bf16.msra.mxu0 0
        %1065 = vmatpush.bf16.msra.mxu0 0
        %1066 = vmatpush.bf16.msra.mxu0 0
        %1067 = vmatpush.bf16.msra.mxu0 0
        %1068 = vmatpush.bf16.msra.mxu0 %v1028
        %1069 = vmatmul.bf16.gmra.mxu0 %v1050
        %v1070 = vpop.f32.mrf.mxu0
        %v1071 = vadd.f32 0.0, %v1070
        %v1072 = vpop.f32.mrf.mxu0
        %v1073 = vadd.f32 0.0, %v1072
        %1074 = vmatmul.bf16.gmra.mxu0 %v1053
        %v1075 = vpop.f32.mrf.mxu0
        %v1076 = vadd.f32 0.0, %v1075
        %v1077 = vpop.f32.mrf.mxu0
        %v1078 = vadd.f32 0.0, %v1077
        %1079 = vmatmul.bf16.gmra.mxu0 %v1056
        %v1080 = vpop.f32.mrf.mxu0
        %v1081 = vadd.f32 0.0, %v1080
        %v1082 = vpop.f32.mrf.mxu0
        %v1083 = vadd.f32 0.0, %v1082
        %1084 = vmatmul.bf16.gmra.mxu0 %v1059
        %v1085 = vpop.f32.mrf.mxu0
        %v1086 = vadd.f32 0.0, %v1085
        %v1087 = vpop.f32.mrf.mxu0
        %v1088 = vadd.f32 0.0, %v1087
        %1089 = vdwg.mxu0
        %v1090 = vmul.f32 %v643, %v1071
        %v1091 = vmul.f32 %v643, %v1073
        %v1092 = vmul.f32 %v643, %v1076
        %v1093 = vmul.f32 %v643, %v1078
        %v1094 = vmul.f32 %v643, %v1081
        %v1095 = vmul.f32 %v643, %v1083
        %v1096 = vmul.f32 %v643, %v1086
        %v1097 = vmul.f32 %v643, %v1088
        %v1098 = vadd.f32 %v1012, %v1090
        %v1099 = vadd.f32 %v1013, %v1091
        %v1100 = vadd.f32 %v1014, %v1092
        %v1101 = vadd.f32 %v1015, %v1093
        %v1102 = vadd.f32 %v1016, %v1094
        %v1103 = vadd.f32 %v1017, %v1095
        %v1104 = vadd.f32 %v1018, %v1096
        %v1105 = vadd.f32 %v1019, %v1097
        %1106 = vst.msk [vmem:[#allocation2] sm:$0xff] %vm652, 0.0
        %1107 = vst.msk [vmem:[#allocation2 + $0x8] sm:$0xff] %vm652, 0.0
        %1108 = vst.msk [vmem:[#allocation2 + $0x10] sm:$0x3] %vm655, 0.0
        %1109 = vst.msk [vmem:[#allocation2 + $0x18] sm:$0xff] %vm652, 0.0
        %1110 = vst.msk [vmem:[#allocation2 + $0x20] sm:$0xff] %vm652, 0.0
        %1111 = vst.msk [vmem:[#allocation2 + $0x28] sm:$0x3] %vm655, 0.0
        %1112 = vst.msk [vmem:[#allocation2 + $0x30] sm:$0xff] %vm652, 0.0
        %1113 = vst.msk [vmem:[#allocation2 + $0x38] sm:$0xff] %vm652, 0.0
        %1114 = vst.msk [vmem:[#allocation2 + $0x40] sm:$0x3] %vm655, 0.0
        %1115 = vst.msk [vmem:[#allocation2 + $0x48] sm:$0xff] %vm652, 0.0
        %1116 = vst.msk [vmem:[#allocation2 + $0x50] sm:$0xff] %vm652, 0.0
        %1117 = vst.msk [vmem:[#allocation2 + $0x58] sm:$0x3] %vm655, 0.0
        %1118 = vst.msk [vmem:[#allocation2 + $0x60] sm:$0xff] %vm652, 0.0
        %1119 = vst.msk [vmem:[#allocation2 + $0x68] sm:$0xff] %vm652, 0.0
        %1120 = vst.msk [vmem:[#allocation2 + $0x70] sm:$0x3] %vm655, 0.0
        %1121 = vst.msk [vmem:[#allocation2 + $0x78] sm:$0xff] %vm652, 0.0
        %1122 = vst.msk [vmem:[#allocation2 + $0x80] sm:$0xff] %vm652, 0.0
        %1123 = vst.msk [vmem:[#allocation2 + $0x88] sm:$0x3] %vm655, 0.0
        %1124 = vst.msk [vmem:[#allocation2 + $0x90] sm:$0xff] %vm652, 0.0
        %1125 = vst.msk [vmem:[#allocation2 + $0x98] sm:$0xff] %vm652, 0.0
        %1126 = vst.msk [vmem:[#allocation2 + $0xa0] sm:$0x3] %vm655, 0.0
        %1127 = vst.msk [vmem:[#allocation2 + $0xa8] sm:$0xff] %vm652, 0.0
        %1128 = vst.msk [vmem:[#allocation2 + $0xb0] sm:$0xff] %vm652, 0.0
        %1129 = vst.msk [vmem:[#allocation2 + $0xb8] sm:$0x3] %vm655, 0.0
        %1130 = vst.msk [vmem:[#allocation2 + $0xc0] sm:$0xff] %vm652, 0.0
        %1131 = vst.msk [vmem:[#allocation2 + $0xc8] sm:$0xff] %vm652, 0.0
        %1132 = vst.msk [vmem:[#allocation2 + $0xd0] sm:$0x3] %vm655, 0.0
        %1133 = vst.msk [vmem:[#allocation2 + $0xd8] sm:$0xff] %vm652, 0.0
        %1134 = vst.msk [vmem:[#allocation2 + $0xe0] sm:$0xff] %vm652, 0.0
        %1135 = vst.msk [vmem:[#allocation2 + $0xe8] sm:$0x3] %vm655, 0.0
        %1136 = vst.msk [vmem:[#allocation2 + $0xf0] sm:$0xff] %vm652, 0.0
        %1137 = vst.msk [vmem:[#allocation2 + $0xf8] sm:$0xff] %vm652, 0.0
        %1138 = vst.msk [vmem:[#allocation2 + $0x100] sm:$0x3] %vm655, 0.0
        %1139 = vst.msk [vmem:[#allocation2 + $0x108] sm:$0xff] %vm652, 0.0
        %1140 = vst.msk [vmem:[#allocation2 + $0x110] sm:$0xff] %vm652, 0.0
        %1141 = vst.msk [vmem:[#allocation2 + $0x118] sm:$0x3] %vm655, 0.0
        %1142 = vst.msk [vmem:[#allocation2 + $0x120] sm:$0xff] %vm652, 0.0
        %1143 = vst.msk [vmem:[#allocation2 + $0x128] sm:$0xff] %vm652, 0.0
        %1144 = vst.msk [vmem:[#allocation2 + $0x130] sm:$0x3] %vm655, 0.0
        %1145 = vst.msk [vmem:[#allocation2 + $0x138] sm:$0xff] %vm652, 0.0
        %1146 = vst.msk [vmem:[#allocation2 + $0x140] sm:$0xff] %vm652, 0.0
        %1147 = vst.msk [vmem:[#allocation2 + $0x148] sm:$0x3] %vm655, 0.0
        %1148 = vst.msk [vmem:[#allocation2 + $0x150] sm:$0xff] %vm652, 0.0
        %1149 = vst.msk [vmem:[#allocation2 + $0x158] sm:$0xff] %vm652, 0.0
        %1150 = vst.msk [vmem:[#allocation2 + $0x160] sm:$0x3] %vm655, 0.0
        %1151 = vst.msk [vmem:[#allocation2 + $0x168] sm:$0xff] %vm652, 0.0
        %1152 = vst.msk [vmem:[#allocation2 + $0x170] sm:$0xff] %vm652, 0.0
        %1153 = vst.msk [vmem:[#allocation2 + $0x178] sm:$0x3] %vm655, 0.0
        %1154 = vst.msk [vmem:[#allocation2 + $0x180] sm:$0xff] %vm652, 0.0
        %1155 = vst.msk [vmem:[#allocation2 + $0x188] sm:$0xff] %vm652, 0.0
        %1156 = vst.msk [vmem:[#allocation2 + $0x190] sm:$0x3] %vm655, 0.0
        %1157 = vst.msk [vmem:[#allocation2 + $0x198] sm:$0xff] %vm652, 0.0
        %1158 = vst.msk [vmem:[#allocation2 + $0x1a0] sm:$0xff] %vm652, 0.0
        %1159 = vst.msk [vmem:[#allocation2 + $0x1a8] sm:$0x3] %vm655, 0.0
        %1160 = vst.msk [vmem:[%s708 + $0x1] sm:$0xff] %vm652, %v1098
        %1161 = vst.msk [vmem:[%s708 + $0x19] sm:$0xff] %vm652, %v1099
        %1162 = vst.msk [vmem:[%s708 + $0x31] sm:$0xff] %vm652, %v1100
        %1163 = vst.msk [vmem:[%s708 + $0x49] sm:$0xff] %vm652, %v1101
        %1164 = vst.msk [vmem:[%s708 + $0x61] sm:$0xff] %vm652, %v1102
        %1165 = vst.msk [vmem:[%s708 + $0x79] sm:$0xff] %vm652, %v1103
        %1166 = vst.msk [vmem:[%s708 + $0x91] sm:$0xff] %vm652, %v1104
        %1167 = vst.msk [vmem:[%s708 + $0xa9] sm:$0xff] %vm652, %v1105
        %v1168 = vld [vmem:[#allocation2] sm:$0xff]
        %v1169 = vld [vmem:[#allocation2 + $0x18] sm:$0xff]
        %v1170 = vld [vmem:[#allocation2 + $0x30] sm:$0xff]
        %v1171 = vld [vmem:[#allocation2 + $0x48] sm:$0xff]
        %v1172 = vld [vmem:[#allocation2 + $0x60] sm:$0xff]
        %v1173 = vld [vmem:[#allocation2 + $0x78] sm:$0xff]
        %v1174 = vld [vmem:[#allocation2 + $0x90] sm:$0xff]
        %v1175 = vld [vmem:[#allocation2 + $0xa8] sm:$0xff]
        %v1176 = vld [vmem:[#allocation2 + $0x1] sm:$0xff]
        %v1177 = vld [vmem:[#allocation2 + $0x19] sm:$0xff]
        %v1178 = vld [vmem:[#allocation2 + $0x31] sm:$0xff]
        %v1179 = vld [vmem:[#allocation2 + $0x49] sm:$0xff]
        %v1180 = vld [vmem:[#allocation2 + $0x61] sm:$0xff]
        %v1181 = vld [vmem:[#allocation2 + $0x79] sm:$0xff]
        %v1182 = vld [vmem:[#allocation2 + $0x91] sm:$0xff]
        %v1183 = vld [vmem:[#allocation2 + $0xa9] sm:$0xff]
        %v1184 = vld [vmem:[#allocation2 + $0x2] sm:$0xff]
        %v1185 = vld [vmem:[#allocation2 + $0x1a] sm:$0xff]
        %v1186 = vld [vmem:[#allocation2 + $0x32] sm:$0xff]
        %v1187 = vld [vmem:[#allocation2 + $0x4a] sm:$0xff]
        %v1188 = vld [vmem:[#allocation2 + $0x62] sm:$0xff]
        %v1189 = vld [vmem:[#allocation2 + $0x7a] sm:$0xff]
        %v1190 = vld [vmem:[#allocation2 + $0x92] sm:$0xff]
        %v1191 = vld [vmem:[#allocation2 + $0xaa] sm:$0xff]
        %v1192 = vld [vmem:[%s708] sm:$0xff]
        %v1193 = vld [vmem:[%s708 + $0x18] sm:$0xff]
        %v1194 = vld [vmem:[%s708 + $0x30] sm:$0xff]
        %v1195 = vld [vmem:[%s708 + $0x48] sm:$0xff]
        %v1196 = vld [vmem:[%s708 + $0x60] sm:$0xff]
        %v1197 = vld [vmem:[%s708 + $0x78] sm:$0xff]
        %v1198 = vld [vmem:[%s708 + $0x90] sm:$0xff]
        %v1199 = vld [vmem:[%s708 + $0xa8] sm:$0xff]
        %v1200 = vld [vmem:[%s708 + $0x1] sm:$0xff]
        %v1201 = vld [vmem:[%s708 + $0x19] sm:$0xff]
        %v1202 = vld [vmem:[%s708 + $0x31] sm:$0xff]
        %v1203 = vld [vmem:[%s708 + $0x49] sm:$0xff]
        %v1204 = vld [vmem:[%s708 + $0x61] sm:$0xff]
        %v1205 = vld [vmem:[%s708 + $0x79] sm:$0xff]
        %v1206 = vld [vmem:[%s708 + $0x91] sm:$0xff]
        %v1207 = vld [vmem:[%s708 + $0xa9] sm:$0xff]
        %v1208 = vld [vmem:[%s708 + $0x2] sm:$0xff]
        %v1209 = vld [vmem:[%s708 + $0x1a] sm:$0xff]
        %v1210 = vld [vmem:[%s708 + $0x32] sm:$0xff]
        %v1211 = vld [vmem:[%s708 + $0x4a] sm:$0xff]
        %v1212 = vld [vmem:[%s708 + $0x62] sm:$0xff]
        %v1213 = vld [vmem:[%s708 + $0x7a] sm:$0xff]
        %v1214 = vld [vmem:[%s708 + $0x92] sm:$0xff]
        %v1215 = vld [vmem:[%s708 + $0xaa] sm:$0xff]
        %v1216 = vld [vmem:[%s738] sm:$0xff]
        %v1217 = vld [vmem:[%s738 + $0x18] sm:$0xff]
        %v1218 = vld [vmem:[%s738 + $0x30] sm:$0xff]
        %v1219 = vld [vmem:[%s738 + $0x48] sm:$0xff]
        %v1220 = vld [vmem:[%s738 + $0x60] sm:$0xff]
        %v1221 = vld [vmem:[%s738 + $0x78] sm:$0xff]
        %v1222 = vld [vmem:[%s738 + $0x90] sm:$0xff]
        %v1223 = vld [vmem:[%s738 + $0xa8] sm:$0xff]
        %v1224 = vld [vmem:[%s738 + $0x1] sm:$0xff]
        %v1225 = vld [vmem:[%s738 + $0x19] sm:$0xff]
        %v1226 = vld [vmem:[%s738 + $0x31] sm:$0xff]
        %v1227 = vld [vmem:[%s738 + $0x49] sm:$0xff]
        %v1228 = vld [vmem:[%s738 + $0x61] sm:$0xff]
        %v1229 = vld [vmem:[%s738 + $0x79] sm:$0xff]
        %v1230 = vld [vmem:[%s738 + $0x91] sm:$0xff]
        %v1231 = vld [vmem:[%s738 + $0xa9] sm:$0xff]
        %v1232 = vld [vmem:[%s738 + $0x2] sm:$0xff]
        %v1233 = vld [vmem:[%s738 + $0x1a] sm:$0xff]
        %v1234 = vld [vmem:[%s738 + $0x32] sm:$0xff]
        %v1235 = vld [vmem:[%s738 + $0x4a] sm:$0xff]
        %v1236 = vld [vmem:[%s738 + $0x62] sm:$0xff]
        %v1237 = vld [vmem:[%s738 + $0x7a] sm:$0xff]
        %v1238 = vld [vmem:[%s738 + $0x92] sm:$0xff]
        %v1239 = vld [vmem:[%s738 + $0xaa] sm:$0xff]
        %1248 = vrot.lane.b32.xlu0 %v1176, 8
        %v1249 = vpop.permute.xlu0 %1248
        %1250 = vrot.lane.b32.xlu0 %v1177, 8
        %v1251 = vpop.permute.xlu0 %1250
        %1252 = vrot.lane.b32.xlu0 %v1178, 8
        %v1253 = vpop.permute.xlu0 %1252
        %1254 = vrot.lane.b32.xlu0 %v1179, 8
        %v1255 = vpop.permute.xlu0 %1254
        %1256 = vrot.lane.b32.xlu0 %v1180, 8
        %v1257 = vpop.permute.xlu0 %1256
        %1258 = vrot.lane.b32.xlu0 %v1181, 8
        %v1259 = vpop.permute.xlu0 %1258
        %1260 = vrot.lane.b32.xlu0 %v1182, 8
        %v1261 = vpop.permute.xlu0 %1260
        %1262 = vrot.lane.b32.xlu0 %v1183, 8
        %v1263 = vpop.permute.xlu0 %1262
        %1280 = vrot.lane.b32.xlu0 %v1184, 16
        %v1281 = vpop.permute.xlu0 %1280
        %1282 = vrot.lane.b32.xlu0 %v1185, 16
        %v1283 = vpop.permute.xlu0 %1282
        %1284 = vrot.lane.b32.xlu0 %v1186, 16
        %v1285 = vpop.permute.xlu0 %1284
        %1286 = vrot.lane.b32.xlu0 %v1187, 16
        %v1287 = vpop.permute.xlu0 %1286
        %1288 = vrot.lane.b32.xlu0 %v1188, 16
        %v1289 = vpop.permute.xlu0 %1288
        %1290 = vrot.lane.b32.xlu0 %v1189, 16
        %v1291 = vpop.permute.xlu0 %1290
        %1292 = vrot.lane.b32.xlu0 %v1190, 16
        %v1293 = vpop.permute.xlu0 %1292
        %1294 = vrot.lane.b32.xlu0 %v1191, 16
        %v1295 = vpop.permute.xlu0 %1294
        %1312 = vrot.lane.b32.xlu0 %v1192, 24
        %v1313 = vpop.permute.xlu0 %1312
        %1314 = vrot.lane.b32.xlu0 %v1193, 24
        %v1315 = vpop.permute.xlu0 %1314
        %1316 = vrot.lane.b32.xlu0 %v1194, 24
        %v1317 = vpop.permute.xlu0 %1316
        %1318 = vrot.lane.b32.xlu0 %v1195, 24
        %v1319 = vpop.permute.xlu0 %1318
        %1320 = vrot.lane.b32.xlu0 %v1196, 24
        %v1321 = vpop.permute.xlu0 %1320
        %1322 = vrot.lane.b32.xlu0 %v1197, 24
        %v1323 = vpop.permute.xlu0 %1322
        %1324 = vrot.lane.b32.xlu0 %v1198, 24
        %v1325 = vpop.permute.xlu0 %1324
        %1326 = vrot.lane.b32.xlu0 %v1199, 24
        %v1327 = vpop.permute.xlu0 %1326
        %1344 = vrot.lane.b32.xlu0 %v1200, 32
        %v1345 = vpop.permute.xlu0 %1344
        %1346 = vrot.lane.b32.xlu0 %v1201, 32
        %v1347 = vpop.permute.xlu0 %1346
        %1348 = vrot.lane.b32.xlu0 %v1202, 32
        %v1349 = vpop.permute.xlu0 %1348
        %1350 = vrot.lane.b32.xlu0 %v1203, 32
        %v1351 = vpop.permute.xlu0 %1350
        %1352 = vrot.lane.b32.xlu0 %v1204, 32
        %v1353 = vpop.permute.xlu0 %1352
        %1354 = vrot.lane.b32.xlu0 %v1205, 32
        %v1355 = vpop.permute.xlu0 %1354
        %1356 = vrot.lane.b32.xlu0 %v1206, 32
        %v1357 = vpop.permute.xlu0 %1356
        %1358 = vrot.lane.b32.xlu0 %v1207, 32
        %v1359 = vpop.permute.xlu0 %1358
        %1376 = vrot.lane.b32.xlu0 %v1208, 40
        %v1377 = vpop.permute.xlu0 %1376
        %1378 = vrot.lane.b32.xlu0 %v1209, 40
        %v1379 = vpop.permute.xlu0 %1378
        %1380 = vrot.lane.b32.xlu0 %v1210, 40
        %v1381 = vpop.permute.xlu0 %1380
        %1382 = vrot.lane.b32.xlu0 %v1211, 40
        %v1383 = vpop.permute.xlu0 %1382
        %1384 = vrot.lane.b32.xlu0 %v1212, 40
        %v1385 = vpop.permute.xlu0 %1384
        %1386 = vrot.lane.b32.xlu0 %v1213, 40
        %v1387 = vpop.permute.xlu0 %1386
        %1388 = vrot.lane.b32.xlu0 %v1214, 40
        %v1389 = vpop.permute.xlu0 %1388
        %1390 = vrot.lane.b32.xlu0 %v1215, 40
        %v1391 = vpop.permute.xlu0 %1390
        %1408 = vrot.lane.b32.xlu0 %v1216, 48
        %v1409 = vpop.permute.xlu0 %1408
        %1410 = vrot.lane.b32.xlu0 %v1217, 48
        %v1411 = vpop.permute.xlu0 %1410
        %1412 = vrot.lane.b32.xlu0 %v1218, 48
        %v1413 = vpop.permute.xlu0 %1412
        %1414 = vrot.lane.b32.xlu0 %v1219, 48
        %v1415 = vpop.permute.xlu0 %1414
        %1416 = vrot.lane.b32.xlu0 %v1220, 48
        %v1417 = vpop.permute.xlu0 %1416
        %1418 = vrot.lane.b32.xlu0 %v1221, 48
        %v1419 = vpop.permute.xlu0 %1418
        %1420 = vrot.lane.b32.xlu0 %v1222, 48
        %v1421 = vpop.permute.xlu0 %1420
        %1422 = vrot.lane.b32.xlu0 %v1223, 48
        %v1423 = vpop.permute.xlu0 %1422
        %1440 = vrot.lane.b32.xlu0 %v1224, 56
        %v1441 = vpop.permute.xlu0 %1440
        %1442 = vrot.lane.b32.xlu0 %v1225, 56
        %v1443 = vpop.permute.xlu0 %1442
        %1444 = vrot.lane.b32.xlu0 %v1226, 56
        %v1445 = vpop.permute.xlu0 %1444
        %1446 = vrot.lane.b32.xlu0 %v1227, 56
        %v1447 = vpop.permute.xlu0 %1446
        %1448 = vrot.lane.b32.xlu0 %v1228, 56
        %v1449 = vpop.permute.xlu0 %1448
        %1450 = vrot.lane.b32.xlu0 %v1229, 56
        %v1451 = vpop.permute.xlu0 %1450
        %1452 = vrot.lane.b32.xlu0 %v1230, 56
        %v1453 = vpop.permute.xlu0 %1452
        %1454 = vrot.lane.b32.xlu0 %v1231, 56
        %v1455 = vpop.permute.xlu0 %1454
        %1472 = vrot.lane.b32.xlu0 %v1232, 64
        %v1473 = vpop.permute.xlu0 %1472
        %1474 = vrot.lane.b32.xlu0 %v1233, 64
        %v1475 = vpop.permute.xlu0 %1474
        %1476 = vrot.lane.b32.xlu0 %v1234, 64
        %v1477 = vpop.permute.xlu0 %1476
        %1478 = vrot.lane.b32.xlu0 %v1235, 64
        %v1479 = vpop.permute.xlu0 %1478
        %1480 = vrot.lane.b32.xlu0 %v1236, 64
        %v1481 = vpop.permute.xlu0 %1480
        %1482 = vrot.lane.b32.xlu0 %v1237, 64
        %v1483 = vpop.permute.xlu0 %1482
        %1484 = vrot.lane.b32.xlu0 %v1238, 64
        %v1485 = vpop.permute.xlu0 %1484
        %1486 = vrot.lane.b32.xlu0 %v1239, 64
        %v1487 = vpop.permute.xlu0 %1486
        %v1496 = vsel %vm652, %v1168, %v1249
        %v1497 = vsel %vm652, %v1169, %v1251
        %v1498 = vsel %vm652, %v1170, %v1253
        %v1499 = vsel %vm652, %v1171, %v1255
        %v1500 = vsel %vm652, %v1172, %v1257
        %v1501 = vsel %vm652, %v1173, %v1259
        %v1502 = vsel %vm652, %v1174, %v1261
        %v1503 = vsel %vm652, %v1175, %v1263
        %v1504 = vsel %vm920, %v1496, %v1281
        %v1505 = vsel %vm920, %v1497, %v1283
        %v1506 = vsel %vm920, %v1498, %v1285
        %v1507 = vsel %vm920, %v1499, %v1287
        %v1508 = vsel %vm920, %v1500, %v1289
        %v1509 = vsel %vm920, %v1501, %v1291
        %v1510 = vsel %vm920, %v1502, %v1293
        %v1511 = vsel %vm920, %v1503, %v1295
        %v1512 = vsel %vm923, %v1504, %v1313
        %v1513 = vsel %vm923, %v1505, %v1315
        %v1514 = vsel %vm923, %v1506, %v1317
        %v1515 = vsel %vm923, %v1507, %v1319
        %v1516 = vsel %vm923, %v1508, %v1321
        %v1517 = vsel %vm923, %v1509, %v1323
        %v1518 = vsel %vm923, %v1510, %v1325
        %v1519 = vsel %vm923, %v1511, %v1327
        %v1520 = vsel %vm926, %v1512, %v1345
        %v1521 = vsel %vm926, %v1513, %v1347
        %v1522 = vsel %vm926, %v1514, %v1349
        %v1523 = vsel %vm926, %v1515, %v1351
        %v1524 = vsel %vm926, %v1516, %v1353
        %v1525 = vsel %vm926, %v1517, %v1355
        %v1526 = vsel %vm926, %v1518, %v1357
        %v1527 = vsel %vm926, %v1519, %v1359
        %v1528 = vsel %vm929, %v1520, %v1377
        %v1529 = vsel %vm929, %v1521, %v1379
        %v1530 = vsel %vm929, %v1522, %v1381
        %v1531 = vsel %vm929, %v1523, %v1383
        %v1532 = vsel %vm929, %v1524, %v1385
        %v1533 = vsel %vm929, %v1525, %v1387
        %v1534 = vsel %vm929, %v1526, %v1389
        %v1535 = vsel %vm929, %v1527, %v1391
        %v1536 = vsel %vm932, %v1528, %v1409
        %v1537 = vsel %vm932, %v1529, %v1411
        %v1538 = vsel %vm932, %v1530, %v1413
        %v1539 = vsel %vm932, %v1531, %v1415
        %v1540 = vsel %vm932, %v1532, %v1417
        %v1541 = vsel %vm932, %v1533, %v1419
        %v1542 = vsel %vm932, %v1534, %v1421
        %v1543 = vsel %vm932, %v1535, %v1423
        %v1544 = vsel %vm935, %v1536, %v1441
        %v1545 = vsel %vm935, %v1537, %v1443
        %v1546 = vsel %vm935, %v1538, %v1445
        %v1547 = vsel %vm935, %v1539, %v1447
        %v1548 = vsel %vm935, %v1540, %v1449
        %v1549 = vsel %vm935, %v1541, %v1451
        %v1550 = vsel %vm935, %v1542, %v1453
        %v1551 = vsel %vm935, %v1543, %v1455
        %v1552 = vsel %vm938, %v1544, %v1473
        %v1553 = vsel %vm938, %v1545, %v1475
        %v1554 = vsel %vm938, %v1546, %v1477
        %v1555 = vsel %vm938, %v1547, %v1479
        %v1556 = vsel %vm938, %v1548, %v1481
        %v1557 = vsel %vm938, %v1549, %v1483
        %v1558 = vsel %vm938, %v1550, %v1485
        %v1559 = vsel %vm938, %v1551, %v1487
        %v1560 = vpack.c.bf16 %v1553, %v1552
        %v1561 = vpack.c.bf16 %v1555, %v1554
        %v1562 = vpack.c.bf16 %v1557, %v1556
        %v1563 = vpack.c.bf16 %v1559, %v1558
        %v1564 = vld [vmem:[%s8] sm:$0xf]
        %v1565 = vld [vmem:[%s8 + $0x4] sm:$0xf]
        %v1566 = vld [vmem:[%s8 + $0x8] sm:$0xf]
        %v1567 = vld [vmem:[%s8 + $0xc] sm:$0xf]
        %v1568 = vld [vmem:[%s8 + $0x10] sm:$0xf]
        %v1569 = vld [vmem:[%s8 + $0x14] sm:$0xf]
        %v1570 = vld [vmem:[%s8 + $0x18] sm:$0xf]
        %v1571 = vld [vmem:[%s8 + $0x1c] sm:$0xf]
        %v1572 = vld [vmem:[%s8 + $0x20] sm:$0xf]
        %v1573 = vld [vmem:[%s9] sm:$0x1]
        %v1575 = vperm.slane %v1573, 0
        %v1586 = vunpack.c.l.b16 %v1564
        %v1587 = vunpack.c.l.b16 %v1565
        %v1588 = vunpack.c.l.b16 %v1566
        %v1589 = vunpack.c.l.b16 %v1567
        %v1590 = vunpack.c.l.b16 %v1568
        %v1591 = vunpack.c.l.b16 %v1569
        %v1592 = vunpack.c.l.b16 %v1570
        %v1593 = vunpack.c.l.b16 %v1571
        %v1594 = vunpack.c.l.b16 %v1572
        %v1595 = vpack.c.b16 %v1587, %v1586
        %v1596 = vpack.c.b16 %v1589, %v1588
        %v1597 = vpack.c.b16 %v1591, %v1590
        %v1598 = vpack.c.b16 %v1593, %v1592
        %v1599 = vpack.c.b16 %v1594, %v1594
        %v1605 = vsel %vm982, %v1560, 0
        %v1608 = vsel %vm982, %v1561, 0
        %v1611 = vsel %vm982, %v1562, 0
        %v1614 = vsel %vm982, %v1563, 0
        %v1617 = vsel %vm986, %v1599, 0
        %1619 = vmatpush.bf16.msra.mxu0 0
        %1620 = vmatpush.bf16.msra.mxu0 0
        %1621 = vmatpush.bf16.msra.mxu0 0
        %1622 = vmatpush.bf16.msra.mxu0 %v1617
        %1623 = vmatpush.bf16.msra.mxu0 %v1598
        %1624 = vmatpush.bf16.msra.mxu0 %v1597
        %1625 = vmatpush.bf16.msra.mxu0 %v1596
        %1626 = vmatpush.bf16.msra.mxu0 %v1595
        %1627 = vmatmul.bf16.gmra.mxu0 %v1605
        %v1628 = vpop.f32.mrf.mxu0
        %v1629 = vadd.f32 %v1575, %v1628
        %v1630 = vpop.f32.mrf.mxu0
        %v1631 = vadd.f32 %v1575, %v1630
        %1632 = vmatmul.bf16.gmra.mxu0 %v1608
        %v1633 = vpop.f32.mrf.mxu0
        %v1634 = vadd.f32 %v1575, %v1633
        %v1635 = vpop.f32.mrf.mxu0
        %v1636 = vadd.f32 %v1575, %v1635
        %1637 = vmatmul.bf16.gmra.mxu0 %v1611
        %v1638 = vpop.f32.mrf.mxu0
        %v1639 = vadd.f32 %v1575, %v1638
        %v1640 = vpop.f32.mrf.mxu0
        %v1641 = vadd.f32 %v1575, %v1640
        %1642 = vmatmul.bf16.gmra.mxu0 %v1614
        %v1643 = vpop.f32.mrf.mxu0
        %v1644 = vadd.f32 %v1575, %v1643
        %v1645 = vpop.f32.mrf.mxu0
        %v1646 = vadd.f32 %v1575, %v1645
        %1647 = vdwg.mxu0
        %v1648 = vmax.f32 %v1629, 0.0
        %v1649 = vmax.f32 %v1631, 0.0
        %v1650 = vmax.f32 %v1634, 0.0
        %v1651 = vmax.f32 %v1636, 0.0
        %v1652 = vmax.f32 %v1639, 0.0
        %v1653 = vmax.f32 %v1641, 0.0
        %v1654 = vmax.f32 %v1644, 0.0
        %v1655 = vmax.f32 %v1646, 0.0
        %v1656 = vmul.f32 %v595, %v549
        %v1657 = vmul.f32 %v595, %v550
        %v1658 = vmul.f32 %v595, %v551
        %v1659 = vmul.f32 %v595, %v552
        %v1660 = vmul.f32 %v595, %v553
        %v1661 = vmul.f32 %v595, %v554
        %v1662 = vmul.f32 %v595, %v555
        %v1663 = vmul.f32 %v595, %v556
        %v1664 = vmul.f32 %v595, %v557
        %v1665 = vmul.f32 %v595, %v558
        %v1666 = vmul.f32 %v595, %v559
        %v1667 = vmul.f32 %v595, %v560
        %v1668 = vmul.f32 %v595, %v561
        %v1669 = vmul.f32 %v595, %v562
        %v1670 = vmul.f32 %v595, %v563
        %v1671 = vmul.f32 %v595, %v564
        %v1672 = vmul.f32 %v595, %v565
        %v1673 = vmul.f32 %v595, %v566
        %v1674 = vmul.f32 %v595, %v567
        %v1675 = vmul.f32 %v595, %v568
        %v1676 = vmul.f32 %v595, %v569
        %v1677 = vmul.f32 %v595, %v570
        %v1678 = vmul.f32 %v595, %v571
        %v1679 = vmul.f32 %v595, %v572
        %v1680 = vmul.f32 %v595, %v573
        %v1681 = vmul.f32 %v595, %v574
        %v1682 = vmul.f32 %v595, %v575
        %v1683 = vmul.f32 %v595, %v576
        %v1684 = vmul.f32 %v595, %v577
        %v1685 = vmul.f32 %v595, %v578
        %v1686 = vmul.f32 %v595, %v579
        %v1687 = vmul.f32 %v595, %v580
        %v1688 = vld [vmem:[%s7] sm:$0xf]
        %v1689 = vld [vmem:[%s7 + $0x4] sm:$0xf]
        %v1690 = vld [vmem:[%s7 + $0x8] sm:$0xf]
        %v1691 = vld [vmem:[%s7 + $0xc] sm:$0xf]
        %v1692 = vld [vmem:[%s7 + $0x10] sm:$0xf]
        %v1693 = vld [vmem:[%s7 + $0x14] sm:$0xf]
        %v1694 = vld [vmem:[%s7 + $0x18] sm:$0xf]
        %v1695 = vld [vmem:[%s7 + $0x1c] sm:$0xf]
        %v1696 = vld [vmem:[%s7 + $0x20] sm:$0xf]
        %v1697 = vld [vmem:[%s7 + $0x24] sm:$0xf]
        %v1698 = vld [vmem:[%s7 + $0x28] sm:$0xf]
        %v1699 = vld [vmem:[%s7 + $0x2c] sm:$0xf]
        %v1700 = vld [vmem:[%s7 + $0x30] sm:$0xf]
        %v1701 = vld [vmem:[%s7 + $0x34] sm:$0xf]
        %v1702 = vld [vmem:[%s7 + $0x38] sm:$0xf]
        %v1703 = vld [vmem:[%s7 + $0x3c] sm:$0xf]
        %v1704 = vld [vmem:[%s7 + $0x40] sm:$0xf]
        %v1705 = vld [vmem:[%s7 + $0x44] sm:$0xf]
        %v1706 = vld [vmem:[%s7 + $0x48] sm:$0xf]
        %v1707 = vld [vmem:[%s7 + $0x4c] sm:$0xf]
        %v1708 = vld [vmem:[%s7 + $0x50] sm:$0xf]
        %v1709 = vld [vmem:[%s7 + $0x54] sm:$0xf]
        %v1710 = vld [vmem:[%s7 + $0x58] sm:$0xf]
        %v1711 = vld [vmem:[%s7 + $0x5c] sm:$0xf]
        %v1712 = vld [vmem:[%s7 + $0x60] sm:$0xf]
        %v1713 = vld [vmem:[%s7 + $0x64] sm:$0xf]
        %v1714 = vld [vmem:[%s7 + $0x68] sm:$0xf]
        %v1715 = vld [vmem:[%s7 + $0x6c] sm:$0xf]
        %v1716 = vld [vmem:[%s7 + $0x70] sm:$0xf]
        %v1717 = vld [vmem:[%s7 + $0x74] sm:$0xf]
        %v1718 = vld [vmem:[%s7 + $0x78] sm:$0xf]
        %v1719 = vld [vmem:[%s7 + $0x7c] sm:$0xf]
        %v1720 = vpack.c.bf16 %v1649, %v1648
        %v1721 = vpack.c.bf16 %v1651, %v1650
        %v1722 = vpack.c.bf16 %v1653, %v1652
        %v1723 = vpack.c.bf16 %v1655, %v1654
        %v1756 = vunpack.c.l.b16 %v1688
        %v1757 = vunpack.c.l.b16 %v1689
        %v1758 = vunpack.c.l.b16 %v1690
        %v1759 = vunpack.c.l.b16 %v1691
        %v1760 = vunpack.c.l.b16 %v1692
        %v1761 = vunpack.c.l.b16 %v1693
        %v1762 = vunpack.c.l.b16 %v1694
        %v1763 = vunpack.c.l.b16 %v1695
        %v1764 = vunpack.c.l.b16 %v1696
        %v1765 = vunpack.c.l.b16 %v1697
        %v1766 = vunpack.c.l.b16 %v1698
        %v1767 = vunpack.c.l.b16 %v1699
        %v1768 = vunpack.c.l.b16 %v1700
        %v1769 = vunpack.c.l.b16 %v1701
        %v1770 = vunpack.c.l.b16 %v1702
        %v1771 = vunpack.c.l.b16 %v1703
        %v1772 = vunpack.c.l.b16 %v1704
        %v1773 = vunpack.c.l.b16 %v1705
        %v1774 = vunpack.c.l.b16 %v1706
        %v1775 = vunpack.c.l.b16 %v1707
        %v1776 = vunpack.c.l.b16 %v1708
        %v1777 = vunpack.c.l.b16 %v1709
        %v1778 = vunpack.c.l.b16 %v1710
        %v1779 = vunpack.c.l.b16 %v1711
        %v1780 = vunpack.c.l.b16 %v1712
        %v1781 = vunpack.c.l.b16 %v1713
        %v1782 = vunpack.c.l.b16 %v1714
        %v1783 = vunpack.c.l.b16 %v1715
        %v1784 = vunpack.c.l.b16 %v1716
        %v1785 = vunpack.c.l.b16 %v1717
        %v1786 = vunpack.c.l.b16 %v1718
        %v1787 = vunpack.c.l.b16 %v1719
        %v1788 = vpack.c.b16 %v1757, %v1756
        %v1789 = vpack.c.b16 %v1759, %v1758
        %v1790 = vpack.c.b16 %v1761, %v1760
        %v1791 = vpack.c.b16 %v1763, %v1762
        %v1792 = vpack.c.b16 %v1765, %v1764
        %v1793 = vpack.c.b16 %v1767, %v1766
        %v1794 = vpack.c.b16 %v1769, %v1768
        %v1795 = vpack.c.b16 %v1771, %v1770
        %v1796 = vpack.c.b16 %v1773, %v1772
        %v1797 = vpack.c.b16 %v1775, %v1774
        %v1798 = vpack.c.b16 %v1777, %v1776
        %v1799 = vpack.c.b16 %v1779, %v1778
        %v1800 = vpack.c.b16 %v1781, %v1780
        %v1801 = vpack.c.b16 %v1783, %v1782
        %v1802 = vpack.c.b16 %v1785, %v1784
        %v1803 = vpack.c.b16 %v1787, %v1786
        %v1805 = vsel %vm938, %v1788, 0
        %v1808 = vsel %vm938, %v1789, 0
        %v1811 = vsel %vm938, %v1790, 0
        %v1814 = vsel %vm938, %v1791, 0
        %v1817 = vsel %vm938, %v1792, 0
        %v1820 = vsel %vm938, %v1793, 0
        %v1823 = vsel %vm938, %v1794, 0
        %v1826 = vsel %vm938, %v1795, 0
        %v1829 = vsel %vm938, %v1796, 0
        %v1832 = vsel %vm938, %v1797, 0
        %v1835 = vsel %vm938, %v1798, 0
        %v1838 = vsel %vm938, %v1799, 0
        %v1841 = vsel %vm938, %v1800, 0
        %v1844 = vsel %vm938, %v1801, 0
        %v1847 = vsel %vm938, %v1802, 0
        %v1850 = vsel %vm938, %v1803, 0
        %1852 = vmatpush.bf16.msra.mxu0 0
        %1853 = vmatpush.bf16.msra.mxu0 0
        %1854 = vmatpush.bf16.msra.mxu0 0
        %1855 = vmatpush.bf16.msra.mxu0 0
        %1856 = vmatpush.bf16.msra.mxu0 %v1723
        %1857 = vmatpush.bf16.msra.mxu0 %v1722
        %1858 = vmatpush.bf16.msra.mxu0 %v1721
        %1859 = vmatpush.bf16.msra.mxu0 %v1720
        %1860 = vmatmul.bf16.gmra.mxu0 %v1805
        %v1861 = vpop.f32.mrf.mxu0
        %v1862 = vadd.f32 0.0, %v1861
        %v1863 = vpop.f32.mrf.mxu0
        %v1864 = vadd.f32 0.0, %v1863
        %1865 = vmatmul.bf16.gmra.mxu0 %v1808
        %v1866 = vpop.f32.mrf.mxu0
        %v1867 = vadd.f32 0.0, %v1866
        %v1868 = vpop.f32.mrf.mxu0
        %v1869 = vadd.f32 0.0, %v1868
        %1870 = vmatmul.bf16.gmra.mxu0 %v1811
        %v1871 = vpop.f32.mrf.mxu0
        %v1872 = vadd.f32 0.0, %v1871
        %v1873 = vpop.f32.mrf.mxu0
        %v1874 = vadd.f32 0.0, %v1873
        %1875 = vmatmul.bf16.gmra.mxu0 %v1814
        %v1876 = vpop.f32.mrf.mxu0
        %v1877 = vadd.f32 0.0, %v1876
        %v1878 = vpop.f32.mrf.mxu0
        %v1879 = vadd.f32 0.0, %v1878
        %1880 = vmatmul.bf16.gmra.mxu0 %v1817
        %v1881 = vpop.f32.mrf.mxu0
        %v1882 = vadd.f32 0.0, %v1881
        %v1883 = vpop.f32.mrf.mxu0
        %v1884 = vadd.f32 0.0, %v1883
        %1885 = vmatmul.bf16.gmra.mxu0 %v1820
        %v1886 = vpop.f32.mrf.mxu0
        %v1887 = vadd.f32 0.0, %v1886
        %v1888 = vpop.f32.mrf.mxu0
        %v1889 = vadd.f32 0.0, %v1888
        %1890 = vmatmul.bf16.gmra.mxu0 %v1823
        %v1891 = vpop.f32.mrf.mxu0
        %v1892 = vadd.f32 0.0, %v1891
        %v1893 = vpop.f32.mrf.mxu0
        %v1894 = vadd.f32 0.0, %v1893
        %1895 = vmatmul.bf16.gmra.mxu0 %v1826
        %v1896 = vpop.f32.mrf.mxu0
        %v1897 = vadd.f32 0.0, %v1896
        %v1898 = vpop.f32.mrf.mxu0
        %v1899 = vadd.f32 0.0, %v1898
        %1900 = vmatmul.bf16.gmra.mxu0 %v1829
        %v1901 = vpop.f32.mrf.mxu0
        %v1902 = vadd.f32 0.0, %v1901
        %v1903 = vpop.f32.mrf.mxu0
        %v1904 = vadd.f32 0.0, %v1903
        %1905 = vmatmul.bf16.gmra.mxu0 %v1832
        %v1906 = vpop.f32.mrf.mxu0
        %v1907 = vadd.f32 0.0, %v1906
        %v1908 = vpop.f32.mrf.mxu0
        %v1909 = vadd.f32 0.0, %v1908
        %1910 = vmatmul.bf16.gmra.mxu0 %v1835
        %v1911 = vpop.f32.mrf.mxu0
        %v1912 = vadd.f32 0.0, %v1911
        %v1913 = vpop.f32.mrf.mxu0
        %v1914 = vadd.f32 0.0, %v1913
        %1915 = vmatmul.bf16.gmra.mxu0 %v1838
        %v1916 = vpop.f32.mrf.mxu0
        %v1917 = vadd.f32 0.0, %v1916
        %v1918 = vpop.f32.mrf.mxu0
        %v1919 = vadd.f32 0.0, %v1918
        %1920 = vmatmul.bf16.gmra.mxu0 %v1841
        %v1921 = vpop.f32.mrf.mxu0
        %v1922 = vadd.f32 0.0, %v1921
        %v1923 = vpop.f32.mrf.mxu0
        %v1924 = vadd.f32 0.0, %v1923
        %1925 = vmatmul.bf16.gmra.mxu0 %v1844
        %v1926 = vpop.f32.mrf.mxu0
        %v1927 = vadd.f32 0.0, %v1926
        %v1928 = vpop.f32.mrf.mxu0
        %v1929 = vadd.f32 0.0, %v1928
        %1930 = vmatmul.bf16.gmra.mxu0 %v1847
        %v1931 = vpop.f32.mrf.mxu0
        %v1932 = vadd.f32 0.0, %v1931
        %v1933 = vpop.f32.mrf.mxu0
        %v1934 = vadd.f32 0.0, %v1933
        %1935 = vmatmul.bf16.gmra.mxu0 %v1850
        %v1936 = vpop.f32.mrf.mxu0
        %v1937 = vadd.f32 0.0, %v1936
        %v1938 = vpop.f32.mrf.mxu0
        %v1939 = vadd.f32 0.0, %v1938
        %1940 = vdwg.mxu0
        %v1941 = vmul.f32 %v643, %v1862
        %v1942 = vmul.f32 %v643, %v1864
        %v1943 = vmul.f32 %v643, %v1867
        %v1944 = vmul.f32 %v643, %v1869
        %v1945 = vmul.f32 %v643, %v1872
        %v1946 = vmul.f32 %v643, %v1874
        %v1947 = vmul.f32 %v643, %v1877
        %v1948 = vmul.f32 %v643, %v1879
        %v1949 = vmul.f32 %v643, %v1882
        %v1950 = vmul.f32 %v643, %v1884
        %v1951 = vmul.f32 %v643, %v1887
        %v1952 = vmul.f32 %v643, %v1889
        %v1953 = vmul.f32 %v643, %v1892
        %v1954 = vmul.f32 %v643, %v1894
        %v1955 = vmul.f32 %v643, %v1897
        %v1956 = vmul.f32 %v643, %v1899
        %v1957 = vmul.f32 %v643, %v1902
        %v1958 = vmul.f32 %v643, %v1904
        %v1959 = vmul.f32 %v643, %v1907
        %v1960 = vmul.f32 %v643, %v1909
        %v1961 = vmul.f32 %v643, %v1912
        %v1962 = vmul.f32 %v643, %v1914
        %v1963 = vmul.f32 %v643, %v1917
        %v1964 = vmul.f32 %v643, %v1919
        %v1965 = vmul.f32 %v643, %v1922
        %v1966 = vmul.f32 %v643, %v1924
        %v1967 = vmul.f32 %v643, %v1927
        %v1968 = vmul.f32 %v643, %v1929
        %v1969 = vmul.f32 %v643, %v1932
        %v1970 = vmul.f32 %v643, %v1934
        %v1971 = vmul.f32 %v643, %v1937
        %v1972 = vmul.f32 %v643, %v1939
        %v1973 = vadd.f32 %v1656, %v1941
        %v1974 = vadd.f32 %v1657, %v1942
        %v1975 = vadd.f32 %v1658, %v1943
        %v1976 = vadd.f32 %v1659, %v1944
        %v1977 = vadd.f32 %v1660, %v1945
        %v1978 = vadd.f32 %v1661, %v1946
        %v1979 = vadd.f32 %v1662, %v1947
        %v1980 = vadd.f32 %v1663, %v1948
        %v1981 = vadd.f32 %v1664, %v1949
        %v1982 = vadd.f32 %v1665, %v1950
        %v1983 = vadd.f32 %v1666, %v1951
        %v1984 = vadd.f32 %v1667, %v1952
        %v1985 = vadd.f32 %v1668, %v1953
        %v1986 = vadd.f32 %v1669, %v1954
        %v1987 = vadd.f32 %v1670, %v1955
        %v1988 = vadd.f32 %v1671, %v1956
        %v1989 = vadd.f32 %v1672, %v1957
        %v1990 = vadd.f32 %v1673, %v1958
        %v1991 = vadd.f32 %v1674, %v1959
        %v1992 = vadd.f32 %v1675, %v1960
        %v1993 = vadd.f32 %v1676, %v1961
        %v1994 = vadd.f32 %v1677, %v1962
        %v1995 = vadd.f32 %v1678, %v1963
        %v1996 = vadd.f32 %v1679, %v1964
        %v1997 = vadd.f32 %v1680, %v1965
        %v1998 = vadd.f32 %v1681, %v1966
        %v1999 = vadd.f32 %v1682, %v1967
        %v2000 = vadd.f32 %v1683, %v1968
        %v2001 = vadd.f32 %v1684, %v1969
        %v2002 = vadd.f32 %v1685, %v1970
        %v2003 = vadd.f32 %v1686, %v1971
        %v2004 = vadd.f32 %v1687, %v1972
        %2005 = vst.msk [vmem:[#allocation2] sm:$0xff] %vm652, 0.0
        %2006 = vst.msk [vmem:[#allocation2 + $0x8] sm:$0xff] %vm652, 0.0
        %2007 = vst.msk [vmem:[#allocation2 + $0x10] sm:$0x3] %vm655, 0.0
        %2008 = vst.msk [vmem:[#allocation2 + $0x18] sm:$0xff] %vm652, 0.0
        %2009 = vst.msk [vmem:[#allocation2 + $0x20] sm:$0xff] %vm652, 0.0
        %2010 = vst.msk [vmem:[#allocation2 + $0x28] sm:$0x3] %vm655, 0.0
        %2011 = vst.msk [vmem:[#allocation2 + $0x30] sm:$0xff] %vm652, 0.0
        %2012 = vst.msk [vmem:[#allocation2 + $0x38] sm:$0xff] %vm652, 0.0
        %2013 = vst.msk [vmem:[#allocation2 + $0x40] sm:$0x3] %vm655, 0.0
        %2014 = vst.msk [vmem:[#allocation2 + $0x48] sm:$0xff] %vm652, 0.0
        %2015 = vst.msk [vmem:[#allocation2 + $0x50] sm:$0xff] %vm652, 0.0
        %2016 = vst.msk [vmem:[#allocation2 + $0x58] sm:$0x3] %vm655, 0.0
        %2017 = vst.msk [vmem:[#allocation2 + $0x60] sm:$0xff] %vm652, 0.0
        %2018 = vst.msk [vmem:[#allocation2 + $0x68] sm:$0xff] %vm652, 0.0
        %2019 = vst.msk [vmem:[#allocation2 + $0x70] sm:$0x3] %vm655, 0.0
        %2020 = vst.msk [vmem:[#allocation2 + $0x78] sm:$0xff] %vm652, 0.0
        %2021 = vst.msk [vmem:[#allocation2 + $0x80] sm:$0xff] %vm652, 0.0
        %2022 = vst.msk [vmem:[#allocation2 + $0x88] sm:$0x3] %vm655, 0.0
        %2023 = vst.msk [vmem:[#allocation2 + $0x90] sm:$0xff] %vm652, 0.0
        %2024 = vst.msk [vmem:[#allocation2 + $0x98] sm:$0xff] %vm652, 0.0
        %2025 = vst.msk [vmem:[#allocation2 + $0xa0] sm:$0x3] %vm655, 0.0
        %2026 = vst.msk [vmem:[#allocation2 + $0xa8] sm:$0xff] %vm652, 0.0
        %2027 = vst.msk [vmem:[#allocation2 + $0xb0] sm:$0xff] %vm652, 0.0
        %2028 = vst.msk [vmem:[#allocation2 + $0xb8] sm:$0x3] %vm655, 0.0
        %2029 = vst.msk [vmem:[#allocation2 + $0xc0] sm:$0xff] %vm652, 0.0
        %2030 = vst.msk [vmem:[#allocation2 + $0xc8] sm:$0xff] %vm652, 0.0
        %2031 = vst.msk [vmem:[#allocation2 + $0xd0] sm:$0x3] %vm655, 0.0
        %2032 = vst.msk [vmem:[#allocation2 + $0xd8] sm:$0xff] %vm652, 0.0
        %2033 = vst.msk [vmem:[#allocation2 + $0xe0] sm:$0xff] %vm652, 0.0
        %2034 = vst.msk [vmem:[#allocation2 + $0xe8] sm:$0x3] %vm655, 0.0
        %2035 = vst.msk [vmem:[#allocation2 + $0xf0] sm:$0xff] %vm652, 0.0
        %2036 = vst.msk [vmem:[#allocation2 + $0xf8] sm:$0xff] %vm652, 0.0
        %2037 = vst.msk [vmem:[#allocation2 + $0x100] sm:$0x3] %vm655, 0.0
        %2038 = vst.msk [vmem:[#allocation2 + $0x108] sm:$0xff] %vm652, 0.0
        %2039 = vst.msk [vmem:[#allocation2 + $0x110] sm:$0xff] %vm652, 0.0
        %2040 = vst.msk [vmem:[#allocation2 + $0x118] sm:$0x3] %vm655, 0.0
        %2041 = vst.msk [vmem:[#allocation2 + $0x120] sm:$0xff] %vm652, 0.0
        %2042 = vst.msk [vmem:[#allocation2 + $0x128] sm:$0xff] %vm652, 0.0
        %2043 = vst.msk [vmem:[#allocation2 + $0x130] sm:$0x3] %vm655, 0.0
        %2044 = vst.msk [vmem:[#allocation2 + $0x138] sm:$0xff] %vm652, 0.0
        %2045 = vst.msk [vmem:[#allocation2 + $0x140] sm:$0xff] %vm652, 0.0
        %2046 = vst.msk [vmem:[#allocation2 + $0x148] sm:$0x3] %vm655, 0.0
        %2047 = vst.msk [vmem:[#allocation2 + $0x150] sm:$0xff] %vm652, 0.0
        %2048 = vst.msk [vmem:[#allocation2 + $0x158] sm:$0xff] %vm652, 0.0
        %2049 = vst.msk [vmem:[#allocation2 + $0x160] sm:$0x3] %vm655, 0.0
        %2050 = vst.msk [vmem:[#allocation2 + $0x168] sm:$0xff] %vm652, 0.0
        %2051 = vst.msk [vmem:[#allocation2 + $0x170] sm:$0xff] %vm652, 0.0
        %2052 = vst.msk [vmem:[#allocation2 + $0x178] sm:$0x3] %vm655, 0.0
        %2053 = vst.msk [vmem:[#allocation2 + $0x180] sm:$0xff] %vm652, 0.0
        %2054 = vst.msk [vmem:[#allocation2 + $0x188] sm:$0xff] %vm652, 0.0
        %2055 = vst.msk [vmem:[#allocation2 + $0x190] sm:$0x3] %vm655, 0.0
        %2056 = vst.msk [vmem:[#allocation2 + $0x198] sm:$0xff] %vm652, 0.0
        %2057 = vst.msk [vmem:[#allocation2 + $0x1a0] sm:$0xff] %vm652, 0.0
        %2058 = vst.msk [vmem:[#allocation2 + $0x1a8] sm:$0x3] %vm655, 0.0
        %2059 = vst.msk [vmem:[%s708 + $0x1] sm:$0xff] %vm652, %v1973
        %2060 = vst.msk [vmem:[%s708 + $0x9] sm:$0xff] %vm652, %v1974
        %2061 = vst.msk [vmem:[%s708 + $0x19] sm:$0xff] %vm652, %v1975
        %2062 = vst.msk [vmem:[%s708 + $0x21] sm:$0xff] %vm652, %v1976
        %2063 = vst.msk [vmem:[%s708 + $0x31] sm:$0xff] %vm652, %v1977
        %2064 = vst.msk [vmem:[%s708 + $0x39] sm:$0xff] %vm652, %v1978
        %2065 = vst.msk [vmem:[%s708 + $0x49] sm:$0xff] %vm652, %v1979
        %2066 = vst.msk [vmem:[%s708 + $0x51] sm:$0xff] %vm652, %v1980
        %2067 = vst.msk [vmem:[%s708 + $0x61] sm:$0xff] %vm652, %v1981
        %2068 = vst.msk [vmem:[%s708 + $0x69] sm:$0xff] %vm652, %v1982
        %2069 = vst.msk [vmem:[%s708 + $0x79] sm:$0xff] %vm652, %v1983
        %2070 = vst.msk [vmem:[%s708 + $0x81] sm:$0xff] %vm652, %v1984
        %2071 = vst.msk [vmem:[%s708 + $0x91] sm:$0xff] %vm652, %v1985
        %2072 = vst.msk [vmem:[%s708 + $0x99] sm:$0xff] %vm652, %v1986
        %2073 = vst.msk [vmem:[%s708 + $0xa9] sm:$0xff] %vm652, %v1987
        %2074 = vst.msk [vmem:[%s708 + $0xb1] sm:$0xff] %vm652, %v1988
        %2075 = vst.msk [vmem:[%s708 + $0xc1] sm:$0xff] %vm652, %v1989
        %2076 = vst.msk [vmem:[%s708 + $0xc9] sm:$0xff] %vm652, %v1990
        %2077 = vst.msk [vmem:[%s708 + $0xd9] sm:$0xff] %vm652, %v1991
        %2078 = vst.msk [vmem:[%s708 + $0xe1] sm:$0xff] %vm652, %v1992
        %2079 = vst.msk [vmem:[%s708 + $0xf1] sm:$0xff] %vm652, %v1993
        %2080 = vst.msk [vmem:[%s708 + $0xf9] sm:$0xff] %vm652, %v1994
        %2081 = vst.msk [vmem:[%s708 + $0x109] sm:$0xff] %vm652, %v1995
        %2082 = vst.msk [vmem:[%s708 + $0x111] sm:$0xff] %vm652, %v1996
        %2083 = vst.msk [vmem:[%s708 + $0x121] sm:$0xff] %vm652, %v1997
        %2084 = vst.msk [vmem:[%s708 + $0x129] sm:$0xff] %vm652, %v1998
        %2085 = vst.msk [vmem:[%s708 + $0x139] sm:$0xff] %vm652, %v1999
        %2086 = vst.msk [vmem:[%s708 + $0x141] sm:$0xff] %vm652, %v2000
        %2087 = vst.msk [vmem:[%s708 + $0x151] sm:$0xff] %vm652, %v2001
        %2088 = vst.msk [vmem:[%s708 + $0x159] sm:$0xff] %vm652, %v2002
        %2089 = vst.msk [vmem:[%s708 + $0x169] sm:$0xff] %vm652, %v2003
        %2090 = vst.msk [vmem:[%s708 + $0x171] sm:$0xff] %vm652, %v2004
        %v2091 = vld [vmem:[#allocation2] sm:$0xff]
        %v2092 = vld [vmem:[#allocation2 + $0x8] sm:$0xff]
        %v2093 = vld [vmem:[#allocation2 + $0x18] sm:$0xff]
        %v2094 = vld [vmem:[#allocation2 + $0x20] sm:$0xff]
        %v2095 = vld [vmem:[#allocation2 + $0x30] sm:$0xff]
        %v2096 = vld [vmem:[#allocation2 + $0x38] sm:$0xff]
        %v2097 = vld [vmem:[#allocation2 + $0x48] sm:$0xff]
        %v2098 = vld [vmem:[#allocation2 + $0x50] sm:$0xff]
        %v2099 = vld [vmem:[#allocation2 + $0x60] sm:$0xff]
        %v2100 = vld [vmem:[#allocation2 + $0x68] sm:$0xff]
        %v2101 = vld [vmem:[#allocation2 + $0x78] sm:$0xff]
        %v2102 = vld [vmem:[#allocation2 + $0x80] sm:$0xff]
        %v2103 = vld [vmem:[#allocation2 + $0x90] sm:$0xff]
        %v2104 = vld [vmem:[#allocation2 + $0x98] sm:$0xff]
        %v2105 = vld [vmem:[#allocation2 + $0xa8] sm:$0xff]
        %v2106 = vld [vmem:[#allocation2 + $0xb0] sm:$0xff]
        %v2107 = vld [vmem:[#allocation2 + $0xc0] sm:$0xff]
        %v2108 = vld [vmem:[#allocation2 + $0xc8] sm:$0xff]
        %v2109 = vld [vmem:[#allocation2 + $0xd8] sm:$0xff]
        %v2110 = vld [vmem:[#allocation2 + $0xe0] sm:$0xff]
        %v2111 = vld [vmem:[#allocation2 + $0xf0] sm:$0xff]
        %v2112 = vld [vmem:[#allocation2 + $0xf8] sm:$0xff]
        %v2113 = vld [vmem:[#allocation2 + $0x108] sm:$0xff]
        %v2114 = vld [vmem:[#allocation2 + $0x110] sm:$0xff]
        %v2115 = vld [vmem:[#allocation2 + $0x120] sm:$0xff]
        %v2116 = vld [vmem:[#allocation2 + $0x128] sm:$0xff]
        %v2117 = vld [vmem:[#allocation2 + $0x138] sm:$0xff]
        %v2118 = vld [vmem:[#allocation2 + $0x140] sm:$0xff]
        %v2119 = vld [vmem:[#allocation2 + $0x150] sm:$0xff]
        %v2120 = vld [vmem:[#allocation2 + $0x158] sm:$0xff]
        %v2121 = vld [vmem:[#allocation2 + $0x168] sm:$0xff]
        %v2122 = vld [vmem:[#allocation2 + $0x170] sm:$0xff]
        %v2123 = vld [vmem:[#allocation2 + $0x1] sm:$0xff]
        %v2124 = vld [vmem:[#allocation2 + $0x9] sm:$0xff]
        %v2125 = vld [vmem:[#allocation2 + $0x19] sm:$0xff]
        %v2126 = vld [vmem:[#allocation2 + $0x21] sm:$0xff]
        %v2127 = vld [vmem:[#allocation2 + $0x31] sm:$0xff]
        %v2128 = vld [vmem:[#allocation2 + $0x39] sm:$0xff]
        %v2129 = vld [vmem:[#allocation2 + $0x49] sm:$0xff]
        %v2130 = vld [vmem:[#allocation2 + $0x51] sm:$0xff]
        %v2131 = vld [vmem:[#allocation2 + $0x61] sm:$0xff]
        %v2132 = vld [vmem:[#allocation2 + $0x69] sm:$0xff]
        %v2133 = vld [vmem:[#allocation2 + $0x79] sm:$0xff]
        %v2134 = vld [vmem:[#allocation2 + $0x81] sm:$0xff]
        %v2135 = vld [vmem:[#allocation2 + $0x91] sm:$0xff]
        %v2136 = vld [vmem:[#allocation2 + $0x99] sm:$0xff]
        %v2137 = vld [vmem:[#allocation2 + $0xa9] sm:$0xff]
        %v2138 = vld [vmem:[#allocation2 + $0xb1] sm:$0xff]
        %v2139 = vld [vmem:[#allocation2 + $0xc1] sm:$0xff]
        %v2140 = vld [vmem:[#allocation2 + $0xc9] sm:$0xff]
        %v2141 = vld [vmem:[#allocation2 + $0xd9] sm:$0xff]
        %v2142 = vld [vmem:[#allocation2 + $0xe1] sm:$0xff]
        %v2143 = vld [vmem:[#allocation2 + $0xf1] sm:$0xff]
        %v2144 = vld [vmem:[#allocation2 + $0xf9] sm:$0xff]
        %v2145 = vld [vmem:[#allocation2 + $0x109] sm:$0xff]
        %v2146 = vld [vmem:[#allocation2 + $0x111] sm:$0xff]
        %v2147 = vld [vmem:[#allocation2 + $0x121] sm:$0xff]
        %v2148 = vld [vmem:[#allocation2 + $0x129] sm:$0xff]
        %v2149 = vld [vmem:[#allocation2 + $0x139] sm:$0xff]
        %v2150 = vld [vmem:[#allocation2 + $0x141] sm:$0xff]
        %v2151 = vld [vmem:[#allocation2 + $0x151] sm:$0xff]
        %v2152 = vld [vmem:[#allocation2 + $0x159] sm:$0xff]
        %v2153 = vld [vmem:[#allocation2 + $0x169] sm:$0xff]
        %v2154 = vld [vmem:[#allocation2 + $0x171] sm:$0xff]
        %v2155 = vld [vmem:[#allocation2 + $0x2] sm:$0xff]
        %v2156 = vld [vmem:[#allocation2 + $0xa] sm:$0xff]
        %v2157 = vld [vmem:[#allocation2 + $0x1a] sm:$0xff]
        %v2158 = vld [vmem:[#allocation2 + $0x22] sm:$0xff]
        %v2159 = vld [vmem:[#allocation2 + $0x32] sm:$0xff]
        %v2160 = vld [vmem:[#allocation2 + $0x3a] sm:$0xff]
        %v2161 = vld [vmem:[#allocation2 + $0x4a] sm:$0xff]
        %v2162 = vld [vmem:[#allocation2 + $0x52] sm:$0xff]
        %v2163 = vld [vmem:[#allocation2 + $0x62] sm:$0xff]
        %v2164 = vld [vmem:[#allocation2 + $0x6a] sm:$0xff]
        %v2165 = vld [vmem:[#allocation2 + $0x7a] sm:$0xff]
        %v2166 = vld [vmem:[#allocation2 + $0x82] sm:$0xff]
        %v2167 = vld [vmem:[#allocation2 + $0x92] sm:$0xff]
        %v2168 = vld [vmem:[#allocation2 + $0x9a] sm:$0xff]
        %v2169 = vld [vmem:[#allocation2 + $0xaa] sm:$0xff]
        %v2170 = vld [vmem:[#allocation2 + $0xb2] sm:$0xff]
        %v2171 = vld [vmem:[#allocation2 + $0xc2] sm:$0xff]
        %v2172 = vld [vmem:[#allocation2 + $0xca] sm:$0xff]
        %v2173 = vld [vmem:[#allocation2 + $0xda] sm:$0xff]
        %v2174 = vld [vmem:[#allocation2 + $0xe2] sm:$0xff]
        %v2175 = vld [vmem:[#allocation2 + $0xf2] sm:$0xff]
        %v2176 = vld [vmem:[#allocation2 + $0xfa] sm:$0xff]
        %v2177 = vld [vmem:[#allocation2 + $0x10a] sm:$0xff]
        %v2178 = vld [vmem:[#allocation2 + $0x112] sm:$0xff]
        %v2179 = vld [vmem:[#allocation2 + $0x122] sm:$0xff]
        %v2180 = vld [vmem:[#allocation2 + $0x12a] sm:$0xff]
        %v2181 = vld [vmem:[#allocation2 + $0x13a] sm:$0xff]
        %v2182 = vld [vmem:[#allocation2 + $0x142] sm:$0xff]
        %v2183 = vld [vmem:[#allocation2 + $0x152] sm:$0xff]
        %v2184 = vld [vmem:[#allocation2 + $0x15a] sm:$0xff]
        %v2185 = vld [vmem:[#allocation2 + $0x16a] sm:$0xff]
        %v2186 = vld [vmem:[#allocation2 + $0x172] sm:$0xff]
        %v2187 = vld [vmem:[%s708] sm:$0xff]
        %v2188 = vld [vmem:[%s708 + $0x8] sm:$0xff]
        %v2189 = vld [vmem:[%s708 + $0x18] sm:$0xff]
        %v2190 = vld [vmem:[%s708 + $0x20] sm:$0xff]
        %v2191 = vld [vmem:[%s708 + $0x30] sm:$0xff]
        %v2192 = vld [vmem:[%s708 + $0x38] sm:$0xff]
        %v2193 = vld [vmem:[%s708 + $0x48] sm:$0xff]
        %v2194 = vld [vmem:[%s708 + $0x50] sm:$0xff]
        %v2195 = vld [vmem:[%s708 + $0x60] sm:$0xff]
        %v2196 = vld [vmem:[%s708 + $0x68] sm:$0xff]
        %v2197 = vld [vmem:[%s708 + $0x78] sm:$0xff]
        %v2198 = vld [vmem:[%s708 + $0x80] sm:$0xff]
        %v2199 = vld [vmem:[%s708 + $0x90] sm:$0xff]
        %v2200 = vld [vmem:[%s708 + $0x98] sm:$0xff]
        %v2201 = vld [vmem:[%s708 + $0xa8] sm:$0xff]
        %v2202 = vld [vmem:[%s708 + $0xb0] sm:$0xff]
        %v2203 = vld [vmem:[%s708 + $0xc0] sm:$0xff]
        %v2204 = vld [vmem:[%s708 + $0xc8] sm:$0xff]
        %v2205 = vld [vmem:[%s708 + $0xd8] sm:$0xff]
        %v2206 = vld [vmem:[%s708 + $0xe0] sm:$0xff]
        %v2207 = vld [vmem:[%s708 + $0xf0] sm:$0xff]
        %v2208 = vld [vmem:[%s708 + $0xf8] sm:$0xff]
        %v2209 = vld [vmem:[%s708 + $0x108] sm:$0xff]
        %v2210 = vld [vmem:[%s708 + $0x110] sm:$0xff]
        %v2211 = vld [vmem:[%s708 + $0x120] sm:$0xff]
        %v2212 = vld [vmem:[%s708 + $0x128] sm:$0xff]
        %v2213 = vld [vmem:[%s708 + $0x138] sm:$0xff]
        %v2214 = vld [vmem:[%s708 + $0x140] sm:$0xff]
        %v2215 = vld [vmem:[%s708 + $0x150] sm:$0xff]
        %v2216 = vld [vmem:[%s708 + $0x158] sm:$0xff]
        %v2217 = vld [vmem:[%s708 + $0x168] sm:$0xff]
        %v2218 = vld [vmem:[%s708 + $0x170] sm:$0xff]
        %v2219 = vld [vmem:[%s708 + $0x1] sm:$0xff]
        %v2220 = vld [vmem:[%s708 + $0x9] sm:$0xff]
        %v2221 = vld [vmem:[%s708 + $0x19] sm:$0xff]
        %v2222 = vld [vmem:[%s708 + $0x21] sm:$0xff]
        %v2223 = vld [vmem:[%s708 + $0x31] sm:$0xff]
        %v2224 = vld [vmem:[%s708 + $0x39] sm:$0xff]
        %v2225 = vld [vmem:[%s708 + $0x49] sm:$0xff]
        %v2226 = vld [vmem:[%s708 + $0x51] sm:$0xff]
        %v2227 = vld [vmem:[%s708 + $0x61] sm:$0xff]
        %v2228 = vld [vmem:[%s708 + $0x69] sm:$0xff]
        %v2229 = vld [vmem:[%s708 + $0x79] sm:$0xff]
        %v2230 = vld [vmem:[%s708 + $0x81] sm:$0xff]
        %v2231 = vld [vmem:[%s708 + $0x91] sm:$0xff]
        %v2232 = vld [vmem:[%s708 + $0x99] sm:$0xff]
        %v2233 = vld [vmem:[%s708 + $0xa9] sm:$0xff]
        %v2234 = vld [vmem:[%s708 + $0xb1] sm:$0xff]
        %v2235 = vld [vmem:[%s708 + $0xc1] sm:$0xff]
        %v2236 = vld [vmem:[%s708 + $0xc9] sm:$0xff]
        %v2237 = vld [vmem:[%s708 + $0xd9] sm:$0xff]
        %v2238 = vld [vmem:[%s708 + $0xe1] sm:$0xff]
        %v2239 = vld [vmem:[%s708 + $0xf1] sm:$0xff]
        %v2240 = vld [vmem:[%s708 + $0xf9] sm:$0xff]
        %v2241 = vld [vmem:[%s708 + $0x109] sm:$0xff]
        %v2242 = vld [vmem:[%s708 + $0x111] sm:$0xff]
        %v2243 = vld [vmem:[%s708 + $0x121] sm:$0xff]
        %v2244 = vld [vmem:[%s708 + $0x129] sm:$0xff]
        %v2245 = vld [vmem:[%s708 + $0x139] sm:$0xff]
        %v2246 = vld [vmem:[%s708 + $0x141] sm:$0xff]
        %v2247 = vld [vmem:[%s708 + $0x151] sm:$0xff]
        %v2248 = vld [vmem:[%s708 + $0x159] sm:$0xff]
        %v2249 = vld [vmem:[%s708 + $0x169] sm:$0xff]
        %v2250 = vld [vmem:[%s708 + $0x171] sm:$0xff]
        %v2251 = vld [vmem:[%s708 + $0x2] sm:$0xff]
        %v2252 = vld [vmem:[%s708 + $0xa] sm:$0xff]
        %v2253 = vld [vmem:[%s708 + $0x1a] sm:$0xff]
        %v2254 = vld [vmem:[%s708 + $0x22] sm:$0xff]
        %v2255 = vld [vmem:[%s708 + $0x32] sm:$0xff]
        %v2256 = vld [vmem:[%s708 + $0x3a] sm:$0xff]
        %v2257 = vld [vmem:[%s708 + $0x4a] sm:$0xff]
        %v2258 = vld [vmem:[%s708 + $0x52] sm:$0xff]
        %v2259 = vld [vmem:[%s708 + $0x62] sm:$0xff]
        %v2260 = vld [vmem:[%s708 + $0x6a] sm:$0xff]
        %v2261 = vld [vmem:[%s708 + $0x7a] sm:$0xff]
        %v2262 = vld [vmem:[%s708 + $0x82] sm:$0xff]
        %v2263 = vld [vmem:[%s708 + $0x92] sm:$0xff]
        %v2264 = vld [vmem:[%s708 + $0x9a] sm:$0xff]
        %v2265 = vld [vmem:[%s708 + $0xaa] sm:$0xff]
        %v2266 = vld [vmem:[%s708 + $0xb2] sm:$0xff]
        %v2267 = vld [vmem:[%s708 + $0xc2] sm:$0xff]
        %v2268 = vld [vmem:[%s708 + $0xca] sm:$0xff]
        %v2269 = vld [vmem:[%s708 + $0xda] sm:$0xff]
        %v2270 = vld [vmem:[%s708 + $0xe2] sm:$0xff]
        %v2271 = vld [vmem:[%s708 + $0xf2] sm:$0xff]
        %v2272 = vld [vmem:[%s708 + $0xfa] sm:$0xff]
        %v2273 = vld [vmem:[%s708 + $0x10a] sm:$0xff]
        %v2274 = vld [vmem:[%s708 + $0x112] sm:$0xff]
        %v2275 = vld [vmem:[%s708 + $0x122] sm:$0xff]
        %v2276 = vld [vmem:[%s708 + $0x12a] sm:$0xff]
        %v2277 = vld [vmem:[%s708 + $0x13a] sm:$0xff]
        %v2278 = vld [vmem:[%s708 + $0x142] sm:$0xff]
        %v2279 = vld [vmem:[%s708 + $0x152] sm:$0xff]
        %v2280 = vld [vmem:[%s708 + $0x15a] sm:$0xff]
        %v2281 = vld [vmem:[%s708 + $0x16a] sm:$0xff]
        %v2282 = vld [vmem:[%s708 + $0x172] sm:$0xff]
        %v2283 = vld [vmem:[%s738] sm:$0xff]
        %v2284 = vld [vmem:[%s738 + $0x8] sm:$0xff]
        %v2285 = vld [vmem:[%s738 + $0x18] sm:$0xff]
        %v2286 = vld [vmem:[%s738 + $0x20] sm:$0xff]
        %v2287 = vld [vmem:[%s738 + $0x30] sm:$0xff]
        %v2288 = vld [vmem:[%s738 + $0x38] sm:$0xff]
        %v2289 = vld [vmem:[%s738 + $0x48] sm:$0xff]
        %v2290 = vld [vmem:[%s738 + $0x50] sm:$0xff]
        %v2291 = vld [vmem:[%s738 + $0x60] sm:$0xff]
        %v2292 = vld [vmem:[%s738 + $0x68] sm:$0xff]
        %v2293 = vld [vmem:[%s738 + $0x78] sm:$0xff]
        %v2294 = vld [vmem:[%s738 + $0x80] sm:$0xff]
        %v2295 = vld [vmem:[%s738 + $0x90] sm:$0xff]
        %v2296 = vld [vmem:[%s738 + $0x98] sm:$0xff]
        %v2297 = vld [vmem:[%s738 + $0xa8] sm:$0xff]
        %v2298 = vld [vmem:[%s738 + $0xb0] sm:$0xff]
        %v2299 = vld [vmem:[%s738 + $0xc0] sm:$0xff]
        %v2300 = vld [vmem:[%s738 + $0xc8] sm:$0xff]
        %v2301 = vld [vmem:[%s738 + $0xd8] sm:$0xff]
        %v2302 = vld [vmem:[%s738 + $0xe0] sm:$0xff]
        %v2303 = vld [vmem:[%s738 + $0xf0] sm:$0xff]
        %v2304 = vld [vmem:[%s738 + $0xf8] sm:$0xff]
        %v2305 = vld [vmem:[%s738 + $0x108] sm:$0xff]
        %v2306 = vld [vmem:[%s738 + $0x110] sm:$0xff]
        %v2307 = vld [vmem:[%s738 + $0x120] sm:$0xff]
        %v2308 = vld [vmem:[%s738 + $0x128] sm:$0xff]
        %v2309 = vld [vmem:[%s738 + $0x138] sm:$0xff]
        %v2310 = vld [vmem:[%s738 + $0x140] sm:$0xff]
        %v2311 = vld [vmem:[%s738 + $0x150] sm:$0xff]
        %v2312 = vld [vmem:[%s738 + $0x158] sm:$0xff]
        %v2313 = vld [vmem:[%s738 + $0x168] sm:$0xff]
        %v2314 = vld [vmem:[%s738 + $0x170] sm:$0xff]
        %v2315 = vld [vmem:[%s738 + $0x1] sm:$0xff]
        %v2316 = vld [vmem:[%s738 + $0x9] sm:$0xff]
        %v2317 = vld [vmem:[%s738 + $0x19] sm:$0xff]
        %v2318 = vld [vmem:[%s738 + $0x21] sm:$0xff]
        %v2319 = vld [vmem:[%s738 + $0x31] sm:$0xff]
        %v2320 = vld [vmem:[%s738 + $0x39] sm:$0xff]
        %v2321 = vld [vmem:[%s738 + $0x49] sm:$0xff]
        %v2322 = vld [vmem:[%s738 + $0x51] sm:$0xff]
        %v2323 = vld [vmem:[%s738 + $0x61] sm:$0xff]
        %v2324 = vld [vmem:[%s738 + $0x69] sm:$0xff]
        %v2325 = vld [vmem:[%s738 + $0x79] sm:$0xff]
        %v2326 = vld [vmem:[%s738 + $0x81] sm:$0xff]
        %v2327 = vld [vmem:[%s738 + $0x91] sm:$0xff]
        %v2328 = vld [vmem:[%s738 + $0x99] sm:$0xff]
        %v2329 = vld [vmem:[%s738 + $0xa9] sm:$0xff]
        %v2330 = vld [vmem:[%s738 + $0xb1] sm:$0xff]
        %v2331 = vld [vmem:[%s738 + $0xc1] sm:$0xff]
        %v2332 = vld [vmem:[%s738 + $0xc9] sm:$0xff]
        %v2333 = vld [vmem:[%s738 + $0xd9] sm:$0xff]
        %v2334 = vld [vmem:[%s738 + $0xe1] sm:$0xff]
        %v2335 = vld [vmem:[%s738 + $0xf1] sm:$0xff]
        %v2336 = vld [vmem:[%s738 + $0xf9] sm:$0xff]
        %v2337 = vld [vmem:[%s738 + $0x109] sm:$0xff]
        %v2338 = vld [vmem:[%s738 + $0x111] sm:$0xff]
        %v2339 = vld [vmem:[%s738 + $0x121] sm:$0xff]
        %v2340 = vld [vmem:[%s738 + $0x129] sm:$0xff]
        %v2341 = vld [vmem:[%s738 + $0x139] sm:$0xff]
        %v2342 = vld [vmem:[%s738 + $0x141] sm:$0xff]
        %v2343 = vld [vmem:[%s738 + $0x151] sm:$0xff]
        %v2344 = vld [vmem:[%s738 + $0x159] sm:$0xff]
        %v2345 = vld [vmem:[%s738 + $0x169] sm:$0xff]
        %v2346 = vld [vmem:[%s738 + $0x171] sm:$0xff]
        %v2347 = vld [vmem:[%s738 + $0x2] sm:$0xff]
        %v2348 = vld [vmem:[%s738 + $0xa] sm:$0xff]
        %v2349 = vld [vmem:[%s738 + $0x1a] sm:$0xff]
        %v2350 = vld [vmem:[%s738 + $0x22] sm:$0xff]
        %v2351 = vld [vmem:[%s738 + $0x32] sm:$0xff]
        %v2352 = vld [vmem:[%s738 + $0x3a] sm:$0xff]
        %v2353 = vld [vmem:[%s738 + $0x4a] sm:$0xff]
        %v2354 = vld [vmem:[%s738 + $0x52] sm:$0xff]
        %v2355 = vld [vmem:[%s738 + $0x62] sm:$0xff]
        %v2356 = vld [vmem:[%s738 + $0x6a] sm:$0xff]
        %v2357 = vld [vmem:[%s738 + $0x7a] sm:$0xff]
        %v2358 = vld [vmem:[%s738 + $0x82] sm:$0xff]
        %v2359 = vld [vmem:[%s738 + $0x92] sm:$0xff]
        %v2360 = vld [vmem:[%s738 + $0x9a] sm:$0xff]
        %v2361 = vld [vmem:[%s738 + $0xaa] sm:$0xff]
        %v2362 = vld [vmem:[%s738 + $0xb2] sm:$0xff]
        %v2363 = vld [vmem:[%s738 + $0xc2] sm:$0xff]
        %v2364 = vld [vmem:[%s738 + $0xca] sm:$0xff]
        %v2365 = vld [vmem:[%s738 + $0xda] sm:$0xff]
        %v2366 = vld [vmem:[%s738 + $0xe2] sm:$0xff]
        %v2367 = vld [vmem:[%s738 + $0xf2] sm:$0xff]
        %v2368 = vld [vmem:[%s738 + $0xfa] sm:$0xff]
        %v2369 = vld [vmem:[%s738 + $0x10a] sm:$0xff]
        %v2370 = vld [vmem:[%s738 + $0x112] sm:$0xff]
        %v2371 = vld [vmem:[%s738 + $0x122] sm:$0xff]
        %v2372 = vld [vmem:[%s738 + $0x12a] sm:$0xff]
        %v2373 = vld [vmem:[%s738 + $0x13a] sm:$0xff]
        %v2374 = vld [vmem:[%s738 + $0x142] sm:$0xff]
        %v2375 = vld [vmem:[%s738 + $0x152] sm:$0xff]
        %v2376 = vld [vmem:[%s738 + $0x15a] sm:$0xff]
        %v2377 = vld [vmem:[%s738 + $0x16a] sm:$0xff]
        %v2378 = vld [vmem:[%s738 + $0x172] sm:$0xff]
        %2411 = vrot.lane.b32.xlu0 %v2123, 8
        %v2412 = vpop.permute.xlu0 %2411
        %2413 = vrot.lane.b32.xlu0 %v2124, 8
        %v2414 = vpop.permute.xlu0 %2413
        %2415 = vrot.lane.b32.xlu0 %v2125, 8
        %v2416 = vpop.permute.xlu0 %2415
        %2417 = vrot.lane.b32.xlu0 %v2126, 8
        %v2418 = vpop.permute.xlu0 %2417
        %2419 = vrot.lane.b32.xlu0 %v2127, 8
        %v2420 = vpop.permute.xlu0 %2419
        %2421 = vrot.lane.b32.xlu0 %v2128, 8
        %v2422 = vpop.permute.xlu0 %2421
        %2423 = vrot.lane.b32.xlu0 %v2129, 8
        %v2424 = vpop.permute.xlu0 %2423
        %2425 = vrot.lane.b32.xlu0 %v2130, 8
        %v2426 = vpop.permute.xlu0 %2425
        %2427 = vrot.lane.b32.xlu0 %v2131, 8
        %v2428 = vpop.permute.xlu0 %2427
        %2429 = vrot.lane.b32.xlu0 %v2132, 8
        %v2430 = vpop.permute.xlu0 %2429
        %2431 = vrot.lane.b32.xlu0 %v2133, 8
        %v2432 = vpop.permute.xlu0 %2431
        %2433 = vrot.lane.b32.xlu0 %v2134, 8
        %v2434 = vpop.permute.xlu0 %2433
        %2435 = vrot.lane.b32.xlu0 %v2135, 8
        %v2436 = vpop.permute.xlu0 %2435
        %2437 = vrot.lane.b32.xlu0 %v2136, 8
        %v2438 = vpop.permute.xlu0 %2437
        %2439 = vrot.lane.b32.xlu0 %v2137, 8
        %v2440 = vpop.permute.xlu0 %2439
        %2441 = vrot.lane.b32.xlu0 %v2138, 8
        %v2442 = vpop.permute.xlu0 %2441
        %2443 = vrot.lane.b32.xlu0 %v2139, 8
        %v2444 = vpop.permute.xlu0 %2443
        %2445 = vrot.lane.b32.xlu0 %v2140, 8
        %v2446 = vpop.permute.xlu0 %2445
        %2447 = vrot.lane.b32.xlu0 %v2141, 8
        %v2448 = vpop.permute.xlu0 %2447
        %2449 = vrot.lane.b32.xlu0 %v2142, 8
        %v2450 = vpop.permute.xlu0 %2449
        %2451 = vrot.lane.b32.xlu0 %v2143, 8
        %v2452 = vpop.permute.xlu0 %2451
        %2453 = vrot.lane.b32.xlu0 %v2144, 8
        %v2454 = vpop.permute.xlu0 %2453
        %2455 = vrot.lane.b32.xlu0 %v2145, 8
        %v2456 = vpop.permute.xlu0 %2455
        %2457 = vrot.lane.b32.xlu0 %v2146, 8
        %v2458 = vpop.permute.xlu0 %2457
        %2459 = vrot.lane.b32.xlu0 %v2147, 8
        %v2460 = vpop.permute.xlu0 %2459
        %2461 = vrot.lane.b32.xlu0 %v2148, 8
        %v2462 = vpop.permute.xlu0 %2461
        %2463 = vrot.lane.b32.xlu0 %v2149, 8
        %v2464 = vpop.permute.xlu0 %2463
        %2465 = vrot.lane.b32.xlu0 %v2150, 8
        %v2466 = vpop.permute.xlu0 %2465
        %2467 = vrot.lane.b32.xlu0 %v2151, 8
        %v2468 = vpop.permute.xlu0 %2467
        %2469 = vrot.lane.b32.xlu0 %v2152, 8
        %v2470 = vpop.permute.xlu0 %2469
        %2471 = vrot.lane.b32.xlu0 %v2153, 8
        %v2472 = vpop.permute.xlu0 %2471
        %2473 = vrot.lane.b32.xlu0 %v2154, 8
        %v2474 = vpop.permute.xlu0 %2473
        %2539 = vrot.lane.b32.xlu0 %v2155, 16
        %v2540 = vpop.permute.xlu0 %2539
        %2541 = vrot.lane.b32.xlu0 %v2156, 16
        %v2542 = vpop.permute.xlu0 %2541
        %2543 = vrot.lane.b32.xlu0 %v2157, 16
        %v2544 = vpop.permute.xlu0 %2543
        %2545 = vrot.lane.b32.xlu0 %v2158, 16
        %v2546 = vpop.permute.xlu0 %2545
        %2547 = vrot.lane.b32.xlu0 %v2159, 16
        %v2548 = vpop.permute.xlu0 %2547
        %2549 = vrot.lane.b32.xlu0 %v2160, 16
        %v2550 = vpop.permute.xlu0 %2549
        %2551 = vrot.lane.b32.xlu0 %v2161, 16
        %v2552 = vpop.permute.xlu0 %2551
        %2553 = vrot.lane.b32.xlu0 %v2162, 16
        %v2554 = vpop.permute.xlu0 %2553
        %2555 = vrot.lane.b32.xlu0 %v2163, 16
        %v2556 = vpop.permute.xlu0 %2555
        %2557 = vrot.lane.b32.xlu0 %v2164, 16
        %v2558 = vpop.permute.xlu0 %2557
        %2559 = vrot.lane.b32.xlu0 %v2165, 16
        %v2560 = vpop.permute.xlu0 %2559
        %2561 = vrot.lane.b32.xlu0 %v2166, 16
        %v2562 = vpop.permute.xlu0 %2561
        %2563 = vrot.lane.b32.xlu0 %v2167, 16
        %v2564 = vpop.permute.xlu0 %2563
        %2565 = vrot.lane.b32.xlu0 %v2168, 16
        %v2566 = vpop.permute.xlu0 %2565
        %2567 = vrot.lane.b32.xlu0 %v2169, 16
        %v2568 = vpop.permute.xlu0 %2567
        %2569 = vrot.lane.b32.xlu0 %v2170, 16
        %v2570 = vpop.permute.xlu0 %2569
        %2571 = vrot.lane.b32.xlu0 %v2171, 16
        %v2572 = vpop.permute.xlu0 %2571
        %2573 = vrot.lane.b32.xlu0 %v2172, 16
        %v2574 = vpop.permute.xlu0 %2573
        %2575 = vrot.lane.b32.xlu0 %v2173, 16
        %v2576 = vpop.permute.xlu0 %2575
        %2577 = vrot.lane.b32.xlu0 %v2174, 16
        %v2578 = vpop.permute.xlu0 %2577
        %2579 = vrot.lane.b32.xlu0 %v2175, 16
        %v2580 = vpop.permute.xlu0 %2579
        %2581 = vrot.lane.b32.xlu0 %v2176, 16
        %v2582 = vpop.permute.xlu0 %2581
        %2583 = vrot.lane.b32.xlu0 %v2177, 16
        %v2584 = vpop.permute.xlu0 %2583
        %2585 = vrot.lane.b32.xlu0 %v2178, 16
        %v2586 = vpop.permute.xlu0 %2585
        %2587 = vrot.lane.b32.xlu0 %v2179, 16
        %v2588 = vpop.permute.xlu0 %2587
        %2589 = vrot.lane.b32.xlu0 %v2180, 16
        %v2590 = vpop.permute.xlu0 %2589
        %2591 = vrot.lane.b32.xlu0 %v2181, 16
        %v2592 = vpop.permute.xlu0 %2591
        %2593 = vrot.lane.b32.xlu0 %v2182, 16
        %v2594 = vpop.permute.xlu0 %2593
        %2595 = vrot.lane.b32.xlu0 %v2183, 16
        %v2596 = vpop.permute.xlu0 %2595
        %2597 = vrot.lane.b32.xlu0 %v2184, 16
        %v2598 = vpop.permute.xlu0 %2597
        %2599 = vrot.lane.b32.xlu0 %v2185, 16
        %v2600 = vpop.permute.xlu0 %2599
        %2601 = vrot.lane.b32.xlu0 %v2186, 16
        %v2602 = vpop.permute.xlu0 %2601
        %2667 = vrot.lane.b32.xlu0 %v2187, 24
        %v2668 = vpop.permute.xlu0 %2667
        %2669 = vrot.lane.b32.xlu0 %v2188, 24
        %v2670 = vpop.permute.xlu0 %2669
        %2671 = vrot.lane.b32.xlu0 %v2189, 24
        %v2672 = vpop.permute.xlu0 %2671
        %2673 = vrot.lane.b32.xlu0 %v2190, 24
        %v2674 = vpop.permute.xlu0 %2673
        %2675 = vrot.lane.b32.xlu0 %v2191, 24
        %v2676 = vpop.permute.xlu0 %2675
        %2677 = vrot.lane.b32.xlu0 %v2192, 24
        %v2678 = vpop.permute.xlu0 %2677
        %2679 = vrot.lane.b32.xlu0 %v2193, 24
        %v2680 = vpop.permute.xlu0 %2679
        %2681 = vrot.lane.b32.xlu0 %v2194, 24
        %v2682 = vpop.permute.xlu0 %2681
        %2683 = vrot.lane.b32.xlu0 %v2195, 24
        %v2684 = vpop.permute.xlu0 %2683
        %2685 = vrot.lane.b32.xlu0 %v2196, 24
        %v2686 = vpop.permute.xlu0 %2685
        %2687 = vrot.lane.b32.xlu0 %v2197, 24
        %v2688 = vpop.permute.xlu0 %2687
        %2689 = vrot.lane.b32.xlu0 %v2198, 24
        %v2690 = vpop.permute.xlu0 %2689
        %2691 = vrot.lane.b32.xlu0 %v2199, 24
        %v2692 = vpop.permute.xlu0 %2691
        %2693 = vrot.lane.b32.xlu0 %v2200, 24
        %v2694 = vpop.permute.xlu0 %2693
        %2695 = vrot.lane.b32.xlu0 %v2201, 24
        %v2696 = vpop.permute.xlu0 %2695
        %2697 = vrot.lane.b32.xlu0 %v2202, 24
        %v2698 = vpop.permute.xlu0 %2697
        %2699 = vrot.lane.b32.xlu0 %v2203, 24
        %v2700 = vpop.permute.xlu0 %2699
        %2701 = vrot.lane.b32.xlu0 %v2204, 24
        %v2702 = vpop.permute.xlu0 %2701
        %2703 = vrot.lane.b32.xlu0 %v2205, 24
        %v2704 = vpop.permute.xlu0 %2703
        %2705 = vrot.lane.b32.xlu0 %v2206, 24
        %v2706 = vpop.permute.xlu0 %2705
        %2707 = vrot.lane.b32.xlu0 %v2207, 24
        %v2708 = vpop.permute.xlu0 %2707
        %2709 = vrot.lane.b32.xlu0 %v2208, 24
        %v2710 = vpop.permute.xlu0 %2709
        %2711 = vrot.lane.b32.xlu0 %v2209, 24
        %v2712 = vpop.permute.xlu0 %2711
        %2713 = vrot.lane.b32.xlu0 %v2210, 24
        %v2714 = vpop.permute.xlu0 %2713
        %2715 = vrot.lane.b32.xlu0 %v2211, 24
        %v2716 = vpop.permute.xlu0 %2715
        %2717 = vrot.lane.b32.xlu0 %v2212, 24
        %v2718 = vpop.permute.xlu0 %2717
        %2719 = vrot.lane.b32.xlu0 %v2213, 24
        %v2720 = vpop.permute.xlu0 %2719
        %2721 = vrot.lane.b32.xlu0 %v2214, 24
        %v2722 = vpop.permute.xlu0 %2721
        %2723 = vrot.lane.b32.xlu0 %v2215, 24
        %v2724 = vpop.permute.xlu0 %2723
        %2725 = vrot.lane.b32.xlu0 %v2216, 24
        %v2726 = vpop.permute.xlu0 %2725
        %2727 = vrot.lane.b32.xlu0 %v2217, 24
        %v2728 = vpop.permute.xlu0 %2727
        %2729 = vrot.lane.b32.xlu0 %v2218, 24
        %v2730 = vpop.permute.xlu0 %2729
        %2795 = vrot.lane.b32.xlu0 %v2219, 32
        %v2796 = vpop.permute.xlu0 %2795
        %2797 = vrot.lane.b32.xlu0 %v2220, 32
        %v2798 = vpop.permute.xlu0 %2797
        %2799 = vrot.lane.b32.xlu0 %v2221, 32
        %v2800 = vpop.permute.xlu0 %2799
        %2801 = vrot.lane.b32.xlu0 %v2222, 32
        %v2802 = vpop.permute.xlu0 %2801
        %2803 = vrot.lane.b32.xlu0 %v2223, 32
        %v2804 = vpop.permute.xlu0 %2803
        %2805 = vrot.lane.b32.xlu0 %v2224, 32
        %v2806 = vpop.permute.xlu0 %2805
        %2807 = vrot.lane.b32.xlu0 %v2225, 32
        %v2808 = vpop.permute.xlu0 %2807
        %2809 = vrot.lane.b32.xlu0 %v2226, 32
        %v2810 = vpop.permute.xlu0 %2809
        %2811 = vrot.lane.b32.xlu0 %v2227, 32
        %v2812 = vpop.permute.xlu0 %2811
        %2813 = vrot.lane.b32.xlu0 %v2228, 32
        %v2814 = vpop.permute.xlu0 %2813
        %2815 = vrot.lane.b32.xlu0 %v2229, 32
        %v2816 = vpop.permute.xlu0 %2815
        %2817 = vrot.lane.b32.xlu0 %v2230, 32
        %v2818 = vpop.permute.xlu0 %2817
        %2819 = vrot.lane.b32.xlu0 %v2231, 32
        %v2820 = vpop.permute.xlu0 %2819
        %2821 = vrot.lane.b32.xlu0 %v2232, 32
        %v2822 = vpop.permute.xlu0 %2821
        %2823 = vrot.lane.b32.xlu0 %v2233, 32
        %v2824 = vpop.permute.xlu0 %2823
        %2825 = vrot.lane.b32.xlu0 %v2234, 32
        %v2826 = vpop.permute.xlu0 %2825
        %2827 = vrot.lane.b32.xlu0 %v2235, 32
        %v2828 = vpop.permute.xlu0 %2827
        %2829 = vrot.lane.b32.xlu0 %v2236, 32
        %v2830 = vpop.permute.xlu0 %2829
        %2831 = vrot.lane.b32.xlu0 %v2237, 32
        %v2832 = vpop.permute.xlu0 %2831
        %2833 = vrot.lane.b32.xlu0 %v2238, 32
        %v2834 = vpop.permute.xlu0 %2833
        %2835 = vrot.lane.b32.xlu0 %v2239, 32
        %v2836 = vpop.permute.xlu0 %2835
        %2837 = vrot.lane.b32.xlu0 %v2240, 32
        %v2838 = vpop.permute.xlu0 %2837
        %2839 = vrot.lane.b32.xlu0 %v2241, 32
        %v2840 = vpop.permute.xlu0 %2839
        %2841 = vrot.lane.b32.xlu0 %v2242, 32
        %v2842 = vpop.permute.xlu0 %2841
        %2843 = vrot.lane.b32.xlu0 %v2243, 32
        %v2844 = vpop.permute.xlu0 %2843
        %2845 = vrot.lane.b32.xlu0 %v2244, 32
        %v2846 = vpop.permute.xlu0 %2845
        %2847 = vrot.lane.b32.xlu0 %v2245, 32
        %v2848 = vpop.permute.xlu0 %2847
        %2849 = vrot.lane.b32.xlu0 %v2246, 32
        %v2850 = vpop.permute.xlu0 %2849
        %2851 = vrot.lane.b32.xlu0 %v2247, 32
        %v2852 = vpop.permute.xlu0 %2851
        %2853 = vrot.lane.b32.xlu0 %v2248, 32
        %v2854 = vpop.permute.xlu0 %2853
        %2855 = vrot.lane.b32.xlu0 %v2249, 32
        %v2856 = vpop.permute.xlu0 %2855
        %2857 = vrot.lane.b32.xlu0 %v2250, 32
        %v2858 = vpop.permute.xlu0 %2857
        %2923 = vrot.lane.b32.xlu0 %v2251, 40
        %v2924 = vpop.permute.xlu0 %2923
        %2925 = vrot.lane.b32.xlu0 %v2252, 40
        %v2926 = vpop.permute.xlu0 %2925
        %2927 = vrot.lane.b32.xlu0 %v2253, 40
        %v2928 = vpop.permute.xlu0 %2927
        %2929 = vrot.lane.b32.xlu0 %v2254, 40
        %v2930 = vpop.permute.xlu0 %2929
        %2931 = vrot.lane.b32.xlu0 %v2255, 40
        %v2932 = vpop.permute.xlu0 %2931
        %2933 = vrot.lane.b32.xlu0 %v2256, 40
        %v2934 = vpop.permute.xlu0 %2933
        %2935 = vrot.lane.b32.xlu0 %v2257, 40
        %v2936 = vpop.permute.xlu0 %2935
        %2937 = vrot.lane.b32.xlu0 %v2258, 40
        %v2938 = vpop.permute.xlu0 %2937
        %2939 = vrot.lane.b32.xlu0 %v2259, 40
        %v2940 = vpop.permute.xlu0 %2939
        %2941 = vrot.lane.b32.xlu0 %v2260, 40
        %v2942 = vpop.permute.xlu0 %2941
        %2943 = vrot.lane.b32.xlu0 %v2261, 40
        %v2944 = vpop.permute.xlu0 %2943
        %2945 = vrot.lane.b32.xlu0 %v2262, 40
        %v2946 = vpop.permute.xlu0 %2945
        %2947 = vrot.lane.b32.xlu0 %v2263, 40
        %v2948 = vpop.permute.xlu0 %2947
        %2949 = vrot.lane.b32.xlu0 %v2264, 40
        %v2950 = vpop.permute.xlu0 %2949
        %2951 = vrot.lane.b32.xlu0 %v2265, 40
        %v2952 = vpop.permute.xlu0 %2951
        %2953 = vrot.lane.b32.xlu0 %v2266, 40
        %v2954 = vpop.permute.xlu0 %2953
        %2955 = vrot.lane.b32.xlu0 %v2267, 40
        %v2956 = vpop.permute.xlu0 %2955
        %2957 = vrot.lane.b32.xlu0 %v2268, 40
        %v2958 = vpop.permute.xlu0 %2957
        %2959 = vrot.lane.b32.xlu0 %v2269, 40
        %v2960 = vpop.permute.xlu0 %2959
        %2961 = vrot.lane.b32.xlu0 %v2270, 40
        %v2962 = vpop.permute.xlu0 %2961
        %2963 = vrot.lane.b32.xlu0 %v2271, 40
        %v2964 = vpop.permute.xlu0 %2963
        %2965 = vrot.lane.b32.xlu0 %v2272, 40
        %v2966 = vpop.permute.xlu0 %2965
        %2967 = vrot.lane.b32.xlu0 %v2273, 40
        %v2968 = vpop.permute.xlu0 %2967
        %2969 = vrot.lane.b32.xlu0 %v2274, 40
        %v2970 = vpop.permute.xlu0 %2969
        %2971 = vrot.lane.b32.xlu0 %v2275, 40
        %v2972 = vpop.permute.xlu0 %2971
        %2973 = vrot.lane.b32.xlu0 %v2276, 40
        %v2974 = vpop.permute.xlu0 %2973
        %2975 = vrot.lane.b32.xlu0 %v2277, 40
        %v2976 = vpop.permute.xlu0 %2975
        %2977 = vrot.lane.b32.xlu0 %v2278, 40
        %v2978 = vpop.permute.xlu0 %2977
        %2979 = vrot.lane.b32.xlu0 %v2279, 40
        %v2980 = vpop.permute.xlu0 %2979
        %2981 = vrot.lane.b32.xlu0 %v2280, 40
        %v2982 = vpop.permute.xlu0 %2981
        %2983 = vrot.lane.b32.xlu0 %v2281, 40
        %v2984 = vpop.permute.xlu0 %2983
        %2985 = vrot.lane.b32.xlu0 %v2282, 40
        %v2986 = vpop.permute.xlu0 %2985
        %3051 = vrot.lane.b32.xlu0 %v2283, 48
        %v3052 = vpop.permute.xlu0 %3051
        %3053 = vrot.lane.b32.xlu0 %v2284, 48
        %v3054 = vpop.permute.xlu0 %3053
        %3055 = vrot.lane.b32.xlu0 %v2285, 48
        %v3056 = vpop.permute.xlu0 %3055
        %3057 = vrot.lane.b32.xlu0 %v2286, 48
        %v3058 = vpop.permute.xlu0 %3057
        %3059 = vrot.lane.b32.xlu0 %v2287, 48
        %v3060 = vpop.permute.xlu0 %3059
        %3061 = vrot.lane.b32.xlu0 %v2288, 48
        %v3062 = vpop.permute.xlu0 %3061
        %3063 = vrot.lane.b32.xlu0 %v2289, 48
        %v3064 = vpop.permute.xlu0 %3063
        %3065 = vrot.lane.b32.xlu0 %v2290, 48
        %v3066 = vpop.permute.xlu0 %3065
        %3067 = vrot.lane.b32.xlu0 %v2291, 48
        %v3068 = vpop.permute.xlu0 %3067
        %3069 = vrot.lane.b32.xlu0 %v2292, 48
        %v3070 = vpop.permute.xlu0 %3069
        %3071 = vrot.lane.b32.xlu0 %v2293, 48
        %v3072 = vpop.permute.xlu0 %3071
        %3073 = vrot.lane.b32.xlu0 %v2294, 48
        %v3074 = vpop.permute.xlu0 %3073
        %3075 = vrot.lane.b32.xlu0 %v2295, 48
        %v3076 = vpop.permute.xlu0 %3075
        %3077 = vrot.lane.b32.xlu0 %v2296, 48
        %v3078 = vpop.permute.xlu0 %3077
        %3079 = vrot.lane.b32.xlu0 %v2297, 48
        %v3080 = vpop.permute.xlu0 %3079
        %3081 = vrot.lane.b32.xlu0 %v2298, 48
        %v3082 = vpop.permute.xlu0 %3081
        %3083 = vrot.lane.b32.xlu0 %v2299, 48
        %v3084 = vpop.permute.xlu0 %3083
        %3085 = vrot.lane.b32.xlu0 %v2300, 48
        %v3086 = vpop.permute.xlu0 %3085
        %3087 = vrot.lane.b32.xlu0 %v2301, 48
        %v3088 = vpop.permute.xlu0 %3087
        %3089 = vrot.lane.b32.xlu0 %v2302, 48
        %v3090 = vpop.permute.xlu0 %3089
        %3091 = vrot.lane.b32.xlu0 %v2303, 48
        %v3092 = vpop.permute.xlu0 %3091
        %3093 = vrot.lane.b32.xlu0 %v2304, 48
        %v3094 = vpop.permute.xlu0 %3093
        %3095 = vrot.lane.b32.xlu0 %v2305, 48
        %v3096 = vpop.permute.xlu0 %3095
        %3097 = vrot.lane.b32.xlu0 %v2306, 48
        %v3098 = vpop.permute.xlu0 %3097
        %3099 = vrot.lane.b32.xlu0 %v2307, 48
        %v3100 = vpop.permute.xlu0 %3099
        %3101 = vrot.lane.b32.xlu0 %v2308, 48
        %v3102 = vpop.permute.xlu0 %3101
        %3103 = vrot.lane.b32.xlu0 %v2309, 48
        %v3104 = vpop.permute.xlu0 %3103
        %3105 = vrot.lane.b32.xlu0 %v2310, 48
        %v3106 = vpop.permute.xlu0 %3105
        %3107 = vrot.lane.b32.xlu0 %v2311, 48
        %v3108 = vpop.permute.xlu0 %3107
        %3109 = vrot.lane.b32.xlu0 %v2312, 48
        %v3110 = vpop.permute.xlu0 %3109
        %3111 = vrot.lane.b32.xlu0 %v2313, 48
        %v3112 = vpop.permute.xlu0 %3111
        %3113 = vrot.lane.b32.xlu0 %v2314, 48
        %v3114 = vpop.permute.xlu0 %3113
        %3179 = vrot.lane.b32.xlu0 %v2315, 56
        %v3180 = vpop.permute.xlu0 %3179
        %3181 = vrot.lane.b32.xlu0 %v2316, 56
        %v3182 = vpop.permute.xlu0 %3181
        %3183 = vrot.lane.b32.xlu0 %v2317, 56
        %v3184 = vpop.permute.xlu0 %3183
        %3185 = vrot.lane.b32.xlu0 %v2318, 56
        %v3186 = vpop.permute.xlu0 %3185
        %3187 = vrot.lane.b32.xlu0 %v2319, 56
        %v3188 = vpop.permute.xlu0 %3187
        %3189 = vrot.lane.b32.xlu0 %v2320, 56
        %v3190 = vpop.permute.xlu0 %3189
        %3191 = vrot.lane.b32.xlu0 %v2321, 56
        %v3192 = vpop.permute.xlu0 %3191
        %3193 = vrot.lane.b32.xlu0 %v2322, 56
        %v3194 = vpop.permute.xlu0 %3193
        %3195 = vrot.lane.b32.xlu0 %v2323, 56
        %v3196 = vpop.permute.xlu0 %3195
        %3197 = vrot.lane.b32.xlu0 %v2324, 56
        %v3198 = vpop.permute.xlu0 %3197
        %3199 = vrot.lane.b32.xlu0 %v2325, 56
        %v3200 = vpop.permute.xlu0 %3199
        %3201 = vrot.lane.b32.xlu0 %v2326, 56
        %v3202 = vpop.permute.xlu0 %3201
        %3203 = vrot.lane.b32.xlu0 %v2327, 56
        %v3204 = vpop.permute.xlu0 %3203
        %3205 = vrot.lane.b32.xlu0 %v2328, 56
        %v3206 = vpop.permute.xlu0 %3205
        %3207 = vrot.lane.b32.xlu0 %v2329, 56
        %v3208 = vpop.permute.xlu0 %3207
        %3209 = vrot.lane.b32.xlu0 %v2330, 56
        %v3210 = vpop.permute.xlu0 %3209
        %3211 = vrot.lane.b32.xlu0 %v2331, 56
        %v3212 = vpop.permute.xlu0 %3211
        %3213 = vrot.lane.b32.xlu0 %v2332, 56
        %v3214 = vpop.permute.xlu0 %3213
        %3215 = vrot.lane.b32.xlu0 %v2333, 56
        %v3216 = vpop.permute.xlu0 %3215
        %3217 = vrot.lane.b32.xlu0 %v2334, 56
        %v3218 = vpop.permute.xlu0 %3217
        %3219 = vrot.lane.b32.xlu0 %v2335, 56
        %v3220 = vpop.permute.xlu0 %3219
        %3221 = vrot.lane.b32.xlu0 %v2336, 56
        %v3222 = vpop.permute.xlu0 %3221
        %3223 = vrot.lane.b32.xlu0 %v2337, 56
        %v3224 = vpop.permute.xlu0 %3223
        %3225 = vrot.lane.b32.xlu0 %v2338, 56
        %v3226 = vpop.permute.xlu0 %3225
        %3227 = vrot.lane.b32.xlu0 %v2339, 56
        %v3228 = vpop.permute.xlu0 %3227
        %3229 = vrot.lane.b32.xlu0 %v2340, 56
        %v3230 = vpop.permute.xlu0 %3229
        %3231 = vrot.lane.b32.xlu0 %v2341, 56
        %v3232 = vpop.permute.xlu0 %3231
        %3233 = vrot.lane.b32.xlu0 %v2342, 56
        %v3234 = vpop.permute.xlu0 %3233
        %3235 = vrot.lane.b32.xlu0 %v2343, 56
        %v3236 = vpop.permute.xlu0 %3235
        %3237 = vrot.lane.b32.xlu0 %v2344, 56
        %v3238 = vpop.permute.xlu0 %3237
        %3239 = vrot.lane.b32.xlu0 %v2345, 56
        %v3240 = vpop.permute.xlu0 %3239
        %3241 = vrot.lane.b32.xlu0 %v2346, 56
        %v3242 = vpop.permute.xlu0 %3241
        %3307 = vrot.lane.b32.xlu0 %v2347, 64
        %v3308 = vpop.permute.xlu0 %3307
        %3309 = vrot.lane.b32.xlu0 %v2348, 64
        %v3310 = vpop.permute.xlu0 %3309
        %3311 = vrot.lane.b32.xlu0 %v2349, 64
        %v3312 = vpop.permute.xlu0 %3311
        %3313 = vrot.lane.b32.xlu0 %v2350, 64
        %v3314 = vpop.permute.xlu0 %3313
        %3315 = vrot.lane.b32.xlu0 %v2351, 64
        %v3316 = vpop.permute.xlu0 %3315
        %3317 = vrot.lane.b32.xlu0 %v2352, 64
        %v3318 = vpop.permute.xlu0 %3317
        %3319 = vrot.lane.b32.xlu0 %v2353, 64
        %v3320 = vpop.permute.xlu0 %3319
        %3321 = vrot.lane.b32.xlu0 %v2354, 64
        %v3322 = vpop.permute.xlu0 %3321
        %3323 = vrot.lane.b32.xlu0 %v2355, 64
        %v3324 = vpop.permute.xlu0 %3323
        %3325 = vrot.lane.b32.xlu0 %v2356, 64
        %v3326 = vpop.permute.xlu0 %3325
        %3327 = vrot.lane.b32.xlu0 %v2357, 64
        %v3328 = vpop.permute.xlu0 %3327
        %3329 = vrot.lane.b32.xlu0 %v2358, 64
        %v3330 = vpop.permute.xlu0 %3329
        %3331 = vrot.lane.b32.xlu0 %v2359, 64
        %v3332 = vpop.permute.xlu0 %3331
        %3333 = vrot.lane.b32.xlu0 %v2360, 64
        %v3334 = vpop.permute.xlu0 %3333
        %3335 = vrot.lane.b32.xlu0 %v2361, 64
        %v3336 = vpop.permute.xlu0 %3335
        %3337 = vrot.lane.b32.xlu0 %v2362, 64
        %v3338 = vpop.permute.xlu0 %3337
        %3339 = vrot.lane.b32.xlu0 %v2363, 64
        %v3340 = vpop.permute.xlu0 %3339
        %3341 = vrot.lane.b32.xlu0 %v2364, 64
        %v3342 = vpop.permute.xlu0 %3341
        %3343 = vrot.lane.b32.xlu0 %v2365, 64
        %v3344 = vpop.permute.xlu0 %3343
        %3345 = vrot.lane.b32.xlu0 %v2366, 64
        %v3346 = vpop.permute.xlu0 %3345
        %3347 = vrot.lane.b32.xlu0 %v2367, 64
        %v3348 = vpop.permute.xlu0 %3347
        %3349 = vrot.lane.b32.xlu0 %v2368, 64
        %v3350 = vpop.permute.xlu0 %3349
        %3351 = vrot.lane.b32.xlu0 %v2369, 64
        %v3352 = vpop.permute.xlu0 %3351
        %3353 = vrot.lane.b32.xlu0 %v2370, 64
        %v3354 = vpop.permute.xlu0 %3353
        %3355 = vrot.lane.b32.xlu0 %v2371, 64
        %v3356 = vpop.permute.xlu0 %3355
        %3357 = vrot.lane.b32.xlu0 %v2372, 64
        %v3358 = vpop.permute.xlu0 %3357
        %3359 = vrot.lane.b32.xlu0 %v2373, 64
        %v3360 = vpop.permute.xlu0 %3359
        %3361 = vrot.lane.b32.xlu0 %v2374, 64
        %v3362 = vpop.permute.xlu0 %3361
        %3363 = vrot.lane.b32.xlu0 %v2375, 64
        %v3364 = vpop.permute.xlu0 %3363
        %3365 = vrot.lane.b32.xlu0 %v2376, 64
        %v3366 = vpop.permute.xlu0 %3365
        %3367 = vrot.lane.b32.xlu0 %v2377, 64
        %v3368 = vpop.permute.xlu0 %3367
        %3369 = vrot.lane.b32.xlu0 %v2378, 64
        %v3370 = vpop.permute.xlu0 %3369
        %v3403 = vsel %vm652, %v2091, %v2412
        %v3404 = vsel %vm652, %v2092, %v2414
        %v3405 = vsel %vm652, %v2093, %v2416
        %v3406 = vsel %vm652, %v2094, %v2418
        %v3407 = vsel %vm652, %v2095, %v2420
        %v3408 = vsel %vm652, %v2096, %v2422
        %v3409 = vsel %vm652, %v2097, %v2424
        %v3410 = vsel %vm652, %v2098, %v2426
        %v3411 = vsel %vm652, %v2099, %v2428
        %v3412 = vsel %vm652, %v2100, %v2430
        %v3413 = vsel %vm652, %v2101, %v2432
        %v3414 = vsel %vm652, %v2102, %v2434
        %v3415 = vsel %vm652, %v2103, %v2436
        %v3416 = vsel %vm652, %v2104, %v2438
        %v3417 = vsel %vm652, %v2105, %v2440
        %v3418 = vsel %vm652, %v2106, %v2442
        %v3419 = vsel %vm652, %v2107, %v2444
        %v3420 = vsel %vm652, %v2108, %v2446
        %v3421 = vsel %vm652, %v2109, %v2448
        %v3422 = vsel %vm652, %v2110, %v2450
        %v3423 = vsel %vm652, %v2111, %v2452
        %v3424 = vsel %vm652, %v2112, %v2454
        %v3425 = vsel %vm652, %v2113, %v2456
        %v3426 = vsel %vm652, %v2114, %v2458
        %v3427 = vsel %vm652, %v2115, %v2460
        %v3428 = vsel %vm652, %v2116, %v2462
        %v3429 = vsel %vm652, %v2117, %v2464
        %v3430 = vsel %vm652, %v2118, %v2466
        %v3431 = vsel %vm652, %v2119, %v2468
        %v3432 = vsel %vm652, %v2120, %v2470
        %v3433 = vsel %vm652, %v2121, %v2472
        %v3434 = vsel %vm652, %v2122, %v2474
        %v3435 = vsel %vm920, %v3403, %v2540
        %v3436 = vsel %vm920, %v3404, %v2542
        %v3437 = vsel %vm920, %v3405, %v2544
        %v3438 = vsel %vm920, %v3406, %v2546
        %v3439 = vsel %vm920, %v3407, %v2548
        %v3440 = vsel %vm920, %v3408, %v2550
        %v3441 = vsel %vm920, %v3409, %v2552
        %v3442 = vsel %vm920, %v3410, %v2554
        %v3443 = vsel %vm920, %v3411, %v2556
        %v3444 = vsel %vm920, %v3412, %v2558
        %v3445 = vsel %vm920, %v3413, %v2560
        %v3446 = vsel %vm920, %v3414, %v2562
        %v3447 = vsel %vm920, %v3415, %v2564
        %v3448 = vsel %vm920, %v3416, %v2566
        %v3449 = vsel %vm920, %v3417, %v2568
        %v3450 = vsel %vm920, %v3418, %v2570
        %v3451 = vsel %vm920, %v3419, %v2572
        %v3452 = vsel %vm920, %v3420, %v2574
        %v3453 = vsel %vm920, %v3421, %v2576
        %v3454 = vsel %vm920, %v3422, %v2578
        %v3455 = vsel %vm920, %v3423, %v2580
        %v3456 = vsel %vm920, %v3424, %v2582
        %v3457 = vsel %vm920, %v3425, %v2584
        %v3458 = vsel %vm920, %v3426, %v2586
        %v3459 = vsel %vm920, %v3427, %v2588
        %v3460 = vsel %vm920, %v3428, %v2590
        %v3461 = vsel %vm920, %v3429, %v2592
        %v3462 = vsel %vm920, %v3430, %v2594
        %v3463 = vsel %vm920, %v3431, %v2596
        %v3464 = vsel %vm920, %v3432, %v2598
        %v3465 = vsel %vm920, %v3433, %v2600
        %v3466 = vsel %vm920, %v3434, %v2602
        %v3467 = vsel %vm923, %v3435, %v2668
        %v3468 = vsel %vm923, %v3436, %v2670
        %v3469 = vsel %vm923, %v3437, %v2672
        %v3470 = vsel %vm923, %v3438, %v2674
        %v3471 = vsel %vm923, %v3439, %v2676
        %v3472 = vsel %vm923, %v3440, %v2678
        %v3473 = vsel %vm923, %v3441, %v2680
        %v3474 = vsel %vm923, %v3442, %v2682
        %v3475 = vsel %vm923, %v3443, %v2684
        %v3476 = vsel %vm923, %v3444, %v2686
        %v3477 = vsel %vm923, %v3445, %v2688
        %v3478 = vsel %vm923, %v3446, %v2690
        %v3479 = vsel %vm923, %v3447, %v2692
        %v3480 = vsel %vm923, %v3448, %v2694
        %v3481 = vsel %vm923, %v3449, %v2696
        %v3482 = vsel %vm923, %v3450, %v2698
        %v3483 = vsel %vm923, %v3451, %v2700
        %v3484 = vsel %vm923, %v3452, %v2702
        %v3485 = vsel %vm923, %v3453, %v2704
        %v3486 = vsel %vm923, %v3454, %v2706
        %v3487 = vsel %vm923, %v3455, %v2708
        %v3488 = vsel %vm923, %v3456, %v2710
        %v3489 = vsel %vm923, %v3457, %v2712
        %v3490 = vsel %vm923, %v3458, %v2714
        %v3491 = vsel %vm923, %v3459, %v2716
        %v3492 = vsel %vm923, %v3460, %v2718
        %v3493 = vsel %vm923, %v3461, %v2720
        %v3494 = vsel %vm923, %v3462, %v2722
        %v3495 = vsel %vm923, %v3463, %v2724
        %v3496 = vsel %vm923, %v3464, %v2726
        %v3497 = vsel %vm923, %v3465, %v2728
        %v3498 = vsel %vm923, %v3466, %v2730
        %v3499 = vsel %vm926, %v3467, %v2796
        %v3500 = vsel %vm926, %v3468, %v2798
        %v3501 = vsel %vm926, %v3469, %v2800
        %v3502 = vsel %vm926, %v3470, %v2802
        %v3503 = vsel %vm926, %v3471, %v2804
        %v3504 = vsel %vm926, %v3472, %v2806
        %v3505 = vsel %vm926, %v3473, %v2808
        %v3506 = vsel %vm926, %v3474, %v2810
        %v3507 = vsel %vm926, %v3475, %v2812
        %v3508 = vsel %vm926, %v3476, %v2814
        %v3509 = vsel %vm926, %v3477, %v2816
        %v3510 = vsel %vm926, %v3478, %v2818
        %v3511 = vsel %vm926, %v3479, %v2820
        %v3512 = vsel %vm926, %v3480, %v2822
        %v3513 = vsel %vm926, %v3481, %v2824
        %v3514 = vsel %vm926, %v3482, %v2826
        %v3515 = vsel %vm926, %v3483, %v2828
        %v3516 = vsel %vm926, %v3484, %v2830
        %v3517 = vsel %vm926, %v3485, %v2832
        %v3518 = vsel %vm926, %v3486, %v2834
        %v3519 = vsel %vm926, %v3487, %v2836
        %v3520 = vsel %vm926, %v3488, %v2838
        %v3521 = vsel %vm926, %v3489, %v2840
        %v3522 = vsel %vm926, %v3490, %v2842
        %v3523 = vsel %vm926, %v3491, %v2844
        %v3524 = vsel %vm926, %v3492, %v2846
        %v3525 = vsel %vm926, %v3493, %v2848
        %v3526 = vsel %vm926, %v3494, %v2850
        %v3527 = vsel %vm926, %v3495, %v2852
        %v3528 = vsel %vm926, %v3496, %v2854
        %v3529 = vsel %vm926, %v3497, %v2856
        %v3530 = vsel %vm926, %v3498, %v2858
        %v3531 = vsel %vm929, %v3499, %v2924
        %v3532 = vsel %vm929, %v3500, %v2926
        %v3533 = vsel %vm929, %v3501, %v2928
        %v3534 = vsel %vm929, %v3502, %v2930
        %v3535 = vsel %vm929, %v3503, %v2932
        %v3536 = vsel %vm929, %v3504, %v2934
        %v3537 = vsel %vm929, %v3505, %v2936
        %v3538 = vsel %vm929, %v3506, %v2938
        %v3539 = vsel %vm929, %v3507, %v2940
        %v3540 = vsel %vm929, %v3508, %v2942
        %v3541 = vsel %vm929, %v3509, %v2944
        %v3542 = vsel %vm929, %v3510, %v2946
        %v3543 = vsel %vm929, %v3511, %v2948
        %v3544 = vsel %vm929, %v3512, %v2950
        %v3545 = vsel %vm929, %v3513, %v2952
        %v3546 = vsel %vm929, %v3514, %v2954
        %v3547 = vsel %vm929, %v3515, %v2956
        %v3548 = vsel %vm929, %v3516, %v2958
        %v3549 = vsel %vm929, %v3517, %v2960
        %v3550 = vsel %vm929, %v3518, %v2962
        %v3551 = vsel %vm929, %v3519, %v2964
        %v3552 = vsel %vm929, %v3520, %v2966
        %v3553 = vsel %vm929, %v3521, %v2968
        %v3554 = vsel %vm929, %v3522, %v2970
        %v3555 = vsel %vm929, %v3523, %v2972
        %v3556 = vsel %vm929, %v3524, %v2974
        %v3557 = vsel %vm929, %v3525, %v2976
        %v3558 = vsel %vm929, %v3526, %v2978
        %v3559 = vsel %vm929, %v3527, %v2980
        %v3560 = vsel %vm929, %v3528, %v2982
        %v3561 = vsel %vm929, %v3529, %v2984
        %v3562 = vsel %vm929, %v3530, %v2986
        %v3563 = vsel %vm932, %v3531, %v3052
        %v3564 = vsel %vm932, %v3532, %v3054
        %v3565 = vsel %vm932, %v3533, %v3056
        %v3566 = vsel %vm932, %v3534, %v3058
        %v3567 = vsel %vm932, %v3535, %v3060
        %v3568 = vsel %vm932, %v3536, %v3062
        %v3569 = vsel %vm932, %v3537, %v3064
        %v3570 = vsel %vm932, %v3538, %v3066
        %v3571 = vsel %vm932, %v3539, %v3068
        %v3572 = vsel %vm932, %v3540, %v3070
        %v3573 = vsel %vm932, %v3541, %v3072
        %v3574 = vsel %vm932, %v3542, %v3074
        %v3575 = vsel %vm932, %v3543, %v3076
        %v3576 = vsel %vm932, %v3544, %v3078
        %v3577 = vsel %vm932, %v3545, %v3080
        %v3578 = vsel %vm932, %v3546, %v3082
        %v3579 = vsel %vm932, %v3547, %v3084
        %v3580 = vsel %vm932, %v3548, %v3086
        %v3581 = vsel %vm932, %v3549, %v3088
        %v3582 = vsel %vm932, %v3550, %v3090
        %v3583 = vsel %vm932, %v3551, %v3092
        %v3584 = vsel %vm932, %v3552, %v3094
        %v3585 = vsel %vm932, %v3553, %v3096
        %v3586 = vsel %vm932, %v3554, %v3098
        %v3587 = vsel %vm932, %v3555, %v3100
        %v3588 = vsel %vm932, %v3556, %v3102
        %v3589 = vsel %vm932, %v3557, %v3104
        %v3590 = vsel %vm932, %v3558, %v3106
        %v3591 = vsel %vm932, %v3559, %v3108
        %v3592 = vsel %vm932, %v3560, %v3110
        %v3593 = vsel %vm932, %v3561, %v3112
        %v3594 = vsel %vm932, %v3562, %v3114
        %v3595 = vsel %vm935, %v3563, %v3180
        %v3596 = vsel %vm935, %v3564, %v3182
        %v3597 = vsel %vm935, %v3565, %v3184
        %v3598 = vsel %vm935, %v3566, %v3186
        %v3599 = vsel %vm935, %v3567, %v3188
        %v3600 = vsel %vm935, %v3568, %v3190
        %v3601 = vsel %vm935, %v3569, %v3192
        %v3602 = vsel %vm935, %v3570, %v3194
        %v3603 = vsel %vm935, %v3571, %v3196
        %v3604 = vsel %vm935, %v3572, %v3198
        %v3605 = vsel %vm935, %v3573, %v3200
        %v3606 = vsel %vm935, %v3574, %v3202
        %v3607 = vsel %vm935, %v3575, %v3204
        %v3608 = vsel %vm935, %v3576, %v3206
        %v3609 = vsel %vm935, %v3577, %v3208
        %v3610 = vsel %vm935, %v3578, %v3210
        %v3611 = vsel %vm935, %v3579, %v3212
        %v3612 = vsel %vm935, %v3580, %v3214
        %v3613 = vsel %vm935, %v3581, %v3216
        %v3614 = vsel %vm935, %v3582, %v3218
        %v3615 = vsel %vm935, %v3583, %v3220
        %v3616 = vsel %vm935, %v3584, %v3222
        %v3617 = vsel %vm935, %v3585, %v3224
        %v3618 = vsel %vm935, %v3586, %v3226
        %v3619 = vsel %vm935, %v3587, %v3228
        %v3620 = vsel %vm935, %v3588, %v3230
        %v3621 = vsel %vm935, %v3589, %v3232
        %v3622 = vsel %vm935, %v3590, %v3234
        %v3623 = vsel %vm935, %v3591, %v3236
        %v3624 = vsel %vm935, %v3592, %v3238
        %v3625 = vsel %vm935, %v3593, %v3240
        %v3626 = vsel %vm935, %v3594, %v3242
        %v3627 = vsel %vm938, %v3595, %v3308
        %v3628 = vsel %vm938, %v3596, %v3310
        %v3629 = vsel %vm938, %v3597, %v3312
        %v3630 = vsel %vm938, %v3598, %v3314
        %v3631 = vsel %vm938, %v3599, %v3316
        %v3632 = vsel %vm938, %v3600, %v3318
        %v3633 = vsel %vm938, %v3601, %v3320
        %v3634 = vsel %vm938, %v3602, %v3322
        %v3635 = vsel %vm938, %v3603, %v3324
        %v3636 = vsel %vm938, %v3604, %v3326
        %v3637 = vsel %vm938, %v3605, %v3328
        %v3638 = vsel %vm938, %v3606, %v3330
        %v3639 = vsel %vm938, %v3607, %v3332
        %v3640 = vsel %vm938, %v3608, %v3334
        %v3641 = vsel %vm938, %v3609, %v3336
        %v3642 = vsel %vm938, %v3610, %v3338
        %v3643 = vsel %vm938, %v3611, %v3340
        %v3644 = vsel %vm938, %v3612, %v3342
        %v3645 = vsel %vm938, %v3613, %v3344
        %v3646 = vsel %vm938, %v3614, %v3346
        %v3647 = vsel %vm938, %v3615, %v3348
        %v3648 = vsel %vm938, %v3616, %v3350
        %v3649 = vsel %vm938, %v3617, %v3352
        %v3650 = vsel %vm938, %v3618, %v3354
        %v3651 = vsel %vm938, %v3619, %v3356
        %v3652 = vsel %vm938, %v3620, %v3358
        %v3653 = vsel %vm938, %v3621, %v3360
        %v3654 = vsel %vm938, %v3622, %v3362
        %v3655 = vsel %vm938, %v3623, %v3364
        %v3656 = vsel %vm938, %v3624, %v3366
        %v3657 = vsel %vm938, %v3625, %v3368
        %v3658 = vsel %vm938, %v3626, %v3370
        %v3659 = vpack.c.bf16 %v3628, %v3627
        %v3660 = vpack.c.bf16 %v3630, %v3629
        %v3661 = vpack.c.bf16 %v3632, %v3631
        %v3662 = vpack.c.bf16 %v3634, %v3633
        %v3663 = vpack.c.bf16 %v3636, %v3635
        %v3664 = vpack.c.bf16 %v3638, %v3637
        %v3665 = vpack.c.bf16 %v3640, %v3639
        %v3666 = vpack.c.bf16 %v3642, %v3641
        %v3667 = vpack.c.bf16 %v3644, %v3643
        %v3668 = vpack.c.bf16 %v3646, %v3645
        %v3669 = vpack.c.bf16 %v3648, %v3647
        %v3670 = vpack.c.bf16 %v3650, %v3649
        %v3671 = vpack.c.bf16 %v3652, %v3651
        %v3672 = vpack.c.bf16 %v3654, %v3653
        %v3673 = vpack.c.bf16 %v3656, %v3655
        %v3674 = vpack.c.bf16 %v3658, %v3657
        %v3675 = vld [vmem:[%s8] sm:$0xf]
        %v3676 = vld [vmem:[%s8 + $0x4] sm:$0xf]
        %v3677 = vld [vmem:[%s8 + $0x8] sm:$0xf]
        %v3678 = vld [vmem:[%s8 + $0xc] sm:$0xf]
        %v3679 = vld [vmem:[%s8 + $0x10] sm:$0xf]
        %v3680 = vld [vmem:[%s8 + $0x14] sm:$0xf]
        %v3681 = vld [vmem:[%s8 + $0x18] sm:$0xf]
        %v3682 = vld [vmem:[%s8 + $0x1c] sm:$0xf]
        %v3683 = vld [vmem:[%s8 + $0x20] sm:$0xf]
        %v3684 = vld [vmem:[%s9] sm:$0x1]
        %v3686 = vperm.slane %v3684, 0
        %v3697 = vunpack.c.l.b16 %v3675
        %v3698 = vunpack.c.l.b16 %v3676
        %v3699 = vunpack.c.l.b16 %v3677
        %v3700 = vunpack.c.l.b16 %v3678
        %v3701 = vunpack.c.l.b16 %v3679
        %v3702 = vunpack.c.l.b16 %v3680
        %v3703 = vunpack.c.l.b16 %v3681
        %v3704 = vunpack.c.l.b16 %v3682
        %v3705 = vunpack.c.l.b16 %v3683
        %v3706 = vpack.c.b16 %v3698, %v3697
        %v3707 = vpack.c.b16 %v3700, %v3699
        %v3708 = vpack.c.b16 %v3702, %v3701
        %v3709 = vpack.c.b16 %v3704, %v3703
        %v3710 = vpack.c.b16 %v3705, %v3705
        %v3716 = vsel %vm982, %v3659, 0
        %v3719 = vsel %vm982, %v3660, 0
        %v3722 = vsel %vm982, %v3661, 0
        %v3725 = vsel %vm982, %v3662, 0
        %v3728 = vsel %vm982, %v3663, 0
        %v3731 = vsel %vm982, %v3664, 0
        %v3734 = vsel %vm982, %v3665, 0
        %v3737 = vsel %vm982, %v3666, 0
        %v3740 = vsel %vm982, %v3667, 0
        %v3743 = vsel %vm982, %v3668, 0
        %v3746 = vsel %vm982, %v3669, 0
        %v3749 = vsel %vm982, %v3670, 0
        %v3752 = vsel %vm982, %v3671, 0
        %v3755 = vsel %vm982, %v3672, 0
        %v3758 = vsel %vm982, %v3673, 0
        %v3761 = vsel %vm982, %v3674, 0
        %v3764 = vsel %vm986, %v3710, 0
        %3766 = vmatpush.bf16.msra.mxu0 0
        %3767 = vmatpush.bf16.msra.mxu0 0
        %3768 = vmatpush.bf16.msra.mxu0 0
        %3769 = vmatpush.bf16.msra.mxu0 %v3764
        %3770 = vmatpush.bf16.msra.mxu0 %v3709
        %3771 = vmatpush.bf16.msra.mxu0 %v3708
        %3772 = vmatpush.bf16.msra.mxu0 %v3707
        %3773 = vmatpush.bf16.msra.mxu0 %v3706
        %3774 = vmatmul.bf16.gmra.mxu0 %v3716
        %v3775 = vpop.f32.mrf.mxu0
        %v3776 = vadd.f32 %v3686, %v3775
        %v3777 = vpop.f32.mrf.mxu0
        %v3778 = vadd.f32 %v3686, %v3777
        %3779 = vmatmul.bf16.gmra.mxu0 %v3719
        %v3780 = vpop.f32.mrf.mxu0
        %v3781 = vadd.f32 %v3686, %v3780
        %v3782 = vpop.f32.mrf.mxu0
        %v3783 = vadd.f32 %v3686, %v3782
        %3784 = vmatmul.bf16.gmra.mxu0 %v3722
        %v3785 = vpop.f32.mrf.mxu0
        %v3786 = vadd.f32 %v3686, %v3785
        %v3787 = vpop.f32.mrf.mxu0
        %v3788 = vadd.f32 %v3686, %v3787
        %3789 = vmatmul.bf16.gmra.mxu0 %v3725
        %v3790 = vpop.f32.mrf.mxu0
        %v3791 = vadd.f32 %v3686, %v3790
        %v3792 = vpop.f32.mrf.mxu0
        %v3793 = vadd.f32 %v3686, %v3792
        %3794 = vmatmul.bf16.gmra.mxu0 %v3728
        %v3795 = vpop.f32.mrf.mxu0
        %v3796 = vadd.f32 %v3686, %v3795
        %v3797 = vpop.f32.mrf.mxu0
        %v3798 = vadd.f32 %v3686, %v3797
        %3799 = vmatmul.bf16.gmra.mxu0 %v3731
        %v3800 = vpop.f32.mrf.mxu0
        %v3801 = vadd.f32 %v3686, %v3800
        %v3802 = vpop.f32.mrf.mxu0
        %v3803 = vadd.f32 %v3686, %v3802
        %3804 = vmatmul.bf16.gmra.mxu0 %v3734
        %v3805 = vpop.f32.mrf.mxu0
        %v3806 = vadd.f32 %v3686, %v3805
        %v3807 = vpop.f32.mrf.mxu0
        %v3808 = vadd.f32 %v3686, %v3807
        %3809 = vmatmul.bf16.gmra.mxu0 %v3737
        %v3810 = vpop.f32.mrf.mxu0
        %v3811 = vadd.f32 %v3686, %v3810
        %v3812 = vpop.f32.mrf.mxu0
        %v3813 = vadd.f32 %v3686, %v3812
        %3814 = vmatmul.bf16.gmra.mxu0 %v3740
        %v3815 = vpop.f32.mrf.mxu0
        %v3816 = vadd.f32 %v3686, %v3815
        %v3817 = vpop.f32.mrf.mxu0
        %v3818 = vadd.f32 %v3686, %v3817
        %3819 = vmatmul.bf16.gmra.mxu0 %v3743
        %v3820 = vpop.f32.mrf.mxu0
        %v3821 = vadd.f32 %v3686, %v3820
        %v3822 = vpop.f32.mrf.mxu0
        %v3823 = vadd.f32 %v3686, %v3822
        %3824 = vmatmul.bf16.gmra.mxu0 %v3746
        %v3825 = vpop.f32.mrf.mxu0
        %v3826 = vadd.f32 %v3686, %v3825
        %v3827 = vpop.f32.mrf.mxu0
        %v3828 = vadd.f32 %v3686, %v3827
        %3829 = vmatmul.bf16.gmra.mxu0 %v3749
        %v3830 = vpop.f32.mrf.mxu0
        %v3831 = vadd.f32 %v3686, %v3830
        %v3832 = vpop.f32.mrf.mxu0
        %v3833 = vadd.f32 %v3686, %v3832
        %3834 = vmatmul.bf16.gmra.mxu0 %v3752
        %v3835 = vpop.f32.mrf.mxu0
        %v3836 = vadd.f32 %v3686, %v3835
        %v3837 = vpop.f32.mrf.mxu0
        %v3838 = vadd.f32 %v3686, %v3837
        %3839 = vmatmul.bf16.gmra.mxu0 %v3755
        %v3840 = vpop.f32.mrf.mxu0
        %v3841 = vadd.f32 %v3686, %v3840
        %v3842 = vpop.f32.mrf.mxu0
        %v3843 = vadd.f32 %v3686, %v3842
        %3844 = vmatmul.bf16.gmra.mxu0 %v3758
        %v3845 = vpop.f32.mrf.mxu0
        %v3846 = vadd.f32 %v3686, %v3845
        %v3847 = vpop.f32.mrf.mxu0
        %v3848 = vadd.f32 %v3686, %v3847
        %3849 = vmatmul.bf16.gmra.mxu0 %v3761
        %v3850 = vpop.f32.mrf.mxu0
        %v3851 = vadd.f32 %v3686, %v3850
        %v3852 = vpop.f32.mrf.mxu0
        %v3853 = vadd.f32 %v3686, %v3852
        %3854 = vdwg.mxu0
        %v3855 = vmax.f32 %v3776, 0.0
        %v3856 = vmax.f32 %v3778, 0.0
        %v3857 = vmax.f32 %v3781, 0.0
        %v3858 = vmax.f32 %v3783, 0.0
        %v3859 = vmax.f32 %v3786, 0.0
        %v3860 = vmax.f32 %v3788, 0.0
        %v3861 = vmax.f32 %v3791, 0.0
        %v3862 = vmax.f32 %v3793, 0.0
        %v3863 = vmax.f32 %v3796, 0.0
        %v3864 = vmax.f32 %v3798, 0.0
        %v3865 = vmax.f32 %v3801, 0.0
        %v3866 = vmax.f32 %v3803, 0.0
        %v3867 = vmax.f32 %v3806, 0.0
        %v3868 = vmax.f32 %v3808, 0.0
        %v3869 = vmax.f32 %v3811, 0.0
        %v3870 = vmax.f32 %v3813, 0.0
        %v3871 = vmax.f32 %v3816, 0.0
        %v3872 = vmax.f32 %v3818, 0.0
        %v3873 = vmax.f32 %v3821, 0.0
        %v3874 = vmax.f32 %v3823, 0.0
        %v3875 = vmax.f32 %v3826, 0.0
        %v3876 = vmax.f32 %v3828, 0.0
        %v3877 = vmax.f32 %v3831, 0.0
        %v3878 = vmax.f32 %v3833, 0.0
        %v3879 = vmax.f32 %v3836, 0.0
        %v3880 = vmax.f32 %v3838, 0.0
        %v3881 = vmax.f32 %v3841, 0.0
        %v3882 = vmax.f32 %v3843, 0.0
        %v3883 = vmax.f32 %v3846, 0.0
        %v3884 = vmax.f32 %v3848, 0.0
        %v3885 = vmax.f32 %v3851, 0.0
        %v3886 = vmax.f32 %v3853, 0.0
        %v3887 = vstv %s546
        %v3888 = vmul.f32 %v3887, %v581
        %v3889 = vmul.f32 %v3887, %v582
        %v3890 = vmul.f32 %v3887, %v583
        %v3891 = vmul.f32 %v3887, %v584
        %v3892 = vmul.f32 %v3887, %v585
        %v3893 = vmul.f32 %v3887, %v586
        %v3894 = vmul.f32 %v3887, %v587
        %v3895 = vmul.f32 %v3887, %v588
        %v3896 = vstv %s547
        %v3897 = vmul.f32 %v3896, %v1648
        %v3898 = vmul.f32 %v3896, %v1649
        %v3899 = vmul.f32 %v3896, %v1650
        %v3900 = vmul.f32 %v3896, %v1651
        %v3901 = vmul.f32 %v3896, %v1652
        %v3902 = vmul.f32 %v3896, %v1653
        %v3903 = vmul.f32 %v3896, %v1654
        %v3904 = vmul.f32 %v3896, %v1655
        %v3905 = vadd.f32 %v3888, %v3897
        %v3906 = vadd.f32 %v3889, %v3898
        %v3907 = vadd.f32 %v3890, %v3899
        %v3908 = vadd.f32 %v3891, %v3900
        %v3909 = vadd.f32 %v3892, %v3901
        %v3910 = vadd.f32 %v3893, %v3902
        %v3911 = vadd.f32 %v3894, %v3903
        %v3912 = vadd.f32 %v3895, %v3904
        %v3913 = vmax.f32 %v3855, %v3857
        %v3914 = vmax.f32 %v3856, %v3858
        %v3915 = vmax.f32 %v3859, %v3861
        %v3916 = vmax.f32 %v3860, %v3862
        %v3917 = vmax.f32 %v3863, %v3865
        %v3918 = vmax.f32 %v3864, %v3866
        %v3919 = vmax.f32 %v3867, %v3869
        %v3920 = vmax.f32 %v3868, %v3870
        %v3921 = vmax.f32 %v3871, %v3873
        %v3922 = vmax.f32 %v3872, %v3874
        %v3923 = vmax.f32 %v3875, %v3877
        %v3924 = vmax.f32 %v3876, %v3878
        %v3925 = vmax.f32 %v3879, %v3881
        %v3926 = vmax.f32 %v3880, %v3882
        %v3927 = vmax.f32 %v3883, %v3885
        %v3928 = vmax.f32 %v3884, %v3886
        %v3945 = vrot.slane %v3913, 2
        %v3946 = vrot.slane %v3913, 4
        %v3947 = vrot.slane %v3913, 6
        %v3948 = vrot.slane %v3914, 2
        %v3949 = vrot.slane %v3914, 4
        %v3950 = vrot.slane %v3914, 6
        %v3951 = vrot.slane %v3915, 2
        %v3952 = vrot.slane %v3915, 4
        %v3953 = vrot.slane %v3915, 6
        %v3954 = vrot.slane %v3916, 2
        %v3955 = vrot.slane %v3916, 4
        %v3956 = vrot.slane %v3916, 6
        %v3957 = vrot.slane %v3917, 2
        %v3958 = vrot.slane %v3917, 4
        %v3959 = vrot.slane %v3917, 6
        %v3960 = vrot.slane %v3918, 2
        %v3961 = vrot.slane %v3918, 4
        %v3962 = vrot.slane %v3918, 6
        %v3963 = vrot.slane %v3919, 2
        %v3964 = vrot.slane %v3919, 4
        %v3965 = vrot.slane %v3919, 6
        %v3966 = vrot.slane %v3920, 2
        %v3967 = vrot.slane %v3920, 4
        %v3968 = vrot.slane %v3920, 6
        %v3969 = vrot.slane %v3921, 2
        %v3970 = vrot.slane %v3921, 4
        %v3971 = vrot.slane %v3921, 6
        %v3972 = vrot.slane %v3922, 2
        %v3973 = vrot.slane %v3922, 4
        %v3974 = vrot.slane %v3922, 6
        %v3975 = vrot.slane %v3923, 2
        %v3976 = vrot.slane %v3923, 4
        %v3977 = vrot.slane %v3923, 6
        %v3978 = vrot.slane %v3924, 2
        %v3979 = vrot.slane %v3924, 4
        %v3980 = vrot.slane %v3924, 6
        %v3981 = vrot.slane %v3925, 2
        %v3982 = vrot.slane %v3925, 4
        %v3983 = vrot.slane %v3925, 6
        %v3984 = vrot.slane %v3926, 2
        %v3985 = vrot.slane %v3926, 4
        %v3986 = vrot.slane %v3926, 6
        %v3987 = vrot.slane %v3927, 2
        %v3988 = vrot.slane %v3927, 4
        %v3989 = vrot.slane %v3927, 6
        %v3990 = vrot.slane %v3928, 2
        %v3991 = vrot.slane %v3928, 4
        %v3992 = vrot.slane %v3928, 6
        %v4041 = vrot.slane %v3913, 7
        %v4042 = vrot.slane %v4041, 2
        %v4043 = vrot.slane %v3945, 7
        %v4044 = vrot.slane %v4043, 2
        %v4045 = vrot.slane %v3946, 7
        %v4046 = vrot.slane %v4045, 2
        %v4047 = vrot.slane %v3947, 7
        %v4048 = vrot.slane %v4047, 2
        %v4049 = vrot.slane %v3914, 7
        %v4050 = vrot.slane %v4049, 2
        %v4051 = vrot.slane %v3948, 7
        %v4052 = vrot.slane %v4051, 2
        %v4053 = vrot.slane %v3949, 7
        %v4054 = vrot.slane %v4053, 2
        %v4055 = vrot.slane %v3950, 7
        %v4056 = vrot.slane %v4055, 2
        %v4057 = vrot.slane %v3915, 7
        %v4058 = vrot.slane %v4057, 2
        %v4059 = vrot.slane %v3951, 7
        %v4060 = vrot.slane %v4059, 2
        %v4061 = vrot.slane %v3952, 7
        %v4062 = vrot.slane %v4061, 2
        %v4063 = vrot.slane %v3953, 7
        %v4064 = vrot.slane %v4063, 2
        %v4065 = vrot.slane %v3916, 7
        %v4066 = vrot.slane %v4065, 2
        %v4067 = vrot.slane %v3954, 7
        %v4068 = vrot.slane %v4067, 2
        %v4069 = vrot.slane %v3955, 7
        %v4070 = vrot.slane %v4069, 2
        %v4071 = vrot.slane %v3956, 7
        %v4072 = vrot.slane %v4071, 2
        %v4073 = vrot.slane %v3917, 7
        %v4074 = vrot.slane %v4073, 2
        %v4075 = vrot.slane %v3957, 7
        %v4076 = vrot.slane %v4075, 2
        %v4077 = vrot.slane %v3958, 7
        %v4078 = vrot.slane %v4077, 2
        %v4079 = vrot.slane %v3959, 7
        %v4080 = vrot.slane %v4079, 2
        %v4081 = vrot.slane %v3918, 7
        %v4082 = vrot.slane %v4081, 2
        %v4083 = vrot.slane %v3960, 7
        %v4084 = vrot.slane %v4083, 2
        %v4085 = vrot.slane %v3961, 7
        %v4086 = vrot.slane %v4085, 2
        %v4087 = vrot.slane %v3962, 7
        %v4088 = vrot.slane %v4087, 2
        %v4089 = vrot.slane %v3919, 7
        %v4090 = vrot.slane %v4089, 2
        %v4091 = vrot.slane %v3963, 7
        %v4092 = vrot.slane %v4091, 2
        %v4093 = vrot.slane %v3964, 7
        %v4094 = vrot.slane %v4093, 2
        %v4095 = vrot.slane %v3965, 7
        %v4096 = vrot.slane %v4095, 2
        %v4097 = vrot.slane %v3920, 7
        %v4098 = vrot.slane %v4097, 2
        %v4099 = vrot.slane %v3966, 7
        %v4100 = vrot.slane %v4099, 2
        %v4101 = vrot.slane %v3967, 7
        %v4102 = vrot.slane %v4101, 2
        %v4103 = vrot.slane %v3968, 7
        %v4104 = vrot.slane %v4103, 2
        %v4105 = vrot.slane %v3921, 7
        %v4106 = vrot.slane %v4105, 2
        %v4107 = vrot.slane %v3969, 7
        %v4108 = vrot.slane %v4107, 2
        %v4109 = vrot.slane %v3970, 7
        %v4110 = vrot.slane %v4109, 2
        %v4111 = vrot.slane %v3971, 7
        %v4112 = vrot.slane %v4111, 2
        %v4113 = vrot.slane %v3922, 7
        %v4114 = vrot.slane %v4113, 2
        %v4115 = vrot.slane %v3972, 7
        %v4116 = vrot.slane %v4115, 2
        %v4117 = vrot.slane %v3973, 7
        %v4118 = vrot.slane %v4117, 2
        %v4119 = vrot.slane %v3974, 7
        %v4120 = vrot.slane %v4119, 2
        %v4121 = vrot.slane %v3923, 7
        %v4122 = vrot.slane %v4121, 2
        %v4123 = vrot.slane %v3975, 7
        %v4124 = vrot.slane %v4123, 2
        %v4125 = vrot.slane %v3976, 7
        %v4126 = vrot.slane %v4125, 2
        %v4127 = vrot.slane %v3977, 7
        %v4128 = vrot.slane %v4127, 2
        %v4129 = vrot.slane %v3924, 7
        %v4130 = vrot.slane %v4129, 2
        %v4131 = vrot.slane %v3978, 7
        %v4132 = vrot.slane %v4131, 2
        %v4133 = vrot.slane %v3979, 7
        %v4134 = vrot.slane %v4133, 2
        %v4135 = vrot.slane %v3980, 7
        %v4136 = vrot.slane %v4135, 2
        %v4137 = vrot.slane %v3925, 7
        %v4138 = vrot.slane %v4137, 2
        %v4139 = vrot.slane %v3981, 7
        %v4140 = vrot.slane %v4139, 2
        %v4141 = vrot.slane %v3982, 7
        %v4142 = vrot.slane %v4141, 2
        %v4143 = vrot.slane %v3983, 7
        %v4144 = vrot.slane %v4143, 2
        %v4145 = vrot.slane %v3926, 7
        %v4146 = vrot.slane %v4145, 2
        %v4147 = vrot.slane %v3984, 7
        %v4148 = vrot.slane %v4147, 2
        %v4149 = vrot.slane %v3985, 7
        %v4150 = vrot.slane %v4149, 2
        %v4151 = vrot.slane %v3986, 7
        %v4152 = vrot.slane %v4151, 2
        %v4153 = vrot.slane %v3927, 7
        %v4154 = vrot.slane %v4153, 2
        %v4155 = vrot.slane %v3987, 7
        %v4156 = vrot.slane %v4155, 2
        %v4157 = vrot.slane %v3988, 7
        %v4158 = vrot.slane %v4157, 2
        %v4159 = vrot.slane %v3989, 7
        %v4160 = vrot.slane %v4159, 2
        %v4161 = vrot.slane %v3928, 7
        %v4162 = vrot.slane %v4161, 2
        %v4163 = vrot.slane %v3990, 7
        %v4164 = vrot.slane %v4163, 2
        %v4165 = vrot.slane %v3991, 7
        %v4166 = vrot.slane %v4165, 2
        %v4167 = vrot.slane %v3992, 7
        %v4168 = vrot.slane %v4167, 2
        %v4233 = vmax.f32 %v3913, %v4042
        %v4234 = vmax.f32 %v3945, %v4044
        %v4235 = vmax.f32 %v3946, %v4046
        %v4236 = vmax.f32 %v3947, %v4048
        %v4237 = vmax.f32 %v3914, %v4050
        %v4238 = vmax.f32 %v3948, %v4052
        %v4239 = vmax.f32 %v3949, %v4054
        %v4240 = vmax.f32 %v3950, %v4056
        %v4241 = vmax.f32 %v3915, %v4058
        %v4242 = vmax.f32 %v3951, %v4060
        %v4243 = vmax.f32 %v3952, %v4062
        %v4244 = vmax.f32 %v3953, %v4064
        %v4245 = vmax.f32 %v3916, %v4066
        %v4246 = vmax.f32 %v3954, %v4068
        %v4247 = vmax.f32 %v3955, %v4070
        %v4248 = vmax.f32 %v3956, %v4072
        %v4249 = vmax.f32 %v3917, %v4074
        %v4250 = vmax.f32 %v3957, %v4076
        %v4251 = vmax.f32 %v3958, %v4078
        %v4252 = vmax.f32 %v3959, %v4080
        %v4253 = vmax.f32 %v3918, %v4082
        %v4254 = vmax.f32 %v3960, %v4084
        %v4255 = vmax.f32 %v3961, %v4086
        %v4256 = vmax.f32 %v3962, %v4088
        %v4257 = vmax.f32 %v3919, %v4090
        %v4258 = vmax.f32 %v3963, %v4092
        %v4259 = vmax.f32 %v3964, %v4094
        %v4260 = vmax.f32 %v3965, %v4096
        %v4261 = vmax.f32 %v3920, %v4098
        %v4262 = vmax.f32 %v3966, %v4100
        %v4263 = vmax.f32 %v3967, %v4102
        %v4264 = vmax.f32 %v3968, %v4104
        %v4265 = vmax.f32 %v3921, %v4106
        %v4266 = vmax.f32 %v3969, %v4108
        %v4267 = vmax.f32 %v3970, %v4110
        %v4268 = vmax.f32 %v3971, %v4112
        %v4269 = vmax.f32 %v3922, %v4114
        %v4270 = vmax.f32 %v3972, %v4116
        %v4271 = vmax.f32 %v3973, %v4118
        %v4272 = vmax.f32 %v3974, %v4120
        %v4273 = vmax.f32 %v3923, %v4122
        %v4274 = vmax.f32 %v3975, %v4124
        %v4275 = vmax.f32 %v3976, %v4126
        %v4276 = vmax.f32 %v3977, %v4128
        %v4277 = vmax.f32 %v3924, %v4130
        %v4278 = vmax.f32 %v3978, %v4132
        %v4279 = vmax.f32 %v3979, %v4134
        %v4280 = vmax.f32 %v3980, %v4136
        %v4281 = vmax.f32 %v3925, %v4138
        %v4282 = vmax.f32 %v3981, %v4140
        %v4283 = vmax.f32 %v3982, %v4142
        %v4284 = vmax.f32 %v3983, %v4144
        %v4285 = vmax.f32 %v3926, %v4146
        %v4286 = vmax.f32 %v3984, %v4148
        %v4287 = vmax.f32 %v3985, %v4150
        %v4288 = vmax.f32 %v3986, %v4152
        %v4289 = vmax.f32 %v3927, %v4154
        %v4290 = vmax.f32 %v3987, %v4156
        %v4291 = vmax.f32 %v3988, %v4158
        %v4292 = vmax.f32 %v3989, %v4160
        %v4293 = vmax.f32 %v3928, %v4162
        %v4294 = vmax.f32 %v3990, %v4164
        %v4295 = vmax.f32 %v3991, %v4166
        %v4296 = vmax.f32 %v3992, %v4168
        %v4297 = vstv %s548
        %v4298 = vmul.f32 %v4297, %v4233
        %v4299 = vmul.f32 %v4297, %v4234
        %v4300 = vmul.f32 %v4297, %v4235
        %v4301 = vmul.f32 %v4297, %v4236
        %v4302 = vmul.f32 %v4297, %v4237
        %v4303 = vmul.f32 %v4297, %v4238
        %v4304 = vmul.f32 %v4297, %v4239
        %v4305 = vmul.f32 %v4297, %v4240
        %v4306 = vmul.f32 %v4297, %v4241
        %v4307 = vmul.f32 %v4297, %v4242
        %v4308 = vmul.f32 %v4297, %v4243
        %v4309 = vmul.f32 %v4297, %v4244
        %v4310 = vmul.f32 %v4297, %v4245
        %v4311 = vmul.f32 %v4297, %v4246
        %v4312 = vmul.f32 %v4297, %v4247
        %v4313 = vmul.f32 %v4297, %v4248
        %v4314 = vmul.f32 %v4297, %v4249
        %v4315 = vmul.f32 %v4297, %v4250
        %v4316 = vmul.f32 %v4297, %v4251
        %v4317 = vmul.f32 %v4297, %v4252
        %v4318 = vmul.f32 %v4297, %v4253
        %v4319 = vmul.f32 %v4297, %v4254
        %v4320 = vmul.f32 %v4297, %v4255
        %v4321 = vmul.f32 %v4297, %v4256
        %v4322 = vmul.f32 %v4297, %v4257
        %v4323 = vmul.f32 %v4297, %v4258
        %v4324 = vmul.f32 %v4297, %v4259
        %v4325 = vmul.f32 %v4297, %v4260
        %v4326 = vmul.f32 %v4297, %v4261
        %v4327 = vmul.f32 %v4297, %v4262
        %v4328 = vmul.f32 %v4297, %v4263
        %v4329 = vmul.f32 %v4297, %v4264
        %v4330 = vmul.f32 %v4297, %v4265
        %v4331 = vmul.f32 %v4297, %v4266
        %v4332 = vmul.f32 %v4297, %v4267
        %v4333 = vmul.f32 %v4297, %v4268
        %v4334 = vmul.f32 %v4297, %v4269
        %v4335 = vmul.f32 %v4297, %v4270
        %v4336 = vmul.f32 %v4297, %v4271
        %v4337 = vmul.f32 %v4297, %v4272
        %v4338 = vmul.f32 %v4297, %v4273
        %v4339 = vmul.f32 %v4297, %v4274
        %v4340 = vmul.f32 %v4297, %v4275
        %v4341 = vmul.f32 %v4297, %v4276
        %v4342 = vmul.f32 %v4297, %v4277
        %v4343 = vmul.f32 %v4297, %v4278
        %v4344 = vmul.f32 %v4297, %v4279
        %v4345 = vmul.f32 %v4297, %v4280
        %v4346 = vmul.f32 %v4297, %v4281
        %v4347 = vmul.f32 %v4297, %v4282
        %v4348 = vmul.f32 %v4297, %v4283
        %v4349 = vmul.f32 %v4297, %v4284
        %v4350 = vmul.f32 %v4297, %v4285
        %v4351 = vmul.f32 %v4297, %v4286
        %v4352 = vmul.f32 %v4297, %v4287
        %v4353 = vmul.f32 %v4297, %v4288
        %v4354 = vmul.f32 %v4297, %v4289
        %v4355 = vmul.f32 %v4297, %v4290
        %v4356 = vmul.f32 %v4297, %v4291
        %v4357 = vmul.f32 %v4297, %v4292
        %v4358 = vmul.f32 %v4297, %v4293
        %v4359 = vmul.f32 %v4297, %v4294
        %v4360 = vmul.f32 %v4297, %v4295
        %v4361 = vmul.f32 %v4297, %v4296
        %v4426 = vperm.slane %v4298, 0
        %v4427 = vperm.slane %v4299, 0
        %v4428 = vperm.slane %v4300, 0
        %v4429 = vperm.slane %v4301, 0
        %v4430 = vperm.slane %v4302, 0
        %v4431 = vperm.slane %v4303, 0
        %v4432 = vperm.slane %v4304, 0
        %v4433 = vperm.slane %v4305, 0
        %v4434 = vperm.slane %v4306, 0
        %v4435 = vperm.slane %v4307, 0
        %v4436 = vperm.slane %v4308, 0
        %v4437 = vperm.slane %v4309, 0
        %v4438 = vperm.slane %v4310, 0
        %v4439 = vperm.slane %v4311, 0
        %v4440 = vperm.slane %v4312, 0
        %v4441 = vperm.slane %v4313, 0
        %v4442 = vperm.slane %v4314, 0
        %v4443 = vperm.slane %v4315, 0
        %v4444 = vperm.slane %v4316, 0
        %v4445 = vperm.slane %v4317, 0
        %v4446 = vperm.slane %v4318, 0
        %v4447 = vperm.slane %v4319, 0
        %v4448 = vperm.slane %v4320, 0
        %v4449 = vperm.slane %v4321, 0
        %v4450 = vperm.slane %v4322, 0
        %v4451 = vperm.slane %v4323, 0
        %v4452 = vperm.slane %v4324, 0
        %v4453 = vperm.slane %v4325, 0
        %v4454 = vperm.slane %v4326, 0
        %v4455 = vperm.slane %v4327, 0
        %v4456 = vperm.slane %v4328, 0
        %v4457 = vperm.slane %v4329, 0
        %v4458 = vperm.slane %v4330, 0
        %v4459 = vperm.slane %v4331, 0
        %v4460 = vperm.slane %v4332, 0
        %v4461 = vperm.slane %v4333, 0
        %v4462 = vperm.slane %v4334, 0
        %v4463 = vperm.slane %v4335, 0
        %v4464 = vperm.slane %v4336, 0
        %v4465 = vperm.slane %v4337, 0
        %v4466 = vperm.slane %v4338, 0
        %v4467 = vperm.slane %v4339, 0
        %v4468 = vperm.slane %v4340, 0
        %v4469 = vperm.slane %v4341, 0
        %v4470 = vperm.slane %v4342, 0
        %v4471 = vperm.slane %v4343, 0
        %v4472 = vperm.slane %v4344, 0
        %v4473 = vperm.slane %v4345, 0
        %v4474 = vperm.slane %v4346, 0
        %v4475 = vperm.slane %v4347, 0
        %v4476 = vperm.slane %v4348, 0
        %v4477 = vperm.slane %v4349, 0
        %v4478 = vperm.slane %v4350, 0
        %v4479 = vperm.slane %v4351, 0
        %v4480 = vperm.slane %v4352, 0
        %v4481 = vperm.slane %v4353, 0
        %v4482 = vperm.slane %v4354, 0
        %v4483 = vperm.slane %v4355, 0
        %v4484 = vperm.slane %v4356, 0
        %v4485 = vperm.slane %v4357, 0
        %v4486 = vperm.slane %v4358, 0
        %v4487 = vperm.slane %v4359, 0
        %v4488 = vperm.slane %v4360, 0
        %v4489 = vperm.slane %v4361, 0
        %vm4490 = vcmask 1041409
        %v4491 = vsel %vm4490, %v4427, %v4426
        %vm4492 = vcmask 1042434
        %v4493 = vsel %vm4492, %v4428, %v4491
        %vm4494 = vcmask 1043459
        %v4495 = vsel %vm4494, %v4429, %v4493
        %vm4496 = vcmask 1044484
        %v4497 = vsel %vm4496, %v4430, %v4495
        %vm4498 = vcmask 1045509
        %v4499 = vsel %vm4498, %v4431, %v4497
        %vm4500 = vcmask 1046534
        %v4501 = vsel %vm4500, %v4432, %v4499
        %vm4502 = vcmask 1047559
        %v4503 = vsel %vm4502, %v4433, %v4501
        %v4504 = vsel %vm4490, %v4435, %v4434
        %v4505 = vsel %vm4492, %v4436, %v4504
        %v4506 = vsel %vm4494, %v4437, %v4505
        %v4507 = vsel %vm4496, %v4438, %v4506
        %v4508 = vsel %vm4498, %v4439, %v4507
        %v4509 = vsel %vm4500, %v4440, %v4508
        %v4510 = vsel %vm4502, %v4441, %v4509
        %v4511 = vsel %vm4490, %v4443, %v4442
        %v4512 = vsel %vm4492, %v4444, %v4511
        %v4513 = vsel %vm4494, %v4445, %v4512
        %v4514 = vsel %vm4496, %v4446, %v4513
        %v4515 = vsel %vm4498, %v4447, %v4514
        %v4516 = vsel %vm4500, %v4448, %v4515
        %v4517 = vsel %vm4502, %v4449, %v4516
        %v4518 = vsel %vm4490, %v4451, %v4450
        %v4519 = vsel %vm4492, %v4452, %v4518
        %v4520 = vsel %vm4494, %v4453, %v4519
        %v4521 = vsel %vm4496, %v4454, %v4520
        %v4522 = vsel %vm4498, %v4455, %v4521
        %v4523 = vsel %vm4500, %v4456, %v4522
        %v4524 = vsel %vm4502, %v4457, %v4523
        %v4525 = vsel %vm4490, %v4459, %v4458
        %v4526 = vsel %vm4492, %v4460, %v4525
        %v4527 = vsel %vm4494, %v4461, %v4526
        %v4528 = vsel %vm4496, %v4462, %v4527
        %v4529 = vsel %vm4498, %v4463, %v4528
        %v4530 = vsel %vm4500, %v4464, %v4529
        %v4531 = vsel %vm4502, %v4465, %v4530
        %v4532 = vsel %vm4490, %v4467, %v4466
        %v4533 = vsel %vm4492, %v4468, %v4532
        %v4534 = vsel %vm4494, %v4469, %v4533
        %v4535 = vsel %vm4496, %v4470, %v4534
        %v4536 = vsel %vm4498, %v4471, %v4535
        %v4537 = vsel %vm4500, %v4472, %v4536
        %v4538 = vsel %vm4502, %v4473, %v4537
        %v4539 = vsel %vm4490, %v4475, %v4474
        %v4540 = vsel %vm4492, %v4476, %v4539
        %v4541 = vsel %vm4494, %v4477, %v4540
        %v4542 = vsel %vm4496, %v4478, %v4541
        %v4543 = vsel %vm4498, %v4479, %v4542
        %v4544 = vsel %vm4500, %v4480, %v4543
        %v4545 = vsel %vm4502, %v4481, %v4544
        %v4546 = vsel %vm4490, %v4483, %v4482
        %v4547 = vsel %vm4492, %v4484, %v4546
        %v4548 = vsel %vm4494, %v4485, %v4547
        %v4549 = vsel %vm4496, %v4486, %v4548
        %v4550 = vsel %vm4498, %v4487, %v4549
        %v4551 = vsel %vm4500, %v4488, %v4550
        %v4552 = vsel %vm4502, %v4489, %v4551
        %v4561 = vadd.f32 %v3905, %v4503
        %v4562 = vadd.f32 %v3906, %v4510
        %v4563 = vadd.f32 %v3907, %v4517
        %v4564 = vadd.f32 %v3908, %v4524
        %v4565 = vadd.f32 %v3909, %v4531
        %v4566 = vadd.f32 %v3910, %v4538
        %v4567 = vadd.f32 %v3911, %v4545
        %v4568 = vadd.f32 %v3912, %v4552
        %4569 = vst.msk [vmem:[#allocation2] sm:$0xff] %vm652, 0.0
        %4570 = vst.msk [vmem:[#allocation2 + $0x8] sm:$0xff] %vm652, 0.0
        %4571 = vst.msk [vmem:[#allocation2 + $0x10] sm:$0x3] %vm655, 0.0
        %4572 = vst.msk [vmem:[#allocation2 + $0x18] sm:$0xff] %vm652, 0.0
        %4573 = vst.msk [vmem:[#allocation2 + $0x20] sm:$0xff] %vm652, 0.0
        %4574 = vst.msk [vmem:[#allocation2 + $0x28] sm:$0x3] %vm655, 0.0
        %4575 = vst.msk [vmem:[#allocation2 + $0x30] sm:$0xff] %vm652, 0.0
        %4576 = vst.msk [vmem:[#allocation2 + $0x38] sm:$0xff] %vm652, 0.0
        %4577 = vst.msk [vmem:[#allocation2 + $0x40] sm:$0x3] %vm655, 0.0
        %4578 = vst.msk [vmem:[#allocation2 + $0x48] sm:$0xff] %vm652, 0.0
        %4579 = vst.msk [vmem:[#allocation2 + $0x50] sm:$0xff] %vm652, 0.0
        %4580 = vst.msk [vmem:[#allocation2 + $0x58] sm:$0x3] %vm655, 0.0
        %4581 = vst.msk [vmem:[#allocation2 + $0x60] sm:$0xff] %vm652, 0.0
        %4582 = vst.msk [vmem:[#allocation2 + $0x68] sm:$0xff] %vm652, 0.0
        %4583 = vst.msk [vmem:[#allocation2 + $0x70] sm:$0x3] %vm655, 0.0
        %4584 = vst.msk [vmem:[#allocation2 + $0x78] sm:$0xff] %vm652, 0.0
        %4585 = vst.msk [vmem:[#allocation2 + $0x80] sm:$0xff] %vm652, 0.0
        %4586 = vst.msk [vmem:[#allocation2 + $0x88] sm:$0x3] %vm655, 0.0
        %4587 = vst.msk [vmem:[#allocation2 + $0x90] sm:$0xff] %vm652, 0.0
        %4588 = vst.msk [vmem:[#allocation2 + $0x98] sm:$0xff] %vm652, 0.0
        %4589 = vst.msk [vmem:[#allocation2 + $0xa0] sm:$0x3] %vm655, 0.0
        %4590 = vst.msk [vmem:[#allocation2 + $0xa8] sm:$0xff] %vm652, 0.0
        %4591 = vst.msk [vmem:[#allocation2 + $0xb0] sm:$0xff] %vm652, 0.0
        %4592 = vst.msk [vmem:[#allocation2 + $0xb8] sm:$0x3] %vm655, 0.0
        %4593 = vst.msk [vmem:[#allocation2 + $0xc0] sm:$0xff] %vm652, 0.0
        %4594 = vst.msk [vmem:[#allocation2 + $0xc8] sm:$0xff] %vm652, 0.0
        %4595 = vst.msk [vmem:[#allocation2 + $0xd0] sm:$0x3] %vm655, 0.0
        %4596 = vst.msk [vmem:[#allocation2 + $0xd8] sm:$0xff] %vm652, 0.0
        %4597 = vst.msk [vmem:[#allocation2 + $0xe0] sm:$0xff] %vm652, 0.0
        %4598 = vst.msk [vmem:[#allocation2 + $0xe8] sm:$0x3] %vm655, 0.0
        %4599 = vst.msk [vmem:[#allocation2 + $0xf0] sm:$0xff] %vm652, 0.0
        %4600 = vst.msk [vmem:[#allocation2 + $0xf8] sm:$0xff] %vm652, 0.0
        %4601 = vst.msk [vmem:[#allocation2 + $0x100] sm:$0x3] %vm655, 0.0
        %4602 = vst.msk [vmem:[#allocation2 + $0x108] sm:$0xff] %vm652, 0.0
        %4603 = vst.msk [vmem:[#allocation2 + $0x110] sm:$0xff] %vm652, 0.0
        %4604 = vst.msk [vmem:[#allocation2 + $0x118] sm:$0x3] %vm655, 0.0
        %4605 = vst.msk [vmem:[#allocation2 + $0x120] sm:$0xff] %vm652, 0.0
        %4606 = vst.msk [vmem:[#allocation2 + $0x128] sm:$0xff] %vm652, 0.0
        %4607 = vst.msk [vmem:[#allocation2 + $0x130] sm:$0x3] %vm655, 0.0
        %4608 = vst.msk [vmem:[#allocation2 + $0x138] sm:$0xff] %vm652, 0.0
        %4609 = vst.msk [vmem:[#allocation2 + $0x140] sm:$0xff] %vm652, 0.0
        %4610 = vst.msk [vmem:[#allocation2 + $0x148] sm:$0x3] %vm655, 0.0
        %4611 = vst.msk [vmem:[#allocation2 + $0x150] sm:$0xff] %vm652, 0.0
        %4612 = vst.msk [vmem:[#allocation2 + $0x158] sm:$0xff] %vm652, 0.0
        %4613 = vst.msk [vmem:[#allocation2 + $0x160] sm:$0x3] %vm655, 0.0
        %4614 = vst.msk [vmem:[#allocation2 + $0x168] sm:$0xff] %vm652, 0.0
        %4615 = vst.msk [vmem:[#allocation2 + $0x170] sm:$0xff] %vm652, 0.0
        %4616 = vst.msk [vmem:[#allocation2 + $0x178] sm:$0x3] %vm655, 0.0
        %4617 = vst.msk [vmem:[#allocation2 + $0x180] sm:$0xff] %vm652, 0.0
        %4618 = vst.msk [vmem:[#allocation2 + $0x188] sm:$0xff] %vm652, 0.0
        %4619 = vst.msk [vmem:[#allocation2 + $0x190] sm:$0x3] %vm655, 0.0
        %4620 = vst.msk [vmem:[#allocation2 + $0x198] sm:$0xff] %vm652, 0.0
        %4621 = vst.msk [vmem:[#allocation2 + $0x1a0] sm:$0xff] %vm652, 0.0
        %4622 = vst.msk [vmem:[#allocation2 + $0x1a8] sm:$0x3] %vm655, 0.0
        %4623 = vst.msk [vmem:[%s708 + $0x1] sm:$0xff] %vm652, %v4561
        %4624 = vst.msk [vmem:[%s708 + $0x19] sm:$0xff] %vm652, %v4562
        %4625 = vst.msk [vmem:[%s708 + $0x31] sm:$0xff] %vm652, %v4563
        %4626 = vst.msk [vmem:[%s708 + $0x49] sm:$0xff] %vm652, %v4564
        %4627 = vst.msk [vmem:[%s708 + $0x61] sm:$0xff] %vm652, %v4565
        %4628 = vst.msk [vmem:[%s708 + $0x79] sm:$0xff] %vm652, %v4566
        %4629 = vst.msk [vmem:[%s708 + $0x91] sm:$0xff] %vm652, %v4567
        %4630 = vst.msk [vmem:[%s708 + $0xa9] sm:$0xff] %vm652, %v4568
        %v4631 = vld [vmem:[#allocation2] sm:$0xff]
        %v4632 = vld [vmem:[#allocation2 + $0x18] sm:$0xff]
        %v4633 = vld [vmem:[#allocation2 + $0x30] sm:$0xff]
        %v4634 = vld [vmem:[#allocation2 + $0x48] sm:$0xff]
        %v4635 = vld [vmem:[#allocation2 + $0x60] sm:$0xff]
        %v4636 = vld [vmem:[#allocation2 + $0x78] sm:$0xff]
        %v4637 = vld [vmem:[#allocation2 + $0x90] sm:$0xff]
        %v4638 = vld [vmem:[#allocation2 + $0xa8] sm:$0xff]
        %v4639 = vld [vmem:[#allocation2 + $0x1] sm:$0xff]
        %v4640 = vld [vmem:[#allocation2 + $0x19] sm:$0xff]
        %v4641 = vld [vmem:[#allocation2 + $0x31] sm:$0xff]
        %v4642 = vld [vmem:[#allocation2 + $0x49] sm:$0xff]
        %v4643 = vld [vmem:[#allocation2 + $0x61] sm:$0xff]
        %v4644 = vld [vmem:[#allocation2 + $0x79] sm:$0xff]
        %v4645 = vld [vmem:[#allocation2 + $0x91] sm:$0xff]
        %v4646 = vld [vmem:[#allocation2 + $0xa9] sm:$0xff]
        %v4647 = vld [vmem:[#allocation2 + $0x2] sm:$0xff]
        %v4648 = vld [vmem:[#allocation2 + $0x1a] sm:$0xff]
        %v4649 = vld [vmem:[#allocation2 + $0x32] sm:$0xff]
        %v4650 = vld [vmem:[#allocation2 + $0x4a] sm:$0xff]
        %v4651 = vld [vmem:[#allocation2 + $0x62] sm:$0xff]
        %v4652 = vld [vmem:[#allocation2 + $0x7a] sm:$0xff]
        %v4653 = vld [vmem:[#allocation2 + $0x92] sm:$0xff]
        %v4654 = vld [vmem:[#allocation2 + $0xaa] sm:$0xff]
        %v4655 = vld [vmem:[%s708] sm:$0xff]
        %v4656 = vld [vmem:[%s708 + $0x18] sm:$0xff]
        %v4657 = vld [vmem:[%s708 + $0x30] sm:$0xff]
        %v4658 = vld [vmem:[%s708 + $0x48] sm:$0xff]
        %v4659 = vld [vmem:[%s708 + $0x60] sm:$0xff]
        %v4660 = vld [vmem:[%s708 + $0x78] sm:$0xff]
        %v4661 = vld [vmem:[%s708 + $0x90] sm:$0xff]
        %v4662 = vld [vmem:[%s708 + $0xa8] sm:$0xff]
        %v4663 = vld [vmem:[%s708 + $0x1] sm:$0xff]
        %v4664 = vld [vmem:[%s708 + $0x19] sm:$0xff]
        %v4665 = vld [vmem:[%s708 + $0x31] sm:$0xff]
        %v4666 = vld [vmem:[%s708 + $0x49] sm:$0xff]
        %v4667 = vld [vmem:[%s708 + $0x61] sm:$0xff]
        %v4668 = vld [vmem:[%s708 + $0x79] sm:$0xff]
        %v4669 = vld [vmem:[%s708 + $0x91] sm:$0xff]
        %v4670 = vld [vmem:[%s708 + $0xa9] sm:$0xff]
        %v4671 = vld [vmem:[%s708 + $0x2] sm:$0xff]
        %v4672 = vld [vmem:[%s708 + $0x1a] sm:$0xff]
        %v4673 = vld [vmem:[%s708 + $0x32] sm:$0xff]
        %v4674 = vld [vmem:[%s708 + $0x4a] sm:$0xff]
        %v4675 = vld [vmem:[%s708 + $0x62] sm:$0xff]
        %v4676 = vld [vmem:[%s708 + $0x7a] sm:$0xff]
        %v4677 = vld [vmem:[%s708 + $0x92] sm:$0xff]
        %v4678 = vld [vmem:[%s708 + $0xaa] sm:$0xff]
        %v4679 = vld [vmem:[%s738] sm:$0xff]
        %v4680 = vld [vmem:[%s738 + $0x18] sm:$0xff]
        %v4681 = vld [vmem:[%s738 + $0x30] sm:$0xff]
        %v4682 = vld [vmem:[%s738 + $0x48] sm:$0xff]
        %v4683 = vld [vmem:[%s738 + $0x60] sm:$0xff]
        %v4684 = vld [vmem:[%s738 + $0x78] sm:$0xff]
        %v4685 = vld [vmem:[%s738 + $0x90] sm:$0xff]
        %v4686 = vld [vmem:[%s738 + $0xa8] sm:$0xff]
        %v4687 = vld [vmem:[%s738 + $0x1] sm:$0xff]
        %v4688 = vld [vmem:[%s738 + $0x19] sm:$0xff]
        %v4689 = vld [vmem:[%s738 + $0x31] sm:$0xff]
        %v4690 = vld [vmem:[%s738 + $0x49] sm:$0xff]
        %v4691 = vld [vmem:[%s738 + $0x61] sm:$0xff]
        %v4692 = vld [vmem:[%s738 + $0x79] sm:$0xff]
        %v4693 = vld [vmem:[%s738 + $0x91] sm:$0xff]
        %v4694 = vld [vmem:[%s738 + $0xa9] sm:$0xff]
        %v4695 = vld [vmem:[%s738 + $0x2] sm:$0xff]
        %v4696 = vld [vmem:[%s738 + $0x1a] sm:$0xff]
        %v4697 = vld [vmem:[%s738 + $0x32] sm:$0xff]
        %v4698 = vld [vmem:[%s738 + $0x4a] sm:$0xff]
        %v4699 = vld [vmem:[%s738 + $0x62] sm:$0xff]
        %v4700 = vld [vmem:[%s738 + $0x7a] sm:$0xff]
        %v4701 = vld [vmem:[%s738 + $0x92] sm:$0xff]
        %v4702 = vld [vmem:[%s738 + $0xaa] sm:$0xff]
        %4711 = vrot.lane.b32.xlu0 %v4639, 8
        %v4712 = vpop.permute.xlu0 %4711
        %4713 = vrot.lane.b32.xlu0 %v4640, 8
        %v4714 = vpop.permute.xlu0 %4713
        %4715 = vrot.lane.b32.xlu0 %v4641, 8
        %v4716 = vpop.permute.xlu0 %4715
        %4717 = vrot.lane.b32.xlu0 %v4642, 8
        %v4718 = vpop.permute.xlu0 %4717
        %4719 = vrot.lane.b32.xlu0 %v4643, 8
        %v4720 = vpop.permute.xlu0 %4719
        %4721 = vrot.lane.b32.xlu0 %v4644, 8
        %v4722 = vpop.permute.xlu0 %4721
        %4723 = vrot.lane.b32.xlu0 %v4645, 8
        %v4724 = vpop.permute.xlu0 %4723
        %4725 = vrot.lane.b32.xlu0 %v4646, 8
        %v4726 = vpop.permute.xlu0 %4725
        %4743 = vrot.lane.b32.xlu0 %v4647, 16
        %v4744 = vpop.permute.xlu0 %4743
        %4745 = vrot.lane.b32.xlu0 %v4648, 16
        %v4746 = vpop.permute.xlu0 %4745
        %4747 = vrot.lane.b32.xlu0 %v4649, 16
        %v4748 = vpop.permute.xlu0 %4747
        %4749 = vrot.lane.b32.xlu0 %v4650, 16
        %v4750 = vpop.permute.xlu0 %4749
        %4751 = vrot.lane.b32.xlu0 %v4651, 16
        %v4752 = vpop.permute.xlu0 %4751
        %4753 = vrot.lane.b32.xlu0 %v4652, 16
        %v4754 = vpop.permute.xlu0 %4753
        %4755 = vrot.lane.b32.xlu0 %v4653, 16
        %v4756 = vpop.permute.xlu0 %4755
        %4757 = vrot.lane.b32.xlu0 %v4654, 16
        %v4758 = vpop.permute.xlu0 %4757
        %4775 = vrot.lane.b32.xlu0 %v4655, 24
        %v4776 = vpop.permute.xlu0 %4775
        %4777 = vrot.lane.b32.xlu0 %v4656, 24
        %v4778 = vpop.permute.xlu0 %4777
        %4779 = vrot.lane.b32.xlu0 %v4657, 24
        %v4780 = vpop.permute.xlu0 %4779
        %4781 = vrot.lane.b32.xlu0 %v4658, 24
        %v4782 = vpop.permute.xlu0 %4781
        %4783 = vrot.lane.b32.xlu0 %v4659, 24
        %v4784 = vpop.permute.xlu0 %4783
        %4785 = vrot.lane.b32.xlu0 %v4660, 24
        %v4786 = vpop.permute.xlu0 %4785
        %4787 = vrot.lane.b32.xlu0 %v4661, 24
        %v4788 = vpop.permute.xlu0 %4787
        %4789 = vrot.lane.b32.xlu0 %v4662, 24
        %v4790 = vpop.permute.xlu0 %4789
        %4807 = vrot.lane.b32.xlu0 %v4663, 32
        %v4808 = vpop.permute.xlu0 %4807
        %4809 = vrot.lane.b32.xlu0 %v4664, 32
        %v4810 = vpop.permute.xlu0 %4809
        %4811 = vrot.lane.b32.xlu0 %v4665, 32
        %v4812 = vpop.permute.xlu0 %4811
        %4813 = vrot.lane.b32.xlu0 %v4666, 32
        %v4814 = vpop.permute.xlu0 %4813
        %4815 = vrot.lane.b32.xlu0 %v4667, 32
        %v4816 = vpop.permute.xlu0 %4815
        %4817 = vrot.lane.b32.xlu0 %v4668, 32
        %v4818 = vpop.permute.xlu0 %4817
        %4819 = vrot.lane.b32.xlu0 %v4669, 32
        %v4820 = vpop.permute.xlu0 %4819
        %4821 = vrot.lane.b32.xlu0 %v4670, 32
        %v4822 = vpop.permute.xlu0 %4821
        %4839 = vrot.lane.b32.xlu0 %v4671, 40
        %v4840 = vpop.permute.xlu0 %4839
        %4841 = vrot.lane.b32.xlu0 %v4672, 40
        %v4842 = vpop.permute.xlu0 %4841
        %4843 = vrot.lane.b32.xlu0 %v4673, 40
        %v4844 = vpop.permute.xlu0 %4843
        %4845 = vrot.lane.b32.xlu0 %v4674, 40
        %v4846 = vpop.permute.xlu0 %4845
        %4847 = vrot.lane.b32.xlu0 %v4675, 40
        %v4848 = vpop.permute.xlu0 %4847
        %4849 = vrot.lane.b32.xlu0 %v4676, 40
        %v4850 = vpop.permute.xlu0 %4849
        %4851 = vrot.lane.b32.xlu0 %v4677, 40
        %v4852 = vpop.permute.xlu0 %4851
        %4853 = vrot.lane.b32.xlu0 %v4678, 40
        %v4854 = vpop.permute.xlu0 %4853
        %4871 = vrot.lane.b32.xlu0 %v4679, 48
        %v4872 = vpop.permute.xlu0 %4871
        %4873 = vrot.lane.b32.xlu0 %v4680, 48
        %v4874 = vpop.permute.xlu0 %4873
        %4875 = vrot.lane.b32.xlu0 %v4681, 48
        %v4876 = vpop.permute.xlu0 %4875
        %4877 = vrot.lane.b32.xlu0 %v4682, 48
        %v4878 = vpop.permute.xlu0 %4877
        %4879 = vrot.lane.b32.xlu0 %v4683, 48
        %v4880 = vpop.permute.xlu0 %4879
        %4881 = vrot.lane.b32.xlu0 %v4684, 48
        %v4882 = vpop.permute.xlu0 %4881
        %4883 = vrot.lane.b32.xlu0 %v4685, 48
        %v4884 = vpop.permute.xlu0 %4883
        %4885 = vrot.lane.b32.xlu0 %v4686, 48
        %v4886 = vpop.permute.xlu0 %4885
        %4903 = vrot.lane.b32.xlu0 %v4687, 56
        %v4904 = vpop.permute.xlu0 %4903
        %4905 = vrot.lane.b32.xlu0 %v4688, 56
        %v4906 = vpop.permute.xlu0 %4905
        %4907 = vrot.lane.b32.xlu0 %v4689, 56
        %v4908 = vpop.permute.xlu0 %4907
        %4909 = vrot.lane.b32.xlu0 %v4690, 56
        %v4910 = vpop.permute.xlu0 %4909
        %4911 = vrot.lane.b32.xlu0 %v4691, 56
        %v4912 = vpop.permute.xlu0 %4911
        %4913 = vrot.lane.b32.xlu0 %v4692, 56
        %v4914 = vpop.permute.xlu0 %4913
        %4915 = vrot.lane.b32.xlu0 %v4693, 56
        %v4916 = vpop.permute.xlu0 %4915
        %4917 = vrot.lane.b32.xlu0 %v4694, 56
        %v4918 = vpop.permute.xlu0 %4917
        %4935 = vrot.lane.b32.xlu0 %v4695, 64
        %v4936 = vpop.permute.xlu0 %4935
        %4937 = vrot.lane.b32.xlu0 %v4696, 64
        %v4938 = vpop.permute.xlu0 %4937
        %4939 = vrot.lane.b32.xlu0 %v4697, 64
        %v4940 = vpop.permute.xlu0 %4939
        %4941 = vrot.lane.b32.xlu0 %v4698, 64
        %v4942 = vpop.permute.xlu0 %4941
        %4943 = vrot.lane.b32.xlu0 %v4699, 64
        %v4944 = vpop.permute.xlu0 %4943
        %4945 = vrot.lane.b32.xlu0 %v4700, 64
        %v4946 = vpop.permute.xlu0 %4945
        %4947 = vrot.lane.b32.xlu0 %v4701, 64
        %v4948 = vpop.permute.xlu0 %4947
        %4949 = vrot.lane.b32.xlu0 %v4702, 64
        %v4950 = vpop.permute.xlu0 %4949
        %v4959 = vsel %vm652, %v4631, %v4712
        %v4960 = vsel %vm652, %v4632, %v4714
        %v4961 = vsel %vm652, %v4633, %v4716
        %v4962 = vsel %vm652, %v4634, %v4718
        %v4963 = vsel %vm652, %v4635, %v4720
        %v4964 = vsel %vm652, %v4636, %v4722
        %v4965 = vsel %vm652, %v4637, %v4724
        %v4966 = vsel %vm652, %v4638, %v4726
        %v4967 = vsel %vm920, %v4959, %v4744
        %v4968 = vsel %vm920, %v4960, %v4746
        %v4969 = vsel %vm920, %v4961, %v4748
        %v4970 = vsel %vm920, %v4962, %v4750
        %v4971 = vsel %vm920, %v4963, %v4752
        %v4972 = vsel %vm920, %v4964, %v4754
        %v4973 = vsel %vm920, %v4965, %v4756
        %v4974 = vsel %vm920, %v4966, %v4758
        %v4975 = vsel %vm923, %v4967, %v4776
        %v4976 = vsel %vm923, %v4968, %v4778
        %v4977 = vsel %vm923, %v4969, %v4780
        %v4978 = vsel %vm923, %v4970, %v4782
        %v4979 = vsel %vm923, %v4971, %v4784
        %v4980 = vsel %vm923, %v4972, %v4786
        %v4981 = vsel %vm923, %v4973, %v4788
        %v4982 = vsel %vm923, %v4974, %v4790
        %v4983 = vsel %vm926, %v4975, %v4808
        %v4984 = vsel %vm926, %v4976, %v4810
        %v4985 = vsel %vm926, %v4977, %v4812
        %v4986 = vsel %vm926, %v4978, %v4814
        %v4987 = vsel %vm926, %v4979, %v4816
        %v4988 = vsel %vm926, %v4980, %v4818
        %v4989 = vsel %vm926, %v4981, %v4820
        %v4990 = vsel %vm926, %v4982, %v4822
        %v4991 = vsel %vm929, %v4983, %v4840
        %v4992 = vsel %vm929, %v4984, %v4842
        %v4993 = vsel %vm929, %v4985, %v4844
        %v4994 = vsel %vm929, %v4986, %v4846
        %v4995 = vsel %vm929, %v4987, %v4848
        %v4996 = vsel %vm929, %v4988, %v4850
        %v4997 = vsel %vm929, %v4989, %v4852
        %v4998 = vsel %vm929, %v4990, %v4854
        %v4999 = vsel %vm932, %v4991, %v4872
        %v5000 = vsel %vm932, %v4992, %v4874
        %v5001 = vsel %vm932, %v4993, %v4876
        %v5002 = vsel %vm932, %v4994, %v4878
        %v5003 = vsel %vm932, %v4995, %v4880
        %v5004 = vsel %vm932, %v4996, %v4882
        %v5005 = vsel %vm932, %v4997, %v4884
        %v5006 = vsel %vm932, %v4998, %v4886
        %v5007 = vsel %vm935, %v4999, %v4904
        %v5008 = vsel %vm935, %v5000, %v4906
        %v5009 = vsel %vm935, %v5001, %v4908
        %v5010 = vsel %vm935, %v5002, %v4910
        %v5011 = vsel %vm935, %v5003, %v4912
        %v5012 = vsel %vm935, %v5004, %v4914
        %v5013 = vsel %vm935, %v5005, %v4916
        %v5014 = vsel %vm935, %v5006, %v4918
        %v5015 = vsel %vm938, %v5007, %v4936
        %v5016 = vsel %vm938, %v5008, %v4938
        %v5017 = vsel %vm938, %v5009, %v4940
        %v5018 = vsel %vm938, %v5010, %v4942
        %v5019 = vsel %vm938, %v5011, %v4944
        %v5020 = vsel %vm938, %v5012, %v4946
        %v5021 = vsel %vm938, %v5013, %v4948
        %v5022 = vsel %vm938, %v5014, %v4950
        %v5023 = vpack.c.bf16 %v5016, %v5015
        %v5024 = vpack.c.bf16 %v5018, %v5017
        %v5025 = vpack.c.bf16 %v5020, %v5019
        %v5026 = vpack.c.bf16 %v5022, %v5021
        %v5027 = vld [vmem:[%s8] sm:$0xf]
        %v5028 = vld [vmem:[%s8 + $0x4] sm:$0xf]
        %v5029 = vld [vmem:[%s8 + $0x8] sm:$0xf]
        %v5030 = vld [vmem:[%s8 + $0xc] sm:$0xf]
        %v5031 = vld [vmem:[%s8 + $0x10] sm:$0xf]
        %v5032 = vld [vmem:[%s8 + $0x14] sm:$0xf]
        %v5033 = vld [vmem:[%s8 + $0x18] sm:$0xf]
        %v5034 = vld [vmem:[%s8 + $0x1c] sm:$0xf]
        %v5035 = vld [vmem:[%s8 + $0x20] sm:$0xf]
        %v5036 = vld [vmem:[%s9] sm:$0x1]
        %v5038 = vperm.slane %v5036, 0
        %v5049 = vunpack.c.l.b16 %v5027
        %v5050 = vunpack.c.l.b16 %v5028
        %v5051 = vunpack.c.l.b16 %v5029
        %v5052 = vunpack.c.l.b16 %v5030
        %v5053 = vunpack.c.l.b16 %v5031
        %v5054 = vunpack.c.l.b16 %v5032
        %v5055 = vunpack.c.l.b16 %v5033
        %v5056 = vunpack.c.l.b16 %v5034
        %v5057 = vunpack.c.l.b16 %v5035
        %v5058 = vpack.c.b16 %v5050, %v5049
        %v5059 = vpack.c.b16 %v5052, %v5051
        %v5060 = vpack.c.b16 %v5054, %v5053
        %v5061 = vpack.c.b16 %v5056, %v5055
        %v5062 = vpack.c.b16 %v5057, %v5057
        %v5068 = vsel %vm982, %v5023, 0
        %v5071 = vsel %vm982, %v5024, 0
        %v5074 = vsel %vm982, %v5025, 0
        %v5077 = vsel %vm982, %v5026, 0
        %v5080 = vsel %vm986, %v5062, 0
        %5082 = vmatpush.bf16.msra.mxu0 0
        %5083 = vmatpush.bf16.msra.mxu0 0
        %5084 = vmatpush.bf16.msra.mxu0 0
        %5085 = vmatpush.bf16.msra.mxu0 %v5080
        %5086 = vmatpush.bf16.msra.mxu0 %v5061
        %5087 = vmatpush.bf16.msra.mxu0 %v5060
        %5088 = vmatpush.bf16.msra.mxu0 %v5059
        %5089 = vmatpush.bf16.msra.mxu0 %v5058
        %5090 = vmatmul.bf16.gmra.mxu0 %v5068
        %v5091 = vpop.f32.mrf.mxu0
        %v5092 = vadd.f32 %v5038, %v5091
        %v5093 = vpop.f32.mrf.mxu0
        %v5094 = vadd.f32 %v5038, %v5093
        %5095 = vmatmul.bf16.gmra.mxu0 %v5071
        %v5096 = vpop.f32.mrf.mxu0
        %v5097 = vadd.f32 %v5038, %v5096
        %v5098 = vpop.f32.mrf.mxu0
        %v5099 = vadd.f32 %v5038, %v5098
        %5100 = vmatmul.bf16.gmra.mxu0 %v5074
        %v5101 = vpop.f32.mrf.mxu0
        %v5102 = vadd.f32 %v5038, %v5101
        %v5103 = vpop.f32.mrf.mxu0
        %v5104 = vadd.f32 %v5038, %v5103
        %5105 = vmatmul.bf16.gmra.mxu0 %v5077
        %v5106 = vpop.f32.mrf.mxu0
        %v5107 = vadd.f32 %v5038, %v5106
        %v5108 = vpop.f32.mrf.mxu0
        %v5109 = vadd.f32 %v5038, %v5108
        %5110 = vdwg.mxu0
        %v5111 = vmax.f32 %v5092, 0.0
        %v5112 = vmax.f32 %v5094, 0.0
        %v5113 = vmax.f32 %v5097, 0.0
        %v5114 = vmax.f32 %v5099, 0.0
        %v5115 = vmax.f32 %v5102, 0.0
        %v5116 = vmax.f32 %v5104, 0.0
        %v5117 = vmax.f32 %v5107, 0.0
        %v5118 = vmax.f32 %v5109, 0.0
        %v5119 = vmul.f32 %v3887, %v589
        %v5120 = vmul.f32 %v3887, %v590
        %v5121 = vmul.f32 %v3887, %v591
        %v5122 = vmul.f32 %v3887, %v592
        %v5123 = vmul.f32 %v3896, %v1004
        %v5124 = vmul.f32 %v3896, %v1008
        %v5125 = vmul.f32 %v3896, %v1005
        %v5126 = vmul.f32 %v3896, %v1009
        %v5127 = vadd.f32 %v5119, %v5123
        %v5128 = vadd.f32 %v5120, %v5124
        %v5129 = vadd.f32 %v5121, %v5125
        %v5130 = vadd.f32 %v5122, %v5126
        %v5131 = vmax.f32 %v5111, %v5112
        %v5132 = vmax.f32 %v5113, %v5114
        %v5133 = vmax.f32 %v5115, %v5116
        %v5134 = vmax.f32 %v5117, %v5118
        %v5139 = vrot.slane %v5131, 2
        %v5140 = vrot.slane %v5131, 4
        %v5141 = vrot.slane %v5131, 6
        %v5142 = vrot.slane %v5132, 2
        %v5143 = vrot.slane %v5132, 4
        %v5144 = vrot.slane %v5132, 6
        %v5145 = vrot.slane %v5133, 2
        %v5146 = vrot.slane %v5133, 4
        %v5147 = vrot.slane %v5133, 6
        %v5148 = vrot.slane %v5134, 2
        %v5149 = vrot.slane %v5134, 4
        %v5150 = vrot.slane %v5134, 6
        %v5163 = vrot.slane %v5131, 7
        %v5164 = vrot.slane %v5163, 2
        %v5165 = vrot.slane %v5139, 7
        %v5166 = vrot.slane %v5165, 2
        %v5167 = vrot.slane %v5140, 7
        %v5168 = vrot.slane %v5167, 2
        %v5169 = vrot.slane %v5141, 7
        %v5170 = vrot.slane %v5169, 2
        %v5171 = vrot.slane %v5132, 7
        %v5172 = vrot.slane %v5171, 2
        %v5173 = vrot.slane %v5142, 7
        %v5174 = vrot.slane %v5173, 2
        %v5175 = vrot.slane %v5143, 7
        %v5176 = vrot.slane %v5175, 2
        %v5177 = vrot.slane %v5144, 7
        %v5178 = vrot.slane %v5177, 2
        %v5179 = vrot.slane %v5133, 7
        %v5180 = vrot.slane %v5179, 2
        %v5181 = vrot.slane %v5145, 7
        %v5182 = vrot.slane %v5181, 2
        %v5183 = vrot.slane %v5146, 7
        %v5184 = vrot.slane %v5183, 2
        %v5185 = vrot.slane %v5147, 7
        %v5186 = vrot.slane %v5185, 2
        %v5187 = vrot.slane %v5134, 7
        %v5188 = vrot.slane %v5187, 2
        %v5189 = vrot.slane %v5148, 7
        %v5190 = vrot.slane %v5189, 2
        %v5191 = vrot.slane %v5149, 7
        %v5192 = vrot.slane %v5191, 2
        %v5193 = vrot.slane %v5150, 7
        %v5194 = vrot.slane %v5193, 2
        %v5211 = vmax.f32 %v5131, %v5164
        %v5212 = vmax.f32 %v5139, %v5166
        %v5213 = vmax.f32 %v5140, %v5168
        %v5214 = vmax.f32 %v5141, %v5170
        %v5215 = vmax.f32 %v5132, %v5172
        %v5216 = vmax.f32 %v5142, %v5174
        %v5217 = vmax.f32 %v5143, %v5176
        %v5218 = vmax.f32 %v5144, %v5178
        %v5219 = vmax.f32 %v5133, %v5180
        %v5220 = vmax.f32 %v5145, %v5182
        %v5221 = vmax.f32 %v5146, %v5184
        %v5222 = vmax.f32 %v5147, %v5186
        %v5223 = vmax.f32 %v5134, %v5188
        %v5224 = vmax.f32 %v5148, %v5190
        %v5225 = vmax.f32 %v5149, %v5192
        %v5226 = vmax.f32 %v5150, %v5194
        %v5227 = vmul.f32 %v4297, %v5211
        %v5228 = vmul.f32 %v4297, %v5212
        %v5229 = vmul.f32 %v4297, %v5213
        %v5230 = vmul.f32 %v4297, %v5214
        %v5231 = vmul.f32 %v4297, %v5215
        %v5232 = vmul.f32 %v4297, %v5216
        %v5233 = vmul.f32 %v4297, %v5217
        %v5234 = vmul.f32 %v4297, %v5218
        %v5235 = vmul.f32 %v4297, %v5219
        %v5236 = vmul.f32 %v4297, %v5220
        %v5237 = vmul.f32 %v4297, %v5221
        %v5238 = vmul.f32 %v4297, %v5222
        %v5239 = vmul.f32 %v4297, %v5223
        %v5240 = vmul.f32 %v4297, %v5224
        %v5241 = vmul.f32 %v4297, %v5225
        %v5242 = vmul.f32 %v4297, %v5226
        %v5259 = vperm.slane %v5227, 0
        %v5260 = vperm.slane %v5228, 0
        %v5261 = vperm.slane %v5229, 0
        %v5262 = vperm.slane %v5230, 0
        %v5263 = vperm.slane %v5231, 0
        %v5264 = vperm.slane %v5232, 0
        %v5265 = vperm.slane %v5233, 0
        %v5266 = vperm.slane %v5234, 0
        %v5267 = vperm.slane %v5235, 0
        %v5268 = vperm.slane %v5236, 0
        %v5269 = vperm.slane %v5237, 0
        %v5270 = vperm.slane %v5238, 0
        %v5271 = vperm.slane %v5239, 0
        %v5272 = vperm.slane %v5240, 0
        %v5273 = vperm.slane %v5241, 0
        %v5274 = vperm.slane %v5242, 0
        %v5275 = vsel %vm4490, %v5260, %v5259
        %v5276 = vsel %vm4492, %v5261, %v5275
        %v5277 = vsel %vm4494, %v5262, %v5276
        %v5278 = vsel %vm4490, %v5264, %v5263
        %v5279 = vsel %vm4492, %v5265, %v5278
        %v5280 = vsel %vm4494, %v5266, %v5279
        %v5281 = vsel %vm4490, %v5268, %v5267
        %v5282 = vsel %vm4492, %v5269, %v5281
        %v5283 = vsel %vm4494, %v5270, %v5282
        %v5284 = vsel %vm4490, %v5272, %v5271
        %v5285 = vsel %vm4492, %v5273, %v5284
        %v5286 = vsel %vm4494, %v5274, %v5285
        %v5291 = vadd.f32 %v5127, %v5277
        %v5292 = vadd.f32 %v5128, %v5280
        %v5293 = vadd.f32 %v5129, %v5283
        %v5294 = vadd.f32 %v5130, %v5286
        %5295 = vst.msk [vmem:[#allocation2] sm:$0xff] %vm652, 0.0
        %5296 = vst.msk [vmem:[#allocation2 + $0x8] sm:$0xff] %vm652, 0.0
        %5297 = vst.msk [vmem:[#allocation2 + $0x10] sm:$0x3] %vm655, 0.0
        %5298 = vst.msk [vmem:[#allocation2 + $0x18] sm:$0xff] %vm652, 0.0
        %5299 = vst.msk [vmem:[#allocation2 + $0x20] sm:$0xff] %vm652, 0.0
        %5300 = vst.msk [vmem:[#allocation2 + $0x28] sm:$0x3] %vm655, 0.0
        %5301 = vst.msk [vmem:[#allocation2 + $0x30] sm:$0xff] %vm652, 0.0
        %5302 = vst.msk [vmem:[#allocation2 + $0x38] sm:$0xff] %vm652, 0.0
        %5303 = vst.msk [vmem:[#allocation2 + $0x40] sm:$0x3] %vm655, 0.0
        %5304 = vst.msk [vmem:[#allocation2 + $0x48] sm:$0xff] %vm652, 0.0
        %5305 = vst.msk [vmem:[#allocation2 + $0x50] sm:$0xff] %vm652, 0.0
        %5306 = vst.msk [vmem:[#allocation2 + $0x58] sm:$0x3] %vm655, 0.0
        %5307 = vst.msk [vmem:[#allocation2 + $0x60] sm:$0xff] %vm652, 0.0
        %5308 = vst.msk [vmem:[#allocation2 + $0x68] sm:$0xff] %vm652, 0.0
        %5309 = vst.msk [vmem:[#allocation2 + $0x70] sm:$0x3] %vm655, 0.0
        %5310 = vst.msk [vmem:[#allocation2 + $0x78] sm:$0xff] %vm652, 0.0
        %5311 = vst.msk [vmem:[#allocation2 + $0x80] sm:$0xff] %vm652, 0.0
        %5312 = vst.msk [vmem:[#allocation2 + $0x88] sm:$0x3] %vm655, 0.0
        %5313 = vst.msk [vmem:[#allocation2 + $0x90] sm:$0xff] %vm652, 0.0
        %5314 = vst.msk [vmem:[#allocation2 + $0x98] sm:$0xff] %vm652, 0.0
        %5315 = vst.msk [vmem:[#allocation2 + $0xa0] sm:$0x3] %vm655, 0.0
        %5316 = vst.msk [vmem:[#allocation2 + $0xa8] sm:$0xff] %vm652, 0.0
        %5317 = vst.msk [vmem:[#allocation2 + $0xb0] sm:$0xff] %vm652, 0.0
        %5318 = vst.msk [vmem:[#allocation2 + $0xb8] sm:$0x3] %vm655, 0.0
        %5319 = vst.msk [vmem:[#allocation2 + $0xc0] sm:$0xff] %vm652, 0.0
        %5320 = vst.msk [vmem:[#allocation2 + $0xc8] sm:$0xff] %vm652, 0.0
        %5321 = vst.msk [vmem:[#allocation2 + $0xd0] sm:$0x3] %vm655, 0.0
        %5322 = vst.msk [vmem:[#allocation2 + $0xd8] sm:$0xff] %vm652, 0.0
        %5323 = vst.msk [vmem:[#allocation2 + $0xe0] sm:$0xff] %vm652, 0.0
        %5324 = vst.msk [vmem:[#allocation2 + $0xe8] sm:$0x3] %vm655, 0.0
        %5325 = vst.msk [vmem:[#allocation2 + $0xf0] sm:$0xff] %vm652, 0.0
        %5326 = vst.msk [vmem:[#allocation2 + $0xf8] sm:$0xff] %vm652, 0.0
        %5327 = vst.msk [vmem:[#allocation2 + $0x100] sm:$0x3] %vm655, 0.0
        %5328 = vst.msk [vmem:[#allocation2 + $0x108] sm:$0xff] %vm652, 0.0
        %5329 = vst.msk [vmem:[#allocation2 + $0x110] sm:$0xff] %vm652, 0.0
        %5330 = vst.msk [vmem:[#allocation2 + $0x118] sm:$0x3] %vm655, 0.0
        %5331 = vst.msk [vmem:[#allocation2 + $0x120] sm:$0xff] %vm652, 0.0
        %5332 = vst.msk [vmem:[#allocation2 + $0x128] sm:$0xff] %vm652, 0.0
        %5333 = vst.msk [vmem:[#allocation2 + $0x130] sm:$0x3] %vm655, 0.0
        %5334 = vst.msk [vmem:[#allocation2 + $0x138] sm:$0xff] %vm652, 0.0
        %5335 = vst.msk [vmem:[#allocation2 + $0x140] sm:$0xff] %vm652, 0.0
        %5336 = vst.msk [vmem:[#allocation2 + $0x148] sm:$0x3] %vm655, 0.0
        %5337 = vst.msk [vmem:[#allocation2 + $0x150] sm:$0xff] %vm652, 0.0
        %5338 = vst.msk [vmem:[#allocation2 + $0x158] sm:$0xff] %vm652, 0.0
        %5339 = vst.msk [vmem:[#allocation2 + $0x160] sm:$0x3] %vm655, 0.0
        %5340 = vst.msk [vmem:[#allocation2 + $0x168] sm:$0xff] %vm652, 0.0
        %5341 = vst.msk [vmem:[#allocation2 + $0x170] sm:$0xff] %vm652, 0.0
        %5342 = vst.msk [vmem:[#allocation2 + $0x178] sm:$0x3] %vm655, 0.0
        %5343 = vst.msk [vmem:[#allocation2 + $0x180] sm:$0xff] %vm652, 0.0
        %5344 = vst.msk [vmem:[#allocation2 + $0x188] sm:$0xff] %vm652, 0.0
        %5345 = vst.msk [vmem:[#allocation2 + $0x190] sm:$0x3] %vm655, 0.0
        %5346 = vst.msk [vmem:[#allocation2 + $0x198] sm:$0xff] %vm652, 0.0
        %5347 = vst.msk [vmem:[#allocation2 + $0x1a0] sm:$0xff] %vm652, 0.0
        %5348 = vst.msk [vmem:[#allocation2 + $0x1a8] sm:$0x3] %vm655, 0.0
        %5349 = vst.msk [vmem:[%s708 + $0x1] sm:$0xf] %vm709, %v5291
        %5350 = vst.msk [vmem:[%s708 + $0x19] sm:$0xf] %vm709, %v5292
        %5351 = vst.msk [vmem:[%s708 + $0x31] sm:$0xf] %vm709, %v5293
        %5352 = vst.msk [vmem:[%s708 + $0x49] sm:$0xf] %vm709, %v5294
        %v5353 = vld [vmem:[#allocation2] sm:$0xf]
        %v5354 = vld [vmem:[#allocation2 + $0x18] sm:$0xf]
        %v5355 = vld [vmem:[#allocation2 + $0x30] sm:$0xf]
        %v5356 = vld [vmem:[#allocation2 + $0x48] sm:$0xf]
        %v5357 = vld [vmem:[#allocation2 + $0x1] sm:$0xf]
        %v5358 = vld [vmem:[#allocation2 + $0x19] sm:$0xf]
        %v5359 = vld [vmem:[#allocation2 + $0x31] sm:$0xf]
        %v5360 = vld [vmem:[#allocation2 + $0x49] sm:$0xf]
        %v5361 = vld [vmem:[#allocation2 + $0x2] sm:$0xf]
        %v5362 = vld [vmem:[#allocation2 + $0x1a] sm:$0xf]
        %v5363 = vld [vmem:[#allocation2 + $0x32] sm:$0xf]
        %v5364 = vld [vmem:[#allocation2 + $0x4a] sm:$0xf]
        %v5365 = vld [vmem:[%s708] sm:$0xf]
        %v5366 = vld [vmem:[%s708 + $0x18] sm:$0xf]
        %v5367 = vld [vmem:[%s708 + $0x30] sm:$0xf]
        %v5368 = vld [vmem:[%s708 + $0x48] sm:$0xf]
        %v5369 = vld [vmem:[%s708 + $0x1] sm:$0xf]
        %v5370 = vld [vmem:[%s708 + $0x19] sm:$0xf]
        %v5371 = vld [vmem:[%s708 + $0x31] sm:$0xf]
        %v5372 = vld [vmem:[%s708 + $0x49] sm:$0xf]
        %v5373 = vld [vmem:[%s708 + $0x2] sm:$0xf]
        %v5374 = vld [vmem:[%s708 + $0x1a] sm:$0xf]
        %v5375 = vld [vmem:[%s708 + $0x32] sm:$0xf]
        %v5376 = vld [vmem:[%s708 + $0x4a] sm:$0xf]
        %v5377 = vld [vmem:[%s738] sm:$0xf]
        %v5378 = vld [vmem:[%s738 + $0x18] sm:$0xf]
        %v5379 = vld [vmem:[%s738 + $0x30] sm:$0xf]
        %v5380 = vld [vmem:[%s738 + $0x48] sm:$0xf]
        %v5381 = vld [vmem:[%s738 + $0x1] sm:$0xf]
        %v5382 = vld [vmem:[%s738 + $0x19] sm:$0xf]
        %v5383 = vld [vmem:[%s738 + $0x31] sm:$0xf]
        %v5384 = vld [vmem:[%s738 + $0x49] sm:$0xf]
        %v5385 = vld [vmem:[%s738 + $0x2] sm:$0xf]
        %v5386 = vld [vmem:[%s738 + $0x1a] sm:$0xf]
        %v5387 = vld [vmem:[%s738 + $0x32] sm:$0xf]
        %v5388 = vld [vmem:[%s738 + $0x4a] sm:$0xf]
        %5393 = vst [vmem:[#allocation1] ss:$2 sm:$0xff] %v5353
        %s5394 = scalar_lea.vmem [#allocation1], 1
        %5395 = vst [vmem:[%s5394] ss:$2 sm:$0xff] %v5354
        %s5396 = scalar_lea.vmem [#allocation1], 16
        %5397 = vst [vmem:[%s5396] ss:$2 sm:$0xff] %v5355
        %s5398 = scalar_lea.vmem [#allocation1], 17
        %5399 = vst [vmem:[%s5398] ss:$2 sm:$0xff] %v5356
        %v5400 = vld.sshfl [vmem:[#allocation1] sm:$0xff pattern:$0x75316420]
        %v5401 = vld.sshfl [vmem:[#allocation1 + $0x10] sm:$0xff pattern:$0x75316420]
        %5408 = vst [vmem:[#allocation1] ss:$2 sm:$0xff] %v5357
        %s5409 = scalar_lea.vmem [#allocation1], 1
        %5410 = vst [vmem:[%s5409] ss:$2 sm:$0xff] %v5358
        %s5411 = scalar_lea.vmem [#allocation1], 16
        %5412 = vst [vmem:[%s5411] ss:$2 sm:$0xff] %v5359
        %s5413 = scalar_lea.vmem [#allocation1], 17
        %5414 = vst [vmem:[%s5413] ss:$2 sm:$0xff] %v5360
        %v5415 = vld.sshfl [vmem:[#allocation1] sm:$0xff pattern:$0x75316420]
        %v5416 = vld.sshfl [vmem:[#allocation1 + $0x10] sm:$0xff pattern:$0x75316420]
        %5417 = vrot.lane.b32.xlu0 %v5415, 8
        %v5418 = vpop.permute.xlu0 %5417
        %5419 = vrot.lane.b32.xlu0 %v5416, 8
        %v5420 = vpop.permute.xlu0 %5419
        %5427 = vst [vmem:[#allocation1] ss:$2 sm:$0xff] %v5361
        %s5428 = scalar_lea.vmem [#allocation1], 1
        %5429 = vst [vmem:[%s5428] ss:$2 sm:$0xff] %v5362
        %s5430 = scalar_lea.vmem [#allocation1], 16
        %5431 = vst [vmem:[%s5430] ss:$2 sm:$0xff] %v5363
        %s5432 = scalar_lea.vmem [#allocation1], 17
        %5433 = vst [vmem:[%s5432] ss:$2 sm:$0xff] %v5364
        %v5434 = vld.sshfl [vmem:[#allocation1] sm:$0xff pattern:$0x75316420]
        %v5435 = vld.sshfl [vmem:[#allocation1 + $0x10] sm:$0xff pattern:$0x75316420]
        %5436 = vrot.lane.b32.xlu0 %v5434, 16
        %v5437 = vpop.permute.xlu0 %5436
        %5438 = vrot.lane.b32.xlu0 %v5435, 16
        %v5439 = vpop.permute.xlu0 %5438
        %5446 = vst [vmem:[#allocation1] ss:$2 sm:$0xff] %v5365
        %s5447 = scalar_lea.vmem [#allocation1], 1
        %5448 = vst [vmem:[%s5447] ss:$2 sm:$0xff] %v5366
        %s5449 = scalar_lea.vmem [#allocation1], 16
        %5450 = vst [vmem:[%s5449] ss:$2 sm:$0xff] %v5367
        %s5451 = scalar_lea.vmem [#allocation1], 17
        %5452 = vst [vmem:[%s5451] ss:$2 sm:$0xff] %v5368
        %v5453 = vld.sshfl [vmem:[#allocation1] sm:$0xff pattern:$0x75316420]
        %v5454 = vld.sshfl [vmem:[#allocation1 + $0x10] sm:$0xff pattern:$0x75316420]
        %5455 = vrot.lane.b32.xlu0 %v5453, 24
        %v5456 = vpop.permute.xlu0 %5455
        %5457 = vrot.lane.b32.xlu0 %v5454, 24
        %v5458 = vpop.permute.xlu0 %5457
        %5465 = vst [vmem:[#allocation1] ss:$2 sm:$0xff] %v5369
        %s5466 = scalar_lea.vmem [#allocation1], 1
        %5467 = vst [vmem:[%s5466] ss:$2 sm:$0xff] %v5370
        %s5468 = scalar_lea.vmem [#allocation1], 16
        %5469 = vst [vmem:[%s5468] ss:$2 sm:$0xff] %v5371
        %s5470 = scalar_lea.vmem [#allocation1], 17
        %5471 = vst [vmem:[%s5470] ss:$2 sm:$0xff] %v5372
        %v5472 = vld.sshfl [vmem:[#allocation1] sm:$0xff pattern:$0x75316420]
        %v5473 = vld.sshfl [vmem:[#allocation1 + $0x10] sm:$0xff pattern:$0x75316420]
        %5474 = vrot.lane.b32.xlu0 %v5472, 32
        %v5475 = vpop.permute.xlu0 %5474
        %5476 = vrot.lane.b32.xlu0 %v5473, 32
        %v5477 = vpop.permute.xlu0 %5476
        %5484 = vst [vmem:[#allocation1] ss:$2 sm:$0xff] %v5373
        %s5485 = scalar_lea.vmem [#allocation1], 1
        %5486 = vst [vmem:[%s5485] ss:$2 sm:$0xff] %v5374
        %s5487 = scalar_lea.vmem [#allocation1], 16
        %5488 = vst [vmem:[%s5487] ss:$2 sm:$0xff] %v5375
        %s5489 = scalar_lea.vmem [#allocation1], 17
        %5490 = vst [vmem:[%s5489] ss:$2 sm:$0xff] %v5376
        %v5491 = vld.sshfl [vmem:[#allocation1] sm:$0xff pattern:$0x75316420]
        %v5492 = vld.sshfl [vmem:[#allocation1 + $0x10] sm:$0xff pattern:$0x75316420]
        %5493 = vrot.lane.b32.xlu0 %v5491, 40
        %v5494 = vpop.permute.xlu0 %5493
        %5495 = vrot.lane.b32.xlu0 %v5492, 40
        %v5496 = vpop.permute.xlu0 %5495
        %5503 = vst [vmem:[#allocation1] ss:$2 sm:$0xff] %v5377
        %s5504 = scalar_lea.vmem [#allocation1], 1
        %5505 = vst [vmem:[%s5504] ss:$2 sm:$0xff] %v5378
        %s5506 = scalar_lea.vmem [#allocation1], 16
        %5507 = vst [vmem:[%s5506] ss:$2 sm:$0xff] %v5379
        %s5508 = scalar_lea.vmem [#allocation1], 17
        %5509 = vst [vmem:[%s5508] ss:$2 sm:$0xff] %v5380
        %v5510 = vld.sshfl [vmem:[#allocation1] sm:$0xff pattern:$0x75316420]
        %v5511 = vld.sshfl [vmem:[#allocation1 + $0x10] sm:$0xff pattern:$0x75316420]
        %5512 = vrot.lane.b32.xlu0 %v5510, 48
        %v5513 = vpop.permute.xlu0 %5512
        %5514 = vrot.lane.b32.xlu0 %v5511, 48
        %v5515 = vpop.permute.xlu0 %5514
        %5522 = vst [vmem:[#allocation1] ss:$2 sm:$0xff] %v5381
        %s5523 = scalar_lea.vmem [#allocation1], 1
        %5524 = vst [vmem:[%s5523] ss:$2 sm:$0xff] %v5382
        %s5525 = scalar_lea.vmem [#allocation1], 16
        %5526 = vst [vmem:[%s5525] ss:$2 sm:$0xff] %v5383
        %s5527 = scalar_lea.vmem [#allocation1], 17
        %5528 = vst [vmem:[%s5527] ss:$2 sm:$0xff] %v5384
        %v5529 = vld.sshfl [vmem:[#allocation1] sm:$0xff pattern:$0x75316420]
        %v5530 = vld.sshfl [vmem:[#allocation1 + $0x10] sm:$0xff pattern:$0x75316420]
        %5531 = vrot.lane.b32.xlu0 %v5529, 56
        %v5532 = vpop.permute.xlu0 %5531
        %5533 = vrot.lane.b32.xlu0 %v5530, 56
        %v5534 = vpop.permute.xlu0 %5533
        %5541 = vst [vmem:[#allocation1] ss:$2 sm:$0xff] %v5385
        %s5542 = scalar_lea.vmem [#allocation1], 1
        %5543 = vst [vmem:[%s5542] ss:$2 sm:$0xff] %v5386
        %s5544 = scalar_lea.vmem [#allocation1], 16
        %5545 = vst [vmem:[%s5544] ss:$2 sm:$0xff] %v5387
        %s5546 = scalar_lea.vmem [#allocation1], 17
        %5547 = vst [vmem:[%s5546] ss:$2 sm:$0xff] %v5388
        %v5548 = vld.sshfl [vmem:[#allocation1] sm:$0xff pattern:$0x75316420]
        %v5549 = vld.sshfl [vmem:[#allocation1 + $0x10] sm:$0xff pattern:$0x75316420]
        %5550 = vrot.lane.b32.xlu0 %v5548, 64
        %v5551 = vpop.permute.xlu0 %5550
        %5552 = vrot.lane.b32.xlu0 %v5549, 64
        %v5553 = vpop.permute.xlu0 %5552
        %v5556 = vsel %vm652, %v5400, %v5418
        %v5557 = vsel %vm652, %v5401, %v5420
        %v5558 = vsel %vm920, %v5556, %v5437
        %v5559 = vsel %vm920, %v5557, %v5439
        %v5560 = vsel %vm923, %v5558, %v5456
        %v5561 = vsel %vm923, %v5559, %v5458
        %v5562 = vsel %vm926, %v5560, %v5475
        %v5563 = vsel %vm926, %v5561, %v5477
        %v5564 = vsel %vm929, %v5562, %v5494
        %v5565 = vsel %vm929, %v5563, %v5496
        %v5566 = vsel %vm932, %v5564, %v5513
        %v5567 = vsel %vm932, %v5565, %v5515
        %v5568 = vsel %vm935, %v5566, %v5532
        %v5569 = vsel %vm935, %v5567, %v5534
        %v5570 = vsel %vm938, %v5568, %v5551
        %v5571 = vsel %vm938, %v5569, %v5553
        %v5572 = vpack.c.bf16 %v5571, %v5570
        %v5573 = vld [vmem:[%s8] sm:$0xf]
        %v5574 = vld [vmem:[%s8 + $0x4] sm:$0xf]
        %v5575 = vld [vmem:[%s8 + $0x8] sm:$0xf]
        %v5576 = vld [vmem:[%s8 + $0xc] sm:$0xf]
        %v5577 = vld [vmem:[%s8 + $0x10] sm:$0xf]
        %v5578 = vld [vmem:[%s8 + $0x14] sm:$0xf]
        %v5579 = vld [vmem:[%s8 + $0x18] sm:$0xf]
        %v5580 = vld [vmem:[%s8 + $0x1c] sm:$0xf]
        %v5581 = vld [vmem:[%s8 + $0x20] sm:$0xf]
        %v5582 = vld [vmem:[%s9] sm:$0x1]
        %v5584 = vperm.slane %v5582, 0
        %v5595 = vunpack.c.l.b16 %v5573
        %v5596 = vunpack.c.l.b16 %v5574
        %v5597 = vunpack.c.l.b16 %v5575
        %v5598 = vunpack.c.l.b16 %v5576
        %v5599 = vunpack.c.l.b16 %v5577
        %v5600 = vunpack.c.l.b16 %v5578
        %v5601 = vunpack.c.l.b16 %v5579
        %v5602 = vunpack.c.l.b16 %v5580
        %v5603 = vunpack.c.l.b16 %v5581
        %v5604 = vpack.c.b16 %v5596, %v5595
        %v5605 = vpack.c.b16 %v5598, %v5597
        %v5606 = vpack.c.b16 %v5600, %v5599
        %v5607 = vpack.c.b16 %v5602, %v5601
        %v5608 = vpack.c.b16 %v5603, %v5603
        %v5614 = vsel %vm982, %v5572, 0
        %v5617 = vsel %vm986, %v5608, 0
        %5619 = vmatpush.bf16.msra.mxu0 0
        %5620 = vmatpush.bf16.msra.mxu0 0
        %5621 = vmatpush.bf16.msra.mxu0 0
        %5622 = vmatpush.bf16.msra.mxu0 %v5617
        %5623 = vmatpush.bf16.msra.mxu0 %v5607
        %5624 = vmatpush.bf16.msra.mxu0 %v5606
        %5625 = vmatpush.bf16.msra.mxu0 %v5605
        %5626 = vmatpush.bf16.msra.mxu0 %v5604
        %5627 = vmatmul.bf16.gmra.mxu0 %v5614
        %v5628 = vpop.f32.mrf.mxu0
        %v5629 = vadd.f32 %v5584, %v5628
        %v5630 = vpop.f32.mrf.mxu0
        %v5631 = vadd.f32 %v5584, %v5630
        %5632 = vdwg.mxu0
        %v5633 = vmax.f32 %v5629, 0.0
        %v5634 = vmax.f32 %v5631, 0.0
        %v5635 = vmul.f32 %v3887, %v593
        %v5636 = vmul.f32 %v3887, %v594
        %v5639 = vrot.slane %v5633, 4
        %v5640 = vrot.slane %v5634, 4
        %v5643 = vmax.f32 %v5633, %v5639
        %v5644 = vmax.f32 %v5634, %v5640
        %v5647 = vrot.slane %v5643, 2
        %v5648 = vrot.slane %v5644, 2
        %v5649 = vsel %vm619, %v5643, %v5647
        %vm5650 = vcmask 1043458
        %v5651 = vsel %vm5650, %v5643, %v5647
        %v5652 = vrot.slane %v5651, 2
        %v5653 = vsel %vm619, %v5644, %v5648
        %v5654 = vsel %vm5650, %v5644, %v5648
        %v5655 = vrot.slane %v5654, 2
        %v5660 = vrot.slane %v5649, 7
        %v5661 = vrot.slane %v5660, 2
        %v5662 = vrot.slane %v5652, 7
        %v5663 = vrot.slane %v5662, 2
        %v5664 = vrot.slane %v5653, 7
        %v5665 = vrot.slane %v5664, 2
        %v5666 = vrot.slane %v5655, 7
        %v5667 = vrot.slane %v5666, 2
        %v5672 = vmax.f32 %v5649, %v5661
        %v5673 = vmax.f32 %v5652, %v5663
        %v5674 = vmax.f32 %v5653, %v5665
        %v5675 = vmax.f32 %v5655, %v5667
        %v5676 = vmul.f32 %v3896, %v5672
        %v5677 = vmul.f32 %v3896, %v5673
        %v5678 = vmul.f32 %v3896, %v5674
        %v5679 = vmul.f32 %v3896, %v5675
        %v5684 = vperm.slane %v5676, 0
        %v5685 = vperm.slane %v5677, 0
        %v5686 = vperm.slane %v5678, 0
        %v5687 = vperm.slane %v5679, 0
        %v5688 = vsel %vm4490, %v5685, %v5684
        %v5689 = vsel %vm4490, %v5687, %v5686
        %v5692 = vadd.f32 %v5635, %v5688
        %v5693 = vadd.f32 %v5636, %v5689
        %v5694 = vmul.f32 %v4297, %v593
        %v5695 = vmul.f32 %v4297, %v594
        %v5696 = vadd.f32 %v5692, %v5694
        %v5697 = vadd.f32 %v5693, %v5695
        %5698 = vst.msk [vmem:[#allocation2] sm:$0xff] %vm652, 0.0
        %5699 = vst.msk [vmem:[#allocation2 + $0x8] sm:$0xff] %vm652, 0.0
        %5700 = vst.msk [vmem:[#allocation2 + $0x10] sm:$0x3] %vm655, 0.0
        %5701 = vst.msk [vmem:[#allocation2 + $0x18] sm:$0xff] %vm652, 0.0
        %5702 = vst.msk [vmem:[#allocation2 + $0x20] sm:$0xff] %vm652, 0.0
        %5703 = vst.msk [vmem:[#allocation2 + $0x28] sm:$0x3] %vm655, 0.0
        %5704 = vst.msk [vmem:[#allocation2 + $0x30] sm:$0xff] %vm652, 0.0
        %5705 = vst.msk [vmem:[#allocation2 + $0x38] sm:$0xff] %vm652, 0.0
        %5706 = vst.msk [vmem:[#allocation2 + $0x40] sm:$0x3] %vm655, 0.0
        %5707 = vst.msk [vmem:[#allocation2 + $0x48] sm:$0xff] %vm652, 0.0
        %5708 = vst.msk [vmem:[#allocation2 + $0x50] sm:$0xff] %vm652, 0.0
        %5709 = vst.msk [vmem:[#allocation2 + $0x58] sm:$0x3] %vm655, 0.0
        %5710 = vst.msk [vmem:[#allocation2 + $0x60] sm:$0xff] %vm652, 0.0
        %5711 = vst.msk [vmem:[#allocation2 + $0x68] sm:$0xff] %vm652, 0.0
        %5712 = vst.msk [vmem:[#allocation2 + $0x70] sm:$0x3] %vm655, 0.0
        %5713 = vst.msk [vmem:[#allocation2 + $0x78] sm:$0xff] %vm652, 0.0
        %5714 = vst.msk [vmem:[#allocation2 + $0x80] sm:$0xff] %vm652, 0.0
        %5715 = vst.msk [vmem:[#allocation2 + $0x88] sm:$0x3] %vm655, 0.0
        %5716 = vst.msk [vmem:[#allocation2 + $0x90] sm:$0xff] %vm652, 0.0
        %5717 = vst.msk [vmem:[#allocation2 + $0x98] sm:$0xff] %vm652, 0.0
        %5718 = vst.msk [vmem:[#allocation2 + $0xa0] sm:$0x3] %vm655, 0.0
        %5719 = vst.msk [vmem:[#allocation2 + $0xa8] sm:$0xff] %vm652, 0.0
        %5720 = vst.msk [vmem:[#allocation2 + $0xb0] sm:$0xff] %vm652, 0.0
        %5721 = vst.msk [vmem:[#allocation2 + $0xb8] sm:$0x3] %vm655, 0.0
        %5722 = vst.msk [vmem:[#allocation2 + $0xc0] sm:$0xff] %vm652, 0.0
        %5723 = vst.msk [vmem:[#allocation2 + $0xc8] sm:$0xff] %vm652, 0.0
        %5724 = vst.msk [vmem:[#allocation2 + $0xd0] sm:$0x3] %vm655, 0.0
        %5725 = vst.msk [vmem:[#allocation2 + $0xd8] sm:$0xff] %vm652, 0.0
        %5726 = vst.msk [vmem:[#allocation2 + $0xe0] sm:$0xff] %vm652, 0.0
        %5727 = vst.msk [vmem:[#allocation2 + $0xe8] sm:$0x3] %vm655, 0.0
        %5728 = vst.msk [vmem:[#allocation2 + $0xf0] sm:$0xff] %vm652, 0.0
        %5729 = vst.msk [vmem:[#allocation2 + $0xf8] sm:$0xff] %vm652, 0.0
        %5730 = vst.msk [vmem:[#allocation2 + $0x100] sm:$0x3] %vm655, 0.0
        %5731 = vst.msk [vmem:[#allocation2 + $0x108] sm:$0xff] %vm652, 0.0
        %5732 = vst.msk [vmem:[#allocation2 + $0x110] sm:$0xff] %vm652, 0.0
        %5733 = vst.msk [vmem:[#allocation2 + $0x118] sm:$0x3] %vm655, 0.0
        %5734 = vst.msk [vmem:[#allocation2 + $0x120] sm:$0xff] %vm652, 0.0
        %5735 = vst.msk [vmem:[#allocation2 + $0x128] sm:$0xff] %vm652, 0.0
        %5736 = vst.msk [vmem:[#allocation2 + $0x130] sm:$0x3] %vm655, 0.0
        %5737 = vst.msk [vmem:[#allocation2 + $0x138] sm:$0xff] %vm652, 0.0
        %5738 = vst.msk [vmem:[#allocation2 + $0x140] sm:$0xff] %vm652, 0.0
        %5739 = vst.msk [vmem:[#allocation2 + $0x148] sm:$0x3] %vm655, 0.0
        %5740 = vst.msk [vmem:[#allocation2 + $0x150] sm:$0xff] %vm652, 0.0
        %5741 = vst.msk [vmem:[#allocation2 + $0x158] sm:$0xff] %vm652, 0.0
        %5742 = vst.msk [vmem:[#allocation2 + $0x160] sm:$0x3] %vm655, 0.0
        %5743 = vst.msk [vmem:[#allocation2 + $0x168] sm:$0xff] %vm652, 0.0
        %5744 = vst.msk [vmem:[#allocation2 + $0x170] sm:$0xff] %vm652, 0.0
        %5745 = vst.msk [vmem:[#allocation2 + $0x178] sm:$0x3] %vm655, 0.0
        %5746 = vst.msk [vmem:[#allocation2 + $0x180] sm:$0xff] %vm652, 0.0
        %5747 = vst.msk [vmem:[#allocation2 + $0x188] sm:$0xff] %vm652, 0.0
        %5748 = vst.msk [vmem:[#allocation2 + $0x190] sm:$0x3] %vm655, 0.0
        %5749 = vst.msk [vmem:[#allocation2 + $0x198] sm:$0xff] %vm652, 0.0
        %5750 = vst.msk [vmem:[#allocation2 + $0x1a0] sm:$0xff] %vm652, 0.0
        %5751 = vst.msk [vmem:[#allocation2 + $0x1a8] sm:$0x3] %vm655, 0.0
        %5752 = vst.msk [vmem:[%s708 + $0x1] sm:$0x3] %vm655, %v5696
        %5753 = vst.msk [vmem:[%s708 + $0x19] sm:$0x3] %vm655, %v5697
        %v5754 = vld [vmem:[#allocation2] sm:$0x3]
        %v5755 = vld [vmem:[#allocation2 + $0x18] sm:$0x3]
        %v5756 = vld [vmem:[#allocation2 + $0x1] sm:$0x3]
        %v5757 = vld [vmem:[#allocation2 + $0x19] sm:$0x3]
        %v5758 = vld [vmem:[#allocation2 + $0x2] sm:$0x3]
        %v5759 = vld [vmem:[#allocation2 + $0x1a] sm:$0x3]
        %v5760 = vld [vmem:[%s708] sm:$0x3]
        %v5761 = vld [vmem:[%s708 + $0x18] sm:$0x3]
        %v5762 = vld [vmem:[%s708 + $0x1] sm:$0x3]
        %v5763 = vld [vmem:[%s708 + $0x19] sm:$0x3]
        %v5764 = vld [vmem:[%s708 + $0x2] sm:$0x3]
        %v5765 = vld [vmem:[%s708 + $0x1a] sm:$0x3]
        %v5766 = vld [vmem:[%s738] sm:$0x3]
        %v5767 = vld [vmem:[%s738 + $0x18] sm:$0x3]
        %v5768 = vld [vmem:[%s738 + $0x1] sm:$0x3]
        %v5769 = vld [vmem:[%s738 + $0x19] sm:$0x3]
        %v5770 = vld [vmem:[%s738 + $0x2] sm:$0x3]
        %v5771 = vld [vmem:[%s738 + $0x1a] sm:$0x3]
        %5774 = vst [vmem:[#allocation1] ss:$4 sm:$0xff] %v5754
        %s5775 = scalar_lea.vmem [#allocation1], 1
        %5776 = vst [vmem:[%s5775] ss:$4 sm:$0xff] %v5755
        %v5777 = vld.sshfl [vmem:[#allocation1] sm:$0xff pattern:$0x73625140]
        %5781 = vst [vmem:[#allocation1] ss:$4 sm:$0xff] %v5756
        %s5782 = scalar_lea.vmem [#allocation1], 1
        %5783 = vst [vmem:[%s5782] ss:$4 sm:$0xff] %v5757
        %v5784 = vld.sshfl [vmem:[#allocation1] sm:$0xff pattern:$0x73625140]
        %5785 = vrot.lane.b32.xlu0 %v5784, 8
        %v5786 = vpop.permute.xlu0 %5785
        %5790 = vst [vmem:[#allocation1] ss:$4 sm:$0xff] %v5758
        %s5791 = scalar_lea.vmem [#allocation1], 1
        %5792 = vst [vmem:[%s5791] ss:$4 sm:$0xff] %v5759
        %v5793 = vld.sshfl [vmem:[#allocation1] sm:$0xff pattern:$0x73625140]
        %5794 = vrot.lane.b32.xlu0 %v5793, 16
        %v5795 = vpop.permute.xlu0 %5794
        %5799 = vst [vmem:[#allocation1] ss:$4 sm:$0xff] %v5760
        %s5800 = scalar_lea.vmem [#allocation1], 1
        %5801 = vst [vmem:[%s5800] ss:$4 sm:$0xff] %v5761
        %v5802 = vld.sshfl [vmem:[#allocation1] sm:$0xff pattern:$0x73625140]
        %5803 = vrot.lane.b32.xlu0 %v5802, 24
        %v5804 = vpop.permute.xlu0 %5803
        %5808 = vst [vmem:[#allocation1] ss:$4 sm:$0xff] %v5762
        %s5809 = scalar_lea.vmem [#allocation1], 1
        %5810 = vst [vmem:[%s5809] ss:$4 sm:$0xff] %v5763
        %v5811 = vld.sshfl [vmem:[#allocation1] sm:$0xff pattern:$0x73625140]
        %5812 = vrot.lane.b32.xlu0 %v5811, 32
        %v5813 = vpop.permute.xlu0 %5812
        %5817 = vst [vmem:[#allocation1] ss:$4 sm:$0xff] %v5764
        %s5818 = scalar_lea.vmem [#allocation1], 1
        %5819 = vst [vmem:[%s5818] ss:$4 sm:$0xff] %v5765
        %v5820 = vld.sshfl [vmem:[#allocation1] sm:$0xff pattern:$0x73625140]
        %5821 = vrot.lane.b32.xlu0 %v5820, 40
        %v5822 = vpop.permute.xlu0 %5821
        %5826 = vst [vmem:[#allocation1] ss:$4 sm:$0xff] %v5766
        %s5827 = scalar_lea.vmem [#allocation1], 1
        %5828 = vst [vmem:[%s5827] ss:$4 sm:$0xff] %v5767
        %v5829 = vld.sshfl [vmem:[#allocation1] sm:$0xff pattern:$0x73625140]
        %5830 = vrot.lane.b32.xlu0 %v5829, 48
        %v5831 = vpop.permute.xlu0 %5830
        %5835 = vst [vmem:[#allocation1] ss:$4 sm:$0xff] %v5768
        %s5836 = scalar_lea.vmem [#allocation1], 1
        %5837 = vst [vmem:[%s5836] ss:$4 sm:$0xff] %v5769
        %v5838 = vld.sshfl [vmem:[#allocation1] sm:$0xff pattern:$0x73625140]
        %5839 = vrot.lane.b32.xlu0 %v5838, 56
        %v5840 = vpop.permute.xlu0 %5839
        %5844 = vst [vmem:[#allocation1] ss:$4 sm:$0xff] %v5770
        %s5845 = scalar_lea.vmem [#allocation1], 1
        %5846 = vst [vmem:[%s5845] ss:$4 sm:$0xff] %v5771
        %v5847 = vld.sshfl [vmem:[#allocation1] sm:$0xff pattern:$0x73625140]
        %5848 = vrot.lane.b32.xlu0 %v5847, 64
        %v5849 = vpop.permute.xlu0 %5848
        %v5851 = vsel %vm652, %v5777, %v5786
        %v5852 = vsel %vm920, %v5851, %v5795
        %v5853 = vsel %vm923, %v5852, %v5804
        %v5854 = vsel %vm926, %v5853, %v5813
        %v5855 = vsel %vm929, %v5854, %v5822
        %v5856 = vsel %vm932, %v5855, %v5831
        %v5857 = vsel %vm935, %v5856, %v5840
        %v5858 = vsel %vm938, %v5857, %v5849
        %v5859 = vpack.c.bf16 %v5858, %v5858
        %v5860 = vld [vmem:[%s8] sm:$0xf]
        %v5861 = vld [vmem:[%s8 + $0x4] sm:$0xf]
        %v5862 = vld [vmem:[%s8 + $0x8] sm:$0xf]
        %v5863 = vld [vmem:[%s8 + $0xc] sm:$0xf]
        %v5864 = vld [vmem:[%s8 + $0x10] sm:$0xf]
        %v5865 = vld [vmem:[%s8 + $0x14] sm:$0xf]
        %v5866 = vld [vmem:[%s8 + $0x18] sm:$0xf]
        %v5867 = vld [vmem:[%s8 + $0x1c] sm:$0xf]
        %v5868 = vld [vmem:[%s8 + $0x20] sm:$0xf]
        %v5869 = vld [vmem:[%s9] sm:$0x1]
        %v5871 = vperm.slane %v5869, 0
        %v5882 = vunpack.c.l.b16 %v5860
        %v5883 = vunpack.c.l.b16 %v5861
        %v5884 = vunpack.c.l.b16 %v5862
        %v5885 = vunpack.c.l.b16 %v5863
        %v5886 = vunpack.c.l.b16 %v5864
        %v5887 = vunpack.c.l.b16 %v5865
        %v5888 = vunpack.c.l.b16 %v5866
        %v5889 = vunpack.c.l.b16 %v5867
        %v5890 = vunpack.c.l.b16 %v5868
        %v5891 = vpack.c.b16 %v5883, %v5882
        %v5892 = vpack.c.b16 %v5885, %v5884
        %v5893 = vpack.c.b16 %v5887, %v5886
        %v5894 = vpack.c.b16 %v5889, %v5888
        %v5895 = vpack.c.b16 %v5890, %v5890
        %v5901 = vsel %vm982, %v5859, 0
        %v5904 = vsel %vm986, %v5895, 0
        %5906 = vmatpush.bf16.msra.mxu0 0
        %5907 = vmatpush.bf16.msra.mxu0 0
        %5908 = vmatpush.bf16.msra.mxu0 0
        %5909 = vmatpush.bf16.msra.mxu0 %v5904
        %5910 = vmatpush.bf16.msra.mxu0 %v5894
        %5911 = vmatpush.bf16.msra.mxu0 %v5893
        %5912 = vmatpush.bf16.msra.mxu0 %v5892
        %5913 = vmatpush.bf16.msra.mxu0 %v5891
        %5914 = vmatmul.bf16.gmra.mxu0 %v5901
        %v5915 = vpop.f32.mrf.mxu0
        %v5916 = vadd.f32 %v5871, %v5915
        %v5917 = vpop.f32.mrf.mxu0
        %5918 = vdwg.mxu0
        %v5919 = vmax.f32 %v5916, 0.0
        %5920 = vst.msk [vmem:[%s542] sm:$0xff] %vm652, %v3855
        %5921 = vst.msk [vmem:[%s542 + $0x8] sm:$0xff] %vm652, %v3856
        %5922 = vst.msk [vmem:[%s542 + $0x10] sm:$0xff] %vm652, %v3857
        %5923 = vst.msk [vmem:[%s542 + $0x18] sm:$0xff] %vm652, %v3858
        %5924 = vst.msk [vmem:[%s542 + $0x20] sm:$0xff] %vm652, %v3859
        %5925 = vst.msk [vmem:[%s542 + $0x28] sm:$0xff] %vm652, %v3860
        %5926 = vst.msk [vmem:[%s542 + $0x30] sm:$0xff] %vm652, %v3861
        %5927 = vst.msk [vmem:[%s542 + $0x38] sm:$0xff] %vm652, %v3862
        %5928 = vst.msk [vmem:[%s542 + $0x40] sm:$0xff] %vm652, %v3863
        %5929 = vst.msk [vmem:[%s542 + $0x48] sm:$0xff] %vm652, %v3864
        %5930 = vst.msk [vmem:[%s542 + $0x50] sm:$0xff] %vm652, %v3865
        %5931 = vst.msk [vmem:[%s542 + $0x58] sm:$0xff] %vm652, %v3866
        %5932 = vst.msk [vmem:[%s542 + $0x60] sm:$0xff] %vm652, %v3867
        %5933 = vst.msk [vmem:[%s542 + $0x68] sm:$0xff] %vm652, %v3868
        %5934 = vst.msk [vmem:[%s542 + $0x70] sm:$0xff] %vm652, %v3869
        %5935 = vst.msk [vmem:[%s542 + $0x78] sm:$0xff] %vm652, %v3870
        %5936 = vst.msk [vmem:[%s542 + $0x80] sm:$0xff] %vm652, %v3871
        %5937 = vst.msk [vmem:[%s542 + $0x88] sm:$0xff] %vm652, %v3872
        %5938 = vst.msk [vmem:[%s542 + $0x90] sm:$0xff] %vm652, %v3873
        %5939 = vst.msk [vmem:[%s542 + $0x98] sm:$0xff] %vm652, %v3874
        %5940 = vst.msk [vmem:[%s542 + $0xa0] sm:$0xff] %vm652, %v3875
        %5941 = vst.msk [vmem:[%s542 + $0xa8] sm:$0xff] %vm652, %v3876
        %5942 = vst.msk [vmem:[%s542 + $0xb0] sm:$0xff] %vm652, %v3877
        %5943 = vst.msk [vmem:[%s542 + $0xb8] sm:$0xff] %vm652, %v3878
        %5944 = vst.msk [vmem:[%s542 + $0xc0] sm:$0xff] %vm652, %v3879
        %5945 = vst.msk [vmem:[%s542 + $0xc8] sm:$0xff] %vm652, %v3880
        %5946 = vst.msk [vmem:[%s542 + $0xd0] sm:$0xff] %vm652, %v3881
        %5947 = vst.msk [vmem:[%s542 + $0xd8] sm:$0xff] %vm652, %v3882
        %5948 = vst.msk [vmem:[%s542 + $0xe0] sm:$0xff] %vm652, %v3883
        %5949 = vst.msk [vmem:[%s542 + $0xe8] sm:$0xff] %vm652, %v3884
        %5950 = vst.msk [vmem:[%s542 + $0xf0] sm:$0xff] %vm652, %v3885
        %5951 = vst.msk [vmem:[%s542 + $0xf8] sm:$0xff] %vm652, %v3886
        %5952 = vst.msk [vmem:[%s503] sm:$0xff] %vm652, %v5111
        %5953 = vst.msk [vmem:[%s503 + $0x8] sm:$0xff] %vm652, %v5112
        %5954 = vst.msk [vmem:[%s503 + $0x10] sm:$0xff] %vm652, %v5113
        %5955 = vst.msk [vmem:[%s503 + $0x18] sm:$0xff] %vm652, %v5114
        %5956 = vst.msk [vmem:[%s503 + $0x20] sm:$0xff] %vm652, %v5115
        %5957 = vst.msk [vmem:[%s503 + $0x28] sm:$0xff] %vm652, %v5116
        %5958 = vst.msk [vmem:[%s503 + $0x30] sm:$0xff] %vm652, %v5117
        %5959 = vst.msk [vmem:[%s503 + $0x38] sm:$0xff] %vm652, %v5118
        %5960 = vst.msk [vmem:[%s510] sm:$0xf] %vm709, %v5633
        %5961 = vst.msk [vmem:[%s510 + $0x4] sm:$0xf] %vm709, %v5639
        %5962 = vst.msk [vmem:[%s510 + $0x8] sm:$0xf] %vm709, %v5634
        %5963 = vst.msk [vmem:[%s510 + $0xc] sm:$0xf] %vm709, %v5640
        %v5965 = vrot.slane %v5919, 2
        %5967 = vst.msk [vmem:[%s517] sm:$0x3] %vm655, %v5919
        %5968 = vst.msk [vmem:[%s517 + $0x2] sm:$0x3] %vm655, %v5965
        %p5969 = scmp.lt.s32.totalorder %s32, 1
        %s5970 = scalar_select %p5969, %s32, 1
        %s5971 = smul.addr %s5970, 32
        %s5972 = smul.addr %s5971, 8
        %s5973 = scalar_lea.vmem %s10, %s5972
        %s5974 = sand.u32 %s296, 1
        %s5975 = scalar_lea.sflag [#allocation4], %s5974
        %s5976 = sand.u32 %s296, 1
        %s5977 = smul.addr %s5976, 64
        %s5978 = scalar_lea.vmem [#allocation6], %s5977
        %s5979 = sand.u32 %s32, 1
        %s5980 = scalar_lea.sflag [#allocation8], %s5979
        %s5981 = sand.u32 %s322, 1
        %s5982 = smul.addr %s5981, 16
        %s5983 = scalar_lea.vmem [#allocation7], %s5982
        %s5984 = sand.u32 %s32, 1
        %s5985 = scalar_lea.sflag [#allocation8], %s5984
        %s5986 = sand.u32 %s348, 1
        %s5987 = smul.addr %s5986, 4
        %s5988 = scalar_lea.vmem [#allocation9], %s5987
        // Predicated region
        $region65: #{bifpn_forward_pallas.1} parent=59 // pred_check
          %p5989 = pneg %p280
        $region66: #{bifpn_forward_pallas.1} parent=59 // pred_check_branch
          %5991 = sbr.rel (%p5989) target = $region68
        $region67: #{bifpn_forward_pallas.1} parent=59 // pred_region
          _
        $region68: #{bifpn_forward_pallas.1} parent=59 // pred_fallthru
          _
        // Predicated region
        $region69: #{bifpn_forward_pallas.1} parent=59 // pred_check
          %p5992 = pneg %p306
        $region70: #{bifpn_forward_pallas.1} parent=59 // pred_check_branch
          %5994 = sbr.rel (%p5992) target = $region72
        $region71: #{bifpn_forward_pallas.1} parent=59 // pred_region
          %5996 = vsyncadd %s5975, 0
          %s5997 = smul.addr %s32, 8
          %s5998 = smul.addr %s5997, 8
          %s5999 = scalar_lea.hbm %s11, %s5998
          %s6000 = sshll.u32 %s5978, 4
          %s6001 = int_to_ptr.vmem [resolvable:$true] %s6000
          %s6002 = sshll.u32 %s5999, 4
          %s6003 = int_to_ptr.hbm [resolvable:$true] %s6002
          %6008 = dma.vmem_to_hbm [thread:$0]  %s6001, 1024, %s6003, %s5975, 128, 128, 8
        $region72: #{bifpn_forward_pallas.1} parent=59 // pred_fallthru
          _
        // Predicated region
        $region73: #{bifpn_forward_pallas.1} parent=59 // pred_check
          %p6009 = pneg %p332
        $region74: #{bifpn_forward_pallas.1} parent=59 // pred_check_branch
          %6011 = sbr.rel (%p6009) target = $region76
        $region75: #{bifpn_forward_pallas.1} parent=59 // pred_region
          %6013 = vsyncadd %s5980, 0
          %s6014 = smul.addr %s32, 4
          %s6015 = smul.addr %s6014, 4
          %s6016 = scalar_lea.hbm %s12, %s6015
          %s6017 = sshll.u32 %s5983, 4
          %s6018 = int_to_ptr.vmem [resolvable:$true] %s6017
          %s6019 = sshll.u32 %s6016, 4
          %s6020 = int_to_ptr.hbm [resolvable:$true] %s6019
          %6025 = dma.vmem_to_hbm [thread:$0]  %s6018, 256, %s6020, %s5980, 64, 64, 4
        $region76: #{bifpn_forward_pallas.1} parent=59 // pred_fallthru
          _
        // Predicated region
        $region77: #{bifpn_forward_pallas.1} parent=59 // pred_check
          %p6026 = pneg %p358
        $region78: #{bifpn_forward_pallas.1} parent=59 // pred_check_branch
          %6028 = sbr.rel (%p6026) target = $region80
        $region79: #{bifpn_forward_pallas.1} parent=59 // pred_region
          %6030 = vsyncadd %s5985, 0
          %s6031 = smul.addr %s32, 2
          %s6032 = smul.addr %s6031, 2
          %s6033 = scalar_lea.hbm %s13, %s6032
          %s6034 = sshll.u32 %s5988, 4
          %s6035 = int_to_ptr.vmem [resolvable:$true] %s6034
          %s6036 = sshll.u32 %s6033, 4
          %s6037 = int_to_ptr.hbm [resolvable:$true] %s6036
          %6042 = dma.vmem_to_hbm [thread:$0]  %s6035, 64, %s6037, %s5985, 32, 32, 2
        $region80: #{bifpn_forward_pallas.1} parent=59 // pred_fallthru
          _
      $region60: #{bifpn_forward_pallas.1} parent=5 // pred_fallthru
        _
      %p6043 = scmp.le.s32.totalorder 2, %s27
      // Predicated region
      $region81: #{bifpn_forward_pallas.1} parent=5 // pred_check
        %p6044 = pneg %p6043
      $region82: #{bifpn_forward_pallas.1} parent=5 // pred_check_branch
        %6046 = sbr.rel (%p6044) target = $region84
      $region83: #{bifpn_forward_pallas.1} parent=5 // pred_region
        %s6047 = ssub.s32 %s27, 2
        // Predicated region
        $region85: #{bifpn_forward_pallas.1} parent=83 // pred_check
          %p6048 = pneg %p286
        $region86: #{bifpn_forward_pallas.1} parent=83 // pred_check_branch
          %6050 = sbr.rel (%p6048) target = $region88
        $region87: #{bifpn_forward_pallas.1} parent=83 // pred_region
          %p6051 = scmp.lt.s32.totalorder %s33, 1
          %s6052 = scalar_select %p6051, %s33, 1
          %s6053 = smul.addr %s6052, 32
          %s6054 = smul.addr %s6053, 8
          %s6055 = scalar_lea.vmem %s10, %s6054
        $region88: #{bifpn_forward_pallas.1} parent=83 // pred_fallthru
          _
        // Predicated region
        $region89: #{bifpn_forward_pallas.1} parent=83 // pred_check
          %p6056 = pneg %p312
        $region90: #{bifpn_forward_pallas.1} parent=83 // pred_check_branch
          %6058 = sbr.rel (%p6056) target = $region92
        $region91: #{bifpn_forward_pallas.1} parent=83 // pred_region
          %s6059 = sand.u32 %s297, 1
          %s6060 = scalar_lea.sflag [#allocation4], %s6059
          %s6061 = sand.u32 %s297, 1
          %s6062 = smul.addr %s6061, 64
          %s6063 = scalar_lea.vmem [#allocation6], %s6062
          %6065 = dma.done %s6060, 1024
        $region92: #{bifpn_forward_pallas.1} parent=83 // pred_fallthru
          _
        // Predicated region
        $region93: #{bifpn_forward_pallas.1} parent=83 // pred_check
          %p6066 = pneg %p338
        $region94: #{bifpn_forward_pallas.1} parent=83 // pred_check_branch
          %6068 = sbr.rel (%p6066) target = $region96
        $region95: #{bifpn_forward_pallas.1} parent=83 // pred_region
          %s6069 = sand.u32 %s33, 1
          %s6070 = scalar_lea.sflag [#allocation8], %s6069
          %s6071 = sand.u32 %s323, 1
          %s6072 = smul.addr %s6071, 16
          %s6073 = scalar_lea.vmem [#allocation7], %s6072
          %6075 = dma.done %s6070, 256
        $region96: #{bifpn_forward_pallas.1} parent=83 // pred_fallthru
          _
        // Predicated region
        $region97: #{bifpn_forward_pallas.1} parent=83 // pred_check
          %p6076 = pneg %p364
        $region98: #{bifpn_forward_pallas.1} parent=83 // pred_check_branch
          %6078 = sbr.rel (%p6076) target = $region100
        $region99: #{bifpn_forward_pallas.1} parent=83 // pred_region
          %s6079 = sand.u32 %s33, 1
          %s6080 = scalar_lea.sflag [#allocation8], %s6079
          %s6081 = sand.u32 %s349, 1
          %s6082 = smul.addr %s6081, 4
          %s6083 = scalar_lea.vmem [#allocation9], %s6082
          %6085 = dma.done %s6080, 64
        $region100: #{bifpn_forward_pallas.1} parent=83 // pred_fallthru
          _
      $region84: #{bifpn_forward_pallas.1} parent=5 // pred_fallthru
        _
    $region6: #{bifpn_forward_pallas.1} parent=1 // loop_footer
      %s31 = sadd.s32 1, %s27
    $region7: #{bifpn_forward_pallas.1} parent=1 // loop_footer_branch
      %26 = sbr.rel target = $region3
    $region8: #{bifpn_forward_pallas.1} parent=1 // loop_exit
      _
    %6086 = vsyncpa [#allocation4], 1
    %s6087 = scalar_lea.sflag [#allocation4], 1
    %6088 = vsyncpa %s6087, 1
    %6089 = vsyncpa [#allocation8], 1
    %s6090 = scalar_lea.sflag [#allocation8], 1
    %6091 = vsyncpa %s6090, 1
    %6092 = vsyncpa [#allocation5], 1
    %s6093 = scalar_lea.sflag [#allocation5], 1
    %6094 = vsyncpa %s6093, 1

</llo_original>
